<compile_context>
chip_gen: v5e
topology: v5e:2x2
jax: 0.10.0
libtpu: 0.0.40
codegen_flags: <defaults>
</compile_context>

<pallas_src>
from functools import partial

import jax
import jax.numpy as jnp
from jax.experimental import pallas as pl
from jax.experimental.pallas import tpu as pltpu


# ---------------------------------------------------------------------------
# Fused kernel
# ---------------------------------------------------------------------------

def make_critic_kernel(*, S1, ow1, oh2, ow2, C, tile_b):
    """Builds the fused forward kernel for one batch tile of size `tile_b`.

    wstack layout (first dim): [0]=conv1 W (K padded 27->C), [1..9]=conv2 taps,
    [10..10+S2-1]=fc per-spatial-position blocks, [10+S2]=Q1_state W1 (rows padded),
    [11+S2]=Q1_state W2.
    bstack rows: conv1_b, conv2_b, fc_b, ln_gamma, ln_beta, q1s_b1, q1s_b2, 0.
    """
    S2 = oh2 * ow2
    KW_Q1S_1 = 10 + S2
    KW_Q1S_2 = 11 + S2
    TB = tile_b
    bf16 = jnp.bfloat16
    f32 = jnp.float32

    def kernel(cols1_ref, sa_ref, wstack_ref, bstack_ref,
               whead_ref, bhead_ref, w2h_ref, b2h_ref,
               q_ref, y1_scr):
        # ---- hoisted parameter loads (reused across the unrolled loops) ----
        w1 = wstack_ref[0]                                   # [C, C] bf16
        w2_taps = [wstack_ref[1 + t] for t in range(9)]      # 9 x [C, C] bf16
        b_conv1 = bstack_ref[0:1, :]
        b_conv2 = bstack_ref[1:2, :]
        b_fc = bstack_ref[2:3, :]
        ln_g = bstack_ref[3:4, :]
        ln_b = bstack_ref[4:5, :]
        b_q1s_1 = bstack_ref[5:6, :]
        b_q1s_2 = bstack_ref[6:7, :]

        # ---- conv1 (3x3 / stride 2; windows pre-gathered) + ReLU -> VMEM scratch ----
        # Scratch row layout: row = s1 * TB + b  (spatial-major, batch innermost),
        # so conv2's shifted windows below are contiguous static slices.
        for s1 in range(S1):
            a = jnp.dot(cols1_ref[s1], w1, preferred_element_type=f32) + b_conv1
            y1_scr[s1 * TB:(s1 + 1) * TB, :] = jnp.maximum(a, 0.0)

        # ---- conv2 (3x3 / stride 1) + ReLU, fused with flatten @ fc ----
        f_acc = jnp.zeros((TB, C), f32)
        for i2 in range(oh2):
            h = jnp.zeros((ow2 * TB, C), f32)                # rows: j2 * TB + b
            for di in range(3):
                for dj in range(3):
                    r0 = ((i2 + di) * ow1 + dj) * TB
                    blk = y1_scr[r0:r0 + ow2 * TB, :].astype(bf16)
                    h = h + jnp.dot(blk, w2_taps[di * 3 + dj],
                                    preferred_element_type=f32)
            h = jnp.maximum(h + b_conv2, 0.0)                # f32 elementwise
            for j2 in range(ow2):
                w_fc = wstack_ref[10 + i2 * ow2 + j2]        # [C, C] bf16
                f_acc = f_acc + jnp.dot(
                    h[j2 * TB:(j2 + 1) * TB, :].astype(bf16), w_fc,
                    preferred_element_type=f32)

        # ---- fc bias -> LayerNorm -> tanh (all f32 on VPU/EUP) ----
        f = f_acc + b_fc
        mu = jnp.mean(f, axis=-1, keepdims=True)
        var = jnp.mean((f - mu) ** 2, axis=-1, keepdims=True)
        feat = jnp.tanh((f - mu) * jax.lax.rsqrt(var + 1e-5) * ln_g + ln_b)

        # ---- Q1_state MLP (shared by both heads, as in the reference forward) ----
        sa = sa_ref[...]                                     # [TB, C] bf16 (padded)
        hs = jnp.tanh(jnp.dot(sa, wstack_ref[KW_Q1S_1],
                              preferred_element_type=f32) + b_q1s_1)
        qs = jnp.tanh(jnp.dot(hs.astype(bf16), wstack_ref[KW_Q1S_2],
                              preferred_element_type=f32) + b_q1s_2)

        # ---- merged Q1/Q2 heads: one [TB, 2*cat_fc] hidden, one [TB, 2] output ----
        h12 = jnp.tanh(
            jnp.dot(feat.astype(bf16), whead_ref[0], preferred_element_type=f32)
            + jnp.dot(qs.astype(bf16), whead_ref[1], preferred_element_type=f32)
            + bhead_ref[...])
        q = jnp.dot(h12.astype(bf16), w2h_ref[...],
                    preferred_element_type=f32) + b2h_ref[...]
        q_ref[...] = q.astype(q_ref.dtype)

    return kernel


# ---------------------------------------------------------------------------
# Jitted forward wrapper (split_obs without host sync, window gather, padding)
# ---------------------------------------------------------------------------

@partial(jax.jit, static_argnames=("state_dim", "tile_b"))
def critic_dict_obs_forward(obs, action, packed, *, state_dim, tile_b=8):
    assert obs.ndim == 4 and obs.shape[1] == 4
    assert obs.shape[0] == action.shape[0]
    B, _, H, W = obs.shape
    C = packed["wstack"].shape[-1]
    nW = packed["wstack"].shape[0]
    head2 = packed["whead"].shape[-1]

    oh1, ow1 = (H - 3) // 2 + 1, (W - 3) // 2 + 1
    oh2, ow2 = oh1 - 2, ow1 - 2
    S1 = oh1 * ow1

    # split_obs (state_dim is a STATIC int -> no device->host readback here)
    img = obs[:, :3]
    robot_state = obs[:, 3, 0, 1:1 + state_dim]

    # conv1 window gather (3x3, stride 2) on the raw 3-channel image, K padded to C,
    # spatial-major layout [S1, B, C] so the kernel can batch-tile dim 1.
    x = jnp.transpose(img, (0, 2, 3, 1))                     # NCHW -> NHWC
    wins = [x[:, di:di + 2 * oh1:2, dj:dj + 2 * ow1:2, :]
            for di in range(3) for dj in range(3)]
    cols = jnp.concatenate(wins, axis=-1)                    # [B, oh1, ow1, 27]
    cols = jnp.pad(cols, ((0, 0), (0, 0), (0, 0), (0, C - cols.shape[-1])))
    cols = jnp.transpose(cols.reshape(B, S1, C), (1, 0, 2))  # [S1, B, C]

    # [robot_state, action] padded to width C (extra cols multiply zero weight rows)
    sa = jnp.concatenate([robot_state, action], axis=-1)
    sa = jnp.pad(sa, ((0, 0), (0, C - sa.shape[-1])))

    # pad batch to a multiple of the tile
    B_pad = ((B + tile_b - 1) // tile_b) * tile_b
    if B_pad != B:
        cols = jnp.pad(cols, ((0, 0), (0, B_pad - B), (0, 0)))
        sa = jnp.pad(sa, ((0, B_pad - B), (0, 0)))
    cols = cols.astype(jnp.bfloat16)
    sa = sa.astype(jnp.bfloat16)

    kernel = make_critic_kernel(S1=S1, ow1=ow1, oh2=oh2, ow2=ow2, C=C, tile_b=tile_b)

    q = pl.pallas_call(
        kernel,
        grid=(B_pad // tile_b,),
        in_specs=[
            pl.BlockSpec((S1, tile_b, C), lambda i: (0, i, 0)),   # conv1 windows
            pl.BlockSpec((tile_b, C), lambda i: (i, 0)),          # [state, action]
            pl.BlockSpec((nW, C, C), lambda i: (0, 0, 0)),        # packed weights
            pl.BlockSpec((8, C), lambda i: (0, 0)),               # packed biases / LN
            pl.BlockSpec((2, C, head2), lambda i: (0, 0, 0)),     # merged head W1
            pl.BlockSpec((1, head2), lambda i: (0, 0)),           # merged head b1
            pl.BlockSpec((head2, 2), lambda i: (0, 0)),           # block-diag head W2
            pl.BlockSpec((1, 2), lambda i: (0, 0)),               # head b2
        ],
        out_specs=pl.BlockSpec((tile_b, 2), lambda i: (i, 0)),
        out_shape=jax.ShapeDtypeStruct((B_pad, 2), jnp.float32),
        scratch_shapes=[pltpu.VMEM((S1 * tile_b, C), jnp.float32)],  # conv1 output
        compiler_params=pltpu.CompilerParams(dimension_semantics=("parallel",)),
    )(cols, sa, packed["wstack"], packed["bstack"], packed["whead"],
      packed["bhead"], packed["w2head"], packed["b2head"])

    q = q[:B]
    return q[:, 0:1], q[:, 1:2]


# ---------------------------------------------------------------------------
# Deterministic synthetic parameters (logical) + packing for the fused kernel
# ---------------------------------------------------------------------------

def init_params(key, *, H, W, state_dim, act_dim, hidden_dim, cat_fc_size,
                feature_dim, num_filters=32):
    oh1, ow1 = (H - 3) // 2 + 1, (W - 3) // 2 + 1
    oh2, ow2 = oh1 - 2, ow1 - 2
    S2 = oh2 * ow2
    keys = iter(jax.random.split(key, 24))

    def w(shape, scale=0.1):
        return (scale * jax.random.normal(next(keys), shape)).astype(jnp.float32)

    sa_dim = state_dim + act_dim
    return dict(
        conv1_w=w((27, num_filters)), conv1_b=w((num_filters,)),            # 3*3*3 -> F
        conv2_w=w((9, num_filters, num_filters)), conv2_b=w((num_filters,)),
        fc_w=w((S2, num_filters, feature_dim)), fc_b=w((feature_dim,)),     # flatten->feat
        ln_g=jnp.ones((feature_dim,), jnp.float32),
        ln_b=jnp.zeros((feature_dim,), jnp.float32),
        q1s_w1=w((sa_dim, hidden_dim)), q1s_b1=w((hidden_dim,)),
        q1s_w2=w((hidden_dim, hidden_dim)), q1s_b2=w((hidden_dim,)),
        q1_w1=w((feature_dim + hidden_dim, cat_fc_size)), q1_b1=w((cat_fc_size,)),
        q1_w2=w((cat_fc_size, 1)), q1_b2=w((1,)),
        q2_w1=w((feature_dim + hidden_dim, cat_fc_size)), q2_b1=w((cat_fc_size,)),
        q2_w2=w((cat_fc_size, 1)), q2_b2=w((1,)),
    )


def pack_params(p, *, state_dim, act_dim, hidden_dim, cat_fc_size,
                feature_dim, num_filters=32):
    C = num_filters
    # TODO(synk): the packed kernel assumes one common width for filters/feature/hidden/cat_fc.
    assert feature_dim == C and hidden_dim == C and cat_fc_size == C and C >= 27
    sa_dim = state_dim + act_dim
    assert sa_dim <= C
    bf16 = jnp.bfloat16

    w1 = jnp.zeros((C, C), jnp.float32).at[:27, :].set(p['conv1_w'])          # K 27->C
    q1s_w1 = jnp.zeros((C, C), jnp.float32).at[:sa_dim, :].set(p['q1s_w1'])   # rows padded
    wstack = jnp.concatenate(
        [w1[None], p['conv2_w'], p['fc_w'], q1s_w1[None], p['q1s_w2'][None]],
        axis=0).astype(bf16)                                                  # [10+S2+2, C, C]
    bstack = jnp.stack(
        [p['conv1_b'], p['conv2_b'], p['fc_b'], p['ln_g'], p['ln_b'],
         p['q1s_b1'], p['q1s_b2'], jnp.zeros((C,), jnp.float32)], axis=0)     # [8, C] f32

    # Merged Q1/Q2 first layers: [feat|hidden, cat_fc] x2 -> [2, C, 2*cat_fc]
    whead = jnp.stack([
        jnp.concatenate([p['q1_w1'][:feature_dim], p['q2_w1'][:feature_dim]], axis=1),
        jnp.concatenate([p['q1_w1'][feature_dim:], p['q2_w1'][feature_dim:]], axis=1)],
        axis=0).astype(bf16)
    bhead = jnp.concatenate([p['q1_b1'], p['q2_b1']])[None, :]                # [1, 2*cat_fc]
    # Block-diagonal final weight -> single [B, 2] output dot (q1 in col 0, q2 in col 1)
    w2head = jnp.zeros((2 * cat_fc_size, 2), jnp.float32)
    w2head = w2head.at[:cat_fc_size, 0].set(p['q1_w2'][:, 0])
    w2head = w2head.at[cat_fc_size:, 1].set(p['q2_w2'][:, 0])
    b2head = jnp.concatenate([p['q1_b2'], p['q2_b2']])[None, :]               # [1, 2]

    return dict(wstack=wstack, bstack=bstack, whead=whead, bhead=bhead,
                w2head=w2head.astype(bf16), b2head=b2head)


# ---------------------------------------------------------------------------

if __name__ == "__main__":
    B, H, W = 2, 16, 16
    STATE_DIM, ACT_DIM = 8, 4
    HIDDEN = CAT_FC = FEAT = NF = 32

    key = jax.random.PRNGKey(0)
    k_img, k_state, k_act, k_params = jax.random.split(key, 4)

    # obs [B, 4, H, W]: 3 image channels + 1 channel carrying the robot state.
    img = jax.random.uniform(k_img, (B, 3, H, W), dtype=jnp.float32)
    robot_state = jax.random.normal(k_state, (B, STATE_DIM), dtype=jnp.float32)
    ch3 = jnp.zeros((B, 1, H, W), jnp.float32)
    ch3 = ch3.at[:, 0, 0, 0].set(float(STATE_DIM))
    ch3 = ch3.at[:, 0, 0, 1:STATE_DIM + 1].set(robot_state)
    obs = jnp.concatenate([img, ch3], axis=1)
    action = jax.random.normal(k_act, (B, ACT_DIM), dtype=jnp.float32)

    logical = init_params(k_params, H=H, W=W, state_dim=STATE_DIM, act_dim=ACT_DIM,
                          hidden_dim=HIDDEN, cat_fc_size=CAT_FC, feature_dim=FEAT,
                          num_filters=NF)
    packed = pack_params(logical, state_dim=STATE_DIM, act_dim=ACT_DIM,
                         hidden_dim=HIDDEN, cat_fc_size=CAT_FC, feature_dim=FEAT,
                         num_filters=NF)

    # One-time host read of the state length (mirrors split_obs); kept OUT of the
    # jitted per-step forward, which takes state_dim as a static argument.
    state_dim = int(obs[0, 3, 0, 0])

    q1, q2 = critic_dict_obs_forward(obs, action, packed, state_dim=state_dim, tile_b=8)
    jax.block_until_ready((q1, q2))
    assert q1.shape == (B, 1) and q2.shape == (B, 1)
    assert bool(jnp.all(jnp.isfinite(q1))) and bool(jnp.all(jnp.isfinite(q2)))
    print("KERNEL_OK")
</pallas_src>

<mosaic_0001>
module attributes {stable_mosaic.version = 11 : i64} {
  func.func @kernel(%arg0: i32, %arg1: memref<49x8x32xbf16, #tpu.memory_space<vmem>>, %arg2: memref<8x32xbf16, #tpu.memory_space<vmem>>, %arg3: memref<37x32x32xbf16, #tpu.memory_space<vmem>>, %arg4: memref<8x32xf32, #tpu.memory_space<vmem>>, %arg5: memref<2x32x64xbf16, #tpu.memory_space<vmem>>, %arg6: memref<1x64xf32, #tpu.memory_space<vmem>>, %arg7: memref<64x2xbf16, #tpu.memory_space<vmem>>, %arg8: memref<1x2xf32, #tpu.memory_space<vmem>>, %arg9: memref<8x2xf32, #tpu.memory_space<vmem>>, %arg10: memref<392x32xf32, #tpu.memory_space<vmem>>) attributes {dimension_semantics = [#tpu.dimension_semantics<parallel>], iteration_bounds = array<i64: 1>, scalar_prefetch = 0 : i64, scratch_operands = 1 : i64, tpu.core_type = #tpu.core_type<tc>, window_params = [{transform_indices = @transform_0, window_bounds = array<i64: 49, 8, 32>}, {transform_indices = @transform_1, window_bounds = array<i64: 8, 32>}, {pipeline_mode = #tpu.pipeline_mode<synchronous>, transform_indices = @transform_2, window_bounds = array<i64: 37, 32, 32>}, {pipeline_mode = #tpu.pipeline_mode<synchronous>, transform_indices = @transform_3, window_bounds = array<i64: 8, 32>}, {pipeline_mode = #tpu.pipeline_mode<synchronous>, transform_indices = @transform_4, window_bounds = array<i64: 2, 32, 64>}, {pipeline_mode = #tpu.pipeline_mode<synchronous>, transform_indices = @transform_5, window_bounds = array<i64: 1, 64>}, {pipeline_mode = #tpu.pipeline_mode<synchronous>, transform_indices = @transform_6, window_bounds = array<i64: 64, 2>}, {pipeline_mode = #tpu.pipeline_mode<synchronous>, transform_indices = @transform_7, window_bounds = array<i64: 1, 2>}, {transform_indices = @transform_8, window_bounds = array<i64: 8, 2>}]} {
    %c0 = arith.constant 0 : index
    %c0_0 = arith.constant 0 : index
    %c0_1 = arith.constant 0 : index
    %0 = vector.load %arg3[%c0, %c0_0, %c0_1] : memref<37x32x32xbf16, #tpu.memory_space<vmem>>, vector<1x32x32xbf16>
    %1 = vector.shape_cast %0 : vector<1x32x32xbf16> to vector<32x32xbf16>
    %c1 = arith.constant 1 : index
    %c0_2 = arith.constant 0 : index
    %c0_3 = arith.constant 0 : index
    %2 = vector.load %arg3[%c1, %c0_2, %c0_3] : memref<37x32x32xbf16, #tpu.memory_space<vmem>>, vector<1x32x32xbf16>
    %3 = vector.shape_cast %2 : vector<1x32x32xbf16> to vector<32x32xbf16>
    %c2 = arith.constant 2 : index
    %c0_4 = arith.constant 0 : index
    %c0_5 = arith.constant 0 : index
    %4 = vector.load %arg3[%c2, %c0_4, %c0_5] : memref<37x32x32xbf16, #tpu.memory_space<vmem>>, vector<1x32x32xbf16>
    %5 = vector.shape_cast %4 : vector<1x32x32xbf16> to vector<32x32xbf16>
    %c3 = arith.constant 3 : index
    %c0_6 = arith.constant 0 : index
    %c0_7 = arith.constant 0 : index
    %6 = vector.load %arg3[%c3, %c0_6, %c0_7] : memref<37x32x32xbf16, #tpu.memory_space<vmem>>, vector<1x32x32xbf16>
    %7 = vector.shape_cast %6 : vector<1x32x32xbf16> to vector<32x32xbf16>
    %c4 = arith.constant 4 : index
    %c0_8 = arith.constant 0 : index
    %c0_9 = arith.constant 0 : index
    %8 = vector.load %arg3[%c4, %c0_8, %c0_9] : memref<37x32x32xbf16, #tpu.memory_space<vmem>>, vector<1x32x32xbf16>
    %9 = vector.shape_cast %8 : vector<1x32x32xbf16> to vector<32x32xbf16>
    %c5 = arith.constant 5 : index
    %c0_10 = arith.constant 0 : index
    %c0_11 = arith.constant 0 : index
    %10 = vector.load %arg3[%c5, %c0_10, %c0_11] : memref<37x32x32xbf16, #tpu.memory_space<vmem>>, vector<1x32x32xbf16>
    %11 = vector.shape_cast %10 : vector<1x32x32xbf16> to vector<32x32xbf16>
    %c6 = arith.constant 6 : index
    %c0_12 = arith.constant 0 : index
    %c0_13 = arith.constant 0 : index
    %12 = vector.load %arg3[%c6, %c0_12, %c0_13] : memref<37x32x32xbf16, #tpu.memory_space<vmem>>, vector<1x32x32xbf16>
    %13 = vector.shape_cast %12 : vector<1x32x32xbf16> to vector<32x32xbf16>
    %c7 = arith.constant 7 : index
    %c0_14 = arith.constant 0 : index
    %c0_15 = arith.constant 0 : index
    %14 = vector.load %arg3[%c7, %c0_14, %c0_15] : memref<37x32x32xbf16, #tpu.memory_space<vmem>>, vector<1x32x32xbf16>
    %15 = vector.shape_cast %14 : vector<1x32x32xbf16> to vector<32x32xbf16>
    %c8 = arith.constant 8 : index
    %c0_16 = arith.constant 0 : index
    %c0_17 = arith.constant 0 : index
    %16 = vector.load %arg3[%c8, %c0_16, %c0_17] : memref<37x32x32xbf16, #tpu.memory_space<vmem>>, vector<1x32x32xbf16>
    %17 = vector.shape_cast %16 : vector<1x32x32xbf16> to vector<32x32xbf16>
    %c9 = arith.constant 9 : index
    %c0_18 = arith.constant 0 : index
    %c0_19 = arith.constant 0 : index
    %18 = vector.load %arg3[%c9, %c0_18, %c0_19] : memref<37x32x32xbf16, #tpu.memory_space<vmem>>, vector<1x32x32xbf16>
    %19 = vector.shape_cast %18 : vector<1x32x32xbf16> to vector<32x32xbf16>
    %c0_20 = arith.constant 0 : index
    %c0_21 = arith.constant 0 : index
    %20 = vector.load %arg4[%c0_20, %c0_21] : memref<8x32xf32, #tpu.memory_space<vmem>>, vector<1x32xf32>
    %c1_22 = arith.constant 1 : index
    %c0_23 = arith.constant 0 : index
    %21 = vector.load %arg4[%c1_22, %c0_23] : memref<8x32xf32, #tpu.memory_space<vmem>>, vector<1x32xf32>
    %c2_24 = arith.constant 2 : index
    %c0_25 = arith.constant 0 : index
    %22 = vector.load %arg4[%c2_24, %c0_25] : memref<8x32xf32, #tpu.memory_space<vmem>>, vector<1x32xf32>
    %c3_26 = arith.constant 3 : index
    %c0_27 = arith.constant 0 : index
    %23 = vector.load %arg4[%c3_26, %c0_27] : memref<8x32xf32, #tpu.memory_space<vmem>>, vector<1x32xf32>
    %c4_28 = arith.constant 4 : index
    %c0_29 = arith.constant 0 : index
    %24 = vector.load %arg4[%c4_28, %c0_29] : memref<8x32xf32, #tpu.memory_space<vmem>>, vector<1x32xf32>
    %c5_30 = arith.constant 5 : index
    %c0_31 = arith.constant 0 : index
    %25 = vector.load %arg4[%c5_30, %c0_31] : memref<8x32xf32, #tpu.memory_space<vmem>>, vector<1x32xf32>
    %c6_32 = arith.constant 6 : index
    %c0_33 = arith.constant 0 : index
    %26 = vector.load %arg4[%c6_32, %c0_33] : memref<8x32xf32, #tpu.memory_space<vmem>>, vector<1x32xf32>
    %c0_34 = arith.constant 0 : index
    %c0_35 = arith.constant 0 : index
    %c0_36 = arith.constant 0 : index
    %27 = vector.load %arg1[%c0_34, %c0_35, %c0_36] : memref<49x8x32xbf16, #tpu.memory_space<vmem>>, vector<1x8x32xbf16>
    %28 = vector.shape_cast %27 : vector<1x8x32xbf16> to vector<8x32xbf16>
    %cst = arith.constant dense<0.000000e+00> : vector<8x32xf32>
    %29 = tpu.matmul %28, %1, %cst {dimension_numbers = #tpu.dot_dimension_numbers<[1], [0], [0], [1], [0, 0, 1, 1], [], []>} : vector<8x32xbf16>, vector<32x32xbf16>, vector<8x32xf32> -> vector<8x32xf32>
    %30 = vector.broadcast %20 : vector<1x32xf32> to vector<8x32xf32>
    %31 = arith.addf %29, %30 : vector<8x32xf32>
    %cst_37 = arith.constant 0.000000e+00 : f32
    %32 = vector.broadcast %cst_37 : f32 to vector<8x32xf32>
    %33 = arith.maximumf %31, %32 : vector<8x32xf32>
    %c0_38 = arith.constant 0 : index
    %c0_39 = arith.constant 0 : index
    %34 = vector.load %arg10[%c0_38, %c0_39] : memref<392x32xf32, #tpu.memory_space<vmem>>, vector<8x32xf32>
    tpu.vector_store %arg10[%c0_38, %c0_39], %33 {strides = array<i32>} : memref<392x32xf32, #tpu.memory_space<vmem>>, vector<8x32xf32>,
    %c1_40 = arith.constant 1 : index
    %c0_41 = arith.constant 0 : index
    %c0_42 = arith.constant 0 : index
    %35 = vector.load %arg1[%c1_40, %c0_41, %c0_42] : memref<49x8x32xbf16, #tpu.memory_space<vmem>>, vector<1x8x32xbf16>
    %36 = vector.shape_cast %35 : vector<1x8x32xbf16> to vector<8x32xbf16>
    %cst_43 = arith.constant dense<0.000000e+00> : vector<8x32xf32>
    %37 = tpu.matmul %36, %1, %cst_43 {dimension_numbers = #tpu.dot_dimension_numbers<[1], [0], [0], [1], [0, 0, 1, 1], [], []>} : vector<8x32xbf16>, vector<32x32xbf16>, vector<8x32xf32> -> vector<8x32xf32>
    %38 = vector.broadcast %20 : vector<1x32xf32> to vector<8x32xf32>
    %39 = arith.addf %37, %38 : vector<8x32xf32>
    %cst_44 = arith.constant 0.000000e+00 : f32
    %40 = vector.broadcast %cst_44 : f32 to vector<8x32xf32>
    %41 = arith.maximumf %39, %40 : vector<8x32xf32>
    %c8_45 = arith.constant 8 : index
    %c0_46 = arith.constant 0 : index
    %42 = vector.load %arg10[%c8_45, %c0_46] : memref<392x32xf32, #tpu.memory_space<vmem>>, vector<8x32xf32>
    tpu.vector_store %arg10[%c8_45, %c0_46], %41 {strides = array<i32>} : memref<392x32xf32, #tpu.memory_space<vmem>>, vector<8x32xf32>,
    %c2_47 = arith.constant 2 : index
    %c0_48 = arith.constant 0 : index
    %c0_49 = arith.constant 0 : index
    %43 = vector.load %arg1[%c2_47, %c0_48, %c0_49] : memref<49x8x32xbf16, #tpu.memory_space<vmem>>, vector<1x8x32xbf16>
    %44 = vector.shape_cast %43 : vector<1x8x32xbf16> to vector<8x32xbf16>
    %cst_50 = arith.constant dense<0.000000e+00> : vector<8x32xf32>
    %45 = tpu.matmul %44, %1, %cst_50 {dimension_numbers = #tpu.dot_dimension_numbers<[1], [0], [0], [1], [0, 0, 1, 1], [], []>} : vector<8x32xbf16>, vector<32x32xbf16>, vector<8x32xf32> -> vector<8x32xf32>
    %46 = vector.broadcast %20 : vector<1x32xf32> to vector<8x32xf32>
    %47 = arith.addf %45, %46 : vector<8x32xf32>
    %cst_51 = arith.constant 0.000000e+00 : f32
    %48 = vector.broadcast %cst_51 : f32 to vector<8x32xf32>
    %49 = arith.maximumf %47, %48 : vector<8x32xf32>
    %c16 = arith.constant 16 : index
    %c0_52 = arith.constant 0 : index
    %50 = vector.load %arg10[%c16, %c0_52] : memref<392x32xf32, #tpu.memory_space<vmem>>, vector<8x32xf32>
    tpu.vector_store %arg10[%c16, %c0_52], %49 {strides = array<i32>} : memref<392x32xf32, #tpu.memory_space<vmem>>, vector<8x32xf32>,
    %c3_53 = arith.constant 3 : index
    %c0_54 = arith.constant 0 : index
    %c0_55 = arith.constant 0 : index
    %51 = vector.load %arg1[%c3_53, %c0_54, %c0_55] : memref<49x8x32xbf16, #tpu.memory_space<vmem>>, vector<1x8x32xbf16>
    %52 = vector.shape_cast %51 : vector<1x8x32xbf16> to vector<8x32xbf16>
    %cst_56 = arith.constant dense<0.000000e+00> : vector<8x32xf32>
    %53 = tpu.matmul %52, %1, %cst_56 {dimension_numbers = #tpu.dot_dimension_numbers<[1], [0], [0], [1], [0, 0, 1, 1], [], []>} : vector<8x32xbf16>, vector<32x32xbf16>, vector<8x32xf32> -> vector<8x32xf32>
    %54 = vector.broadcast %20 : vector<1x32xf32> to vector<8x32xf32>
    %55 = arith.addf %53, %54 : vector<8x32xf32>
    %cst_57 = arith.constant 0.000000e+00 : f32
    %56 = vector.broadcast %cst_57 : f32 to vector<8x32xf32>
    %57 = arith.maximumf %55, %56 : vector<8x32xf32>
    %c24 = arith.constant 24 : index
    %c0_58 = arith.constant 0 : index
    %58 = vector.load %arg10[%c24, %c0_58] : memref<392x32xf32, #tpu.memory_space<vmem>>, vector<8x32xf32>
    tpu.vector_store %arg10[%c24, %c0_58], %57 {strides = array<i32>} : memref<392x32xf32, #tpu.memory_space<vmem>>, vector<8x32xf32>,
    %c4_59 = arith.constant 4 : index
    %c0_60 = arith.constant 0 : index
    %c0_61 = arith.constant 0 : index
    %59 = vector.load %arg1[%c4_59, %c0_60, %c0_61] : memref<49x8x32xbf16, #tpu.memory_space<vmem>>, vector<1x8x32xbf16>
    %60 = vector.shape_cast %59 : vector<1x8x32xbf16> to vector<8x32xbf16>
    %cst_62 = arith.constant dense<0.000000e+00> : vector<8x32xf32>
    %61 = tpu.matmul %60, %1, %cst_62 {dimension_numbers = #tpu.dot_dimension_numbers<[1], [0], [0], [1], [0, 0, 1, 1], [], []>} : vector<8x32xbf16>, vector<32x32xbf16>, vector<8x32xf32> -> vector<8x32xf32>
    %62 = vector.broadcast %20 : vector<1x32xf32> to vector<8x32xf32>
    %63 = arith.addf %61, %62 : vector<8x32xf32>
    %cst_63 = arith.constant 0.000000e+00 : f32
    %64 = vector.broadcast %cst_63 : f32 to vector<8x32xf32>
    %65 = arith.maximumf %63, %64 : vector<8x32xf32>
    %c32 = arith.constant 32 : index
    %c0_64 = arith.constant 0 : index
    %66 = vector.load %arg10[%c32, %c0_64] : memref<392x32xf32, #tpu.memory_space<vmem>>, vector<8x32xf32>
    tpu.vector_store %arg10[%c32, %c0_64], %65 {strides = array<i32>} : memref<392x32xf32, #tpu.memory_space<vmem>>, vector<8x32xf32>,
    %c5_65 = arith.constant 5 : index
    %c0_66 = arith.constant 0 : index
    %c0_67 = arith.constant 0 : index
    %67 = vector.load %arg1[%c5_65, %c0_66, %c0_67] : memref<49x8x32xbf16, #tpu.memory_space<vmem>>, vector<1x8x32xbf16>
    %68 = vector.shape_cast %67 : vector<1x8x32xbf16> to vector<8x32xbf16>
    %cst_68 = arith.constant dense<0.000000e+00> : vector<8x32xf32>
    %69 = tpu.matmul %68, %1, %cst_68 {dimension_numbers = #tpu.dot_dimension_numbers<[1], [0], [0], [1], [0, 0, 1, 1], [], []>} : vector<8x32xbf16>, vector<32x32xbf16>, vector<8x32xf32> -> vector<8x32xf32>
    %70 = vector.broadcast %20 : vector<1x32xf32> to vector<8x32xf32>
    %71 = arith.addf %69, %70 : vector<8x32xf32>
    %cst_69 = arith.constant 0.000000e+00 : f32
    %72 = vector.broadcast %cst_69 : f32 to vector<8x32xf32>
    %73 = arith.maximumf %71, %72 : vector<8x32xf32>
    %c40 = arith.constant 40 : index
    %c0_70 = arith.constant 0 : index
    %74 = vector.load %arg10[%c40, %c0_70] : memref<392x32xf32, #tpu.memory_space<vmem>>, vector<8x32xf32>
    tpu.vector_store %arg10[%c40, %c0_70], %73 {strides = array<i32>} : memref<392x32xf32, #tpu.memory_space<vmem>>, vector<8x32xf32>,
    %c6_71 = arith.constant 6 : index
    %c0_72 = arith.constant 0 : index
    %c0_73 = arith.constant 0 : index
    %75 = vector.load %arg1[%c6_71, %c0_72, %c0_73] : memref<49x8x32xbf16, #tpu.memory_space<vmem>>, vector<1x8x32xbf16>
    %76 = vector.shape_cast %75 : vector<1x8x32xbf16> to vector<8x32xbf16>
    %cst_74 = arith.constant dense<0.000000e+00> : vector<8x32xf32>
    %77 = tpu.matmul %76, %1, %cst_74 {dimension_numbers = #tpu.dot_dimension_numbers<[1], [0], [0], [1], [0, 0, 1, 1], [], []>} : vector<8x32xbf16>, vector<32x32xbf16>, vector<8x32xf32> -> vector<8x32xf32>
    %78 = vector.broadcast %20 : vector<1x32xf32> to vector<8x32xf32>
    %79 = arith.addf %77, %78 : vector<8x32xf32>
    %cst_75 = arith.constant 0.000000e+00 : f32
    %80 = vector.broadcast %cst_75 : f32 to vector<8x32xf32>
    %81 = arith.maximumf %79, %80 : vector<8x32xf32>
    %c48 = arith.constant 48 : index
    %c0_76 = arith.constant 0 : index
    %82 = vector.load %arg10[%c48, %c0_76] : memref<392x32xf32, #tpu.memory_space<vmem>>, vector<8x32xf32>
    tpu.vector_store %arg10[%c48, %c0_76], %81 {strides = array<i32>} : memref<392x32xf32, #tpu.memory_space<vmem>>, vector<8x32xf32>,
    %c7_77 = arith.constant 7 : index
    %c0_78 = arith.constant 0 : index
    %c0_79 = arith.constant 0 : index
    %83 = vector.load %arg1[%c7_77, %c0_78, %c0_79] : memref<49x8x32xbf16, #tpu.memory_space<vmem>>, vector<1x8x32xbf16>
    %84 = vector.shape_cast %83 : vector<1x8x32xbf16> to vector<8x32xbf16>
    %cst_80 = arith.constant dense<0.000000e+00> : vector<8x32xf32>
    %85 = tpu.matmul %84, %1, %cst_80 {dimension_numbers = #tpu.dot_dimension_numbers<[1], [0], [0], [1], [0, 0, 1, 1], [], []>} : vector<8x32xbf16>, vector<32x32xbf16>, vector<8x32xf32> -> vector<8x32xf32>
    %86 = vector.broadcast %20 : vector<1x32xf32> to vector<8x32xf32>
    %87 = arith.addf %85, %86 : vector<8x32xf32>
    %cst_81 = arith.constant 0.000000e+00 : f32
    %88 = vector.broadcast %cst_81 : f32 to vector<8x32xf32>
    %89 = arith.maximumf %87, %88 : vector<8x32xf32>
    %c56 = arith.constant 56 : index
    %c0_82 = arith.constant 0 : index
    %90 = vector.load %arg10[%c56, %c0_82] : memref<392x32xf32, #tpu.memory_space<vmem>>, vector<8x32xf32>
    tpu.vector_store %arg10[%c56, %c0_82], %89 {strides = array<i32>} : memref<392x32xf32, #tpu.memory_space<vmem>>, vector<8x32xf32>,
    %c8_83 = arith.constant 8 : index
    %c0_84 = arith.constant 0 : index
    %c0_85 = arith.constant 0 : index
    %91 = vector.load %arg1[%c8_83, %c0_84, %c0_85] : memref<49x8x32xbf16, #tpu.memory_space<vmem>>, vector<1x8x32xbf16>
    %92 = vector.shape_cast %91 : vector<1x8x32xbf16> to vector<8x32xbf16>
    %cst_86 = arith.constant dense<0.000000e+00> : vector<8x32xf32>
    %93 = tpu.matmul %92, %1, %cst_86 {dimension_numbers = #tpu.dot_dimension_numbers<[1], [0], [0], [1], [0, 0, 1, 1], [], []>} : vector<8x32xbf16>, vector<32x32xbf16>, vector<8x32xf32> -> vector<8x32xf32>
    %94 = vector.broadcast %20 : vector<1x32xf32> to vector<8x32xf32>
    %95 = arith.addf %93, %94 : vector<8x32xf32>
    %cst_87 = arith.constant 0.000000e+00 : f32
    %96 = vector.broadcast %cst_87 : f32 to vector<8x32xf32>
    %97 = arith.maximumf %95, %96 : vector<8x32xf32>
    %c64 = arith.constant 64 : index
    %c0_88 = arith.constant 0 : index
    %98 = vector.load %arg10[%c64, %c0_88] : memref<392x32xf32, #tpu.memory_space<vmem>>, vector<8x32xf32>
    tpu.vector_store %arg10[%c64, %c0_88], %97 {strides = array<i32>} : memref<392x32xf32, #tpu.memory_space<vmem>>, vector<8x32xf32>,
    %c9_89 = arith.constant 9 : index
    %c0_90 = arith.constant 0 : index
    %c0_91 = arith.constant 0 : index
    %99 = vector.load %arg1[%c9_89, %c0_90, %c0_91] : memref<49x8x32xbf16, #tpu.memory_space<vmem>>, vector<1x8x32xbf16>
    %100 = vector.shape_cast %99 : vector<1x8x32xbf16> to vector<8x32xbf16>
    %cst_92 = arith.constant dense<0.000000e+00> : vector<8x32xf32>
    %101 = tpu.matmul %100, %1, %cst_92 {dimension_numbers = #tpu.dot_dimension_numbers<[1], [0], [0], [1], [0, 0, 1, 1], [], []>} : vector<8x32xbf16>, vector<32x32xbf16>, vector<8x32xf32> -> vector<8x32xf32>
    %102 = vector.broadcast %20 : vector<1x32xf32> to vector<8x32xf32>
    %103 = arith.addf %101, %102 : vector<8x32xf32>
    %cst_93 = arith.constant 0.000000e+00 : f32
    %104 = vector.broadcast %cst_93 : f32 to vector<8x32xf32>
    %105 = arith.maximumf %103, %104 : vector<8x32xf32>
    %c72 = arith.constant 72 : index
    %c0_94 = arith.constant 0 : index
    %106 = vector.load %arg10[%c72, %c0_94] : memref<392x32xf32, #tpu.memory_space<vmem>>, vector<8x32xf32>
    tpu.vector_store %arg10[%c72, %c0_94], %105 {strides = array<i32>} : memref<392x32xf32, #tpu.memory_space<vmem>>, vector<8x32xf32>,
    %c10 = arith.constant 10 : index
    %c0_95 = arith.constant 0 : index
    %c0_96 = arith.constant 0 : index
    %107 = vector.load %arg1[%c10, %c0_95, %c0_96] : memref<49x8x32xbf16, #tpu.memory_space<vmem>>, vector<1x8x32xbf16>
    %108 = vector.shape_cast %107 : vector<1x8x32xbf16> to vector<8x32xbf16>
    %cst_97 = arith.constant dense<0.000000e+00> : vector<8x32xf32>
    %109 = tpu.matmul %108, %1, %cst_97 {dimension_numbers = #tpu.dot_dimension_numbers<[1], [0], [0], [1], [0, 0, 1, 1], [], []>} : vector<8x32xbf16>, vector<32x32xbf16>, vector<8x32xf32> -> vector<8x32xf32>
    %110 = vector.broadcast %20 : vector<1x32xf32> to vector<8x32xf32>
    %111 = arith.addf %109, %110 : vector<8x32xf32>
    %cst_98 = arith.constant 0.000000e+00 : f32
    %112 = vector.broadcast %cst_98 : f32 to vector<8x32xf32>
    %113 = arith.maximumf %111, %112 : vector<8x32xf32>
    %c80 = arith.constant 80 : index
    %c0_99 = arith.constant 0 : index
    %114 = vector.load %arg10[%c80, %c0_99] : memref<392x32xf32, #tpu.memory_space<vmem>>, vector<8x32xf32>
    tpu.vector_store %arg10[%c80, %c0_99], %113 {strides = array<i32>} : memref<392x32xf32, #tpu.memory_space<vmem>>, vector<8x32xf32>,
    %c11 = arith.constant 11 : index
    %c0_100 = arith.constant 0 : index
    %c0_101 = arith.constant 0 : index
    %115 = vector.load %arg1[%c11, %c0_100, %c0_101] : memref<49x8x32xbf16, #tpu.memory_space<vmem>>, vector<1x8x32xbf16>
    %116 = vector.shape_cast %115 : vector<1x8x32xbf16> to vector<8x32xbf16>
    %cst_102 = arith.constant dense<0.000000e+00> : vector<8x32xf32>
    %117 = tpu.matmul %116, %1, %cst_102 {dimension_numbers = #tpu.dot_dimension_numbers<[1], [0], [0], [1], [0, 0, 1, 1], [], []>} : vector<8x32xbf16>, vector<32x32xbf16>, vector<8x32xf32> -> vector<8x32xf32>
    %118 = vector.broadcast %20 : vector<1x32xf32> to vector<8x32xf32>
    %119 = arith.addf %117, %118 : vector<8x32xf32>
    %cst_103 = arith.constant 0.000000e+00 : f32
    %120 = vector.broadcast %cst_103 : f32 to vector<8x32xf32>
    %121 = arith.maximumf %119, %120 : vector<8x32xf32>
    %c88 = arith.constant 88 : index
    %c0_104 = arith.constant 0 : index
    %122 = vector.load %arg10[%c88, %c0_104] : memref<392x32xf32, #tpu.memory_space<vmem>>, vector<8x32xf32>
    tpu.vector_store %arg10[%c88, %c0_104], %121 {strides = array<i32>} : memref<392x32xf32, #tpu.memory_space<vmem>>, vector<8x32xf32>,
    %c12 = arith.constant 12 : index
    %c0_105 = arith.constant 0 : index
    %c0_106 = arith.constant 0 : index
    %123 = vector.load %arg1[%c12, %c0_105, %c0_106] : memref<49x8x32xbf16, #tpu.memory_space<vmem>>, vector<1x8x32xbf16>
    %124 = vector.shape_cast %123 : vector<1x8x32xbf16> to vector<8x32xbf16>
    %cst_107 = arith.constant dense<0.000000e+00> : vector<8x32xf32>
    %125 = tpu.matmul %124, %1, %cst_107 {dimension_numbers = #tpu.dot_dimension_numbers<[1], [0], [0], [1], [0, 0, 1, 1], [], []>} : vector<8x32xbf16>, vector<32x32xbf16>, vector<8x32xf32> -> vector<8x32xf32>
    %126 = vector.broadcast %20 : vector<1x32xf32> to vector<8x32xf32>
    %127 = arith.addf %125, %126 : vector<8x32xf32>
    %cst_108 = arith.constant 0.000000e+00 : f32
    %128 = vector.broadcast %cst_108 : f32 to vector<8x32xf32>
    %129 = arith.maximumf %127, %128 : vector<8x32xf32>
    %c96 = arith.constant 96 : index
    %c0_109 = arith.constant 0 : index
    %130 = vector.load %arg10[%c96, %c0_109] : memref<392x32xf32, #tpu.memory_space<vmem>>, vector<8x32xf32>
    tpu.vector_store %arg10[%c96, %c0_109], %129 {strides = array<i32>} : memref<392x32xf32, #tpu.memory_space<vmem>>, vector<8x32xf32>,
    %c13 = arith.constant 13 : index
    %c0_110 = arith.constant 0 : index
    %c0_111 = arith.constant 0 : index
    %131 = vector.load %arg1[%c13, %c0_110, %c0_111] : memref<49x8x32xbf16, #tpu.memory_space<vmem>>, vector<1x8x32xbf16>
    %132 = vector.shape_cast %131 : vector<1x8x32xbf16> to vector<8x32xbf16>
    %cst_112 = arith.constant dense<0.000000e+00> : vector<8x32xf32>
    %133 = tpu.matmul %132, %1, %cst_112 {dimension_numbers = #tpu.dot_dimension_numbers<[1], [0], [0], [1], [0, 0, 1, 1], [], []>} : vector<8x32xbf16>, vector<32x32xbf16>, vector<8x32xf32> -> vector<8x32xf32>
    %134 = vector.broadcast %20 : vector<1x32xf32> to vector<8x32xf32>
    %135 = arith.addf %133, %134 : vector<8x32xf32>
    %cst_113 = arith.constant 0.000000e+00 : f32
    %136 = vector.broadcast %cst_113 : f32 to vector<8x32xf32>
    %137 = arith.maximumf %135, %136 : vector<8x32xf32>
    %c104 = arith.constant 104 : index
    %c0_114 = arith.constant 0 : index
    %138 = vector.load %arg10[%c104, %c0_114] : memref<392x32xf32, #tpu.memory_space<vmem>>, vector<8x32xf32>
    tpu.vector_store %arg10[%c104, %c0_114], %137 {strides = array<i32>} : memref<392x32xf32, #tpu.memory_space<vmem>>, vector<8x32xf32>,
    %c14 = arith.constant 14 : index
    %c0_115 = arith.constant 0 : index
    %c0_116 = arith.constant 0 : index
    %139 = vector.load %arg1[%c14, %c0_115, %c0_116] : memref<49x8x32xbf16, #tpu.memory_space<vmem>>, vector<1x8x32xbf16>
    %140 = vector.shape_cast %139 : vector<1x8x32xbf16> to vector<8x32xbf16>
    %cst_117 = arith.constant dense<0.000000e+00> : vector<8x32xf32>
    %141 = tpu.matmul %140, %1, %cst_117 {dimension_numbers = #tpu.dot_dimension_numbers<[1], [0], [0], [1], [0, 0, 1, 1], [], []>} : vector<8x32xbf16>, vector<32x32xbf16>, vector<8x32xf32> -> vector<8x32xf32>
    %142 = vector.broadcast %20 : vector<1x32xf32> to vector<8x32xf32>
    %143 = arith.addf %141, %142 : vector<8x32xf32>
    %cst_118 = arith.constant 0.000000e+00 : f32
    %144 = vector.broadcast %cst_118 : f32 to vector<8x32xf32>
    %145 = arith.maximumf %143, %144 : vector<8x32xf32>
    %c112 = arith.constant 112 : index
    %c0_119 = arith.constant 0 : index
    %146 = vector.load %arg10[%c112, %c0_119] : memref<392x32xf32, #tpu.memory_space<vmem>>, vector<8x32xf32>
    tpu.vector_store %arg10[%c112, %c0_119], %145 {strides = array<i32>} : memref<392x32xf32, #tpu.memory_space<vmem>>, vector<8x32xf32>,
    %c15 = arith.constant 15 : index
    %c0_120 = arith.constant 0 : index
    %c0_121 = arith.constant 0 : index
    %147 = vector.load %arg1[%c15, %c0_120, %c0_121] : memref<49x8x32xbf16, #tpu.memory_space<vmem>>, vector<1x8x32xbf16>
    %148 = vector.shape_cast %147 : vector<1x8x32xbf16> to vector<8x32xbf16>
    %cst_122 = arith.constant dense<0.000000e+00> : vector<8x32xf32>
    %149 = tpu.matmul %148, %1, %cst_122 {dimension_numbers = #tpu.dot_dimension_numbers<[1], [0], [0], [1], [0, 0, 1, 1], [], []>} : vector<8x32xbf16>, vector<32x32xbf16>, vector<8x32xf32> -> vector<8x32xf32>
    %150 = vector.broadcast %20 : vector<1x32xf32> to vector<8x32xf32>
    %151 = arith.addf %149, %150 : vector<8x32xf32>
    %cst_123 = arith.constant 0.000000e+00 : f32
    %152 = vector.broadcast %cst_123 : f32 to vector<8x32xf32>
    %153 = arith.maximumf %151, %152 : vector<8x32xf32>
    %c120 = arith.constant 120 : index
    %c0_124 = arith.constant 0 : index
    %154 = vector.load %arg10[%c120, %c0_124] : memref<392x32xf32, #tpu.memory_space<vmem>>, vector<8x32xf32>
    tpu.vector_store %arg10[%c120, %c0_124], %153 {strides = array<i32>} : memref<392x32xf32, #tpu.memory_space<vmem>>, vector<8x32xf32>,
    %c16_125 = arith.constant 16 : index
    %c0_126 = arith.constant 0 : index
    %c0_127 = arith.constant 0 : index
    %155 = vector.load %arg1[%c16_125, %c0_126, %c0_127] : memref<49x8x32xbf16, #tpu.memory_space<vmem>>, vector<1x8x32xbf16>
    %156 = vector.shape_cast %155 : vector<1x8x32xbf16> to vector<8x32xbf16>
    %cst_128 = arith.constant dense<0.000000e+00> : vector<8x32xf32>
    %157 = tpu.matmul %156, %1, %cst_128 {dimension_numbers = #tpu.dot_dimension_numbers<[1], [0], [0], [1], [0, 0, 1, 1], [], []>} : vector<8x32xbf16>, vector<32x32xbf16>, vector<8x32xf32> -> vector<8x32xf32>
    %158 = vector.broadcast %20 : vector<1x32xf32> to vector<8x32xf32>
    %159 = arith.addf %157, %158 : vector<8x32xf32>
    %cst_129 = arith.constant 0.000000e+00 : f32
    %160 = vector.broadcast %cst_129 : f32 to vector<8x32xf32>
    %161 = arith.maximumf %159, %160 : vector<8x32xf32>
    %c128 = arith.constant 128 : index
    %c0_130 = arith.constant 0 : index
    %162 = vector.load %arg10[%c128, %c0_130] : memref<392x32xf32, #tpu.memory_space<vmem>>, vector<8x32xf32>
    tpu.vector_store %arg10[%c128, %c0_130], %161 {strides = array<i32>} : memref<392x32xf32, #tpu.memory_space<vmem>>, vector<8x32xf32>,
    %c17 = arith.constant 17 : index
    %c0_131 = arith.constant 0 : index
    %c0_132 = arith.constant 0 : index
    %163 = vector.load %arg1[%c17, %c0_131, %c0_132] : memref<49x8x32xbf16, #tpu.memory_space<vmem>>, vector<1x8x32xbf16>
    %164 = vector.shape_cast %163 : vector<1x8x32xbf16> to vector<8x32xbf16>
    %cst_133 = arith.constant dense<0.000000e+00> : vector<8x32xf32>
    %165 = tpu.matmul %164, %1, %cst_133 {dimension_numbers = #tpu.dot_dimension_numbers<[1], [0], [0], [1], [0, 0, 1, 1], [], []>} : vector<8x32xbf16>, vector<32x32xbf16>, vector<8x32xf32> -> vector<8x32xf32>
    %166 = vector.broadcast %20 : vector<1x32xf32> to vector<8x32xf32>
    %167 = arith.addf %165, %166 : vector<8x32xf32>
    %cst_134 = arith.constant 0.000000e+00 : f32
    %168 = vector.broadcast %cst_134 : f32 to vector<8x32xf32>
    %169 = arith.maximumf %167, %168 : vector<8x32xf32>
    %c136 = arith.constant 136 : index
    %c0_135 = arith.constant 0 : index
    %170 = vector.load %arg10[%c136, %c0_135] : memref<392x32xf32, #tpu.memory_space<vmem>>, vector<8x32xf32>
    tpu.vector_store %arg10[%c136, %c0_135], %169 {strides = array<i32>} : memref<392x32xf32, #tpu.memory_space<vmem>>, vector<8x32xf32>,
    %c18 = arith.constant 18 : index
    %c0_136 = arith.constant 0 : index
    %c0_137 = arith.constant 0 : index
    %171 = vector.load %arg1[%c18, %c0_136, %c0_137] : memref<49x8x32xbf16, #tpu.memory_space<vmem>>, vector<1x8x32xbf16>
    %172 = vector.shape_cast %171 : vector<1x8x32xbf16> to vector<8x32xbf16>
    %cst_138 = arith.constant dense<0.000000e+00> : vector<8x32xf32>
    %173 = tpu.matmul %172, %1, %cst_138 {dimension_numbers = #tpu.dot_dimension_numbers<[1], [0], [0], [1], [0, 0, 1, 1], [], []>} : vector<8x32xbf16>, vector<32x32xbf16>, vector<8x32xf32> -> vector<8x32xf32>
    %174 = vector.broadcast %20 : vector<1x32xf32> to vector<8x32xf32>
    %175 = arith.addf %173, %174 : vector<8x32xf32>
    %cst_139 = arith.constant 0.000000e+00 : f32
    %176 = vector.broadcast %cst_139 : f32 to vector<8x32xf32>
    %177 = arith.maximumf %175, %176 : vector<8x32xf32>
    %c144 = arith.constant 144 : index
    %c0_140 = arith.constant 0 : index
    %178 = vector.load %arg10[%c144, %c0_140] : memref<392x32xf32, #tpu.memory_space<vmem>>, vector<8x32xf32>
    tpu.vector_store %arg10[%c144, %c0_140], %177 {strides = array<i32>} : memref<392x32xf32, #tpu.memory_space<vmem>>, vector<8x32xf32>,
    %c19 = arith.constant 19 : index
    %c0_141 = arith.constant 0 : index
    %c0_142 = arith.constant 0 : index
    %179 = vector.load %arg1[%c19, %c0_141, %c0_142] : memref<49x8x32xbf16, #tpu.memory_space<vmem>>, vector<1x8x32xbf16>
    %180 = vector.shape_cast %179 : vector<1x8x32xbf16> to vector<8x32xbf16>
    %cst_143 = arith.constant dense<0.000000e+00> : vector<8x32xf32>
    %181 = tpu.matmul %180, %1, %cst_143 {dimension_numbers = #tpu.dot_dimension_numbers<[1], [0], [0], [1], [0, 0, 1, 1], [], []>} : vector<8x32xbf16>, vector<32x32xbf16>, vector<8x32xf32> -> vector<8x32xf32>
    %182 = vector.broadcast %20 : vector<1x32xf32> to vector<8x32xf32>
    %183 = arith.addf %181, %182 : vector<8x32xf32>
    %cst_144 = arith.constant 0.000000e+00 : f32
    %184 = vector.broadcast %cst_144 : f32 to vector<8x32xf32>
    %185 = arith.maximumf %183, %184 : vector<8x32xf32>
    %c152 = arith.constant 152 : index
    %c0_145 = arith.constant 0 : index
    %186 = vector.load %arg10[%c152, %c0_145] : memref<392x32xf32, #tpu.memory_space<vmem>>, vector<8x32xf32>
    tpu.vector_store %arg10[%c152, %c0_145], %185 {strides = array<i32>} : memref<392x32xf32, #tpu.memory_space<vmem>>, vector<8x32xf32>,
    %c20 = arith.constant 20 : index
    %c0_146 = arith.constant 0 : index
    %c0_147 = arith.constant 0 : index
    %187 = vector.load %arg1[%c20, %c0_146, %c0_147] : memref<49x8x32xbf16, #tpu.memory_space<vmem>>, vector<1x8x32xbf16>
    %188 = vector.shape_cast %187 : vector<1x8x32xbf16> to vector<8x32xbf16>
    %cst_148 = arith.constant dense<0.000000e+00> : vector<8x32xf32>
    %189 = tpu.matmul %188, %1, %cst_148 {dimension_numbers = #tpu.dot_dimension_numbers<[1], [0], [0], [1], [0, 0, 1, 1], [], []>} : vector<8x32xbf16>, vector<32x32xbf16>, vector<8x32xf32> -> vector<8x32xf32>
    %190 = vector.broadcast %20 : vector<1x32xf32> to vector<8x32xf32>
    %191 = arith.addf %189, %190 : vector<8x32xf32>
    %cst_149 = arith.constant 0.000000e+00 : f32
    %192 = vector.broadcast %cst_149 : f32 to vector<8x32xf32>
    %193 = arith.maximumf %191, %192 : vector<8x32xf32>
    %c160 = arith.constant 160 : index
    %c0_150 = arith.constant 0 : index
    %194 = vector.load %arg10[%c160, %c0_150] : memref<392x32xf32, #tpu.memory_space<vmem>>, vector<8x32xf32>
    tpu.vector_store %arg10[%c160, %c0_150], %193 {strides = array<i32>} : memref<392x32xf32, #tpu.memory_space<vmem>>, vector<8x32xf32>,
    %c21 = arith.constant 21 : index
    %c0_151 = arith.constant 0 : index
    %c0_152 = arith.constant 0 : index
    %195 = vector.load %arg1[%c21, %c0_151, %c0_152] : memref<49x8x32xbf16, #tpu.memory_space<vmem>>, vector<1x8x32xbf16>
    %196 = vector.shape_cast %195 : vector<1x8x32xbf16> to vector<8x32xbf16>
    %cst_153 = arith.constant dense<0.000000e+00> : vector<8x32xf32>
    %197 = tpu.matmul %196, %1, %cst_153 {dimension_numbers = #tpu.dot_dimension_numbers<[1], [0], [0], [1], [0, 0, 1, 1], [], []>} : vector<8x32xbf16>, vector<32x32xbf16>, vector<8x32xf32> -> vector<8x32xf32>
    %198 = vector.broadcast %20 : vector<1x32xf32> to vector<8x32xf32>
    %199 = arith.addf %197, %198 : vector<8x32xf32>
    %cst_154 = arith.constant 0.000000e+00 : f32
    %200 = vector.broadcast %cst_154 : f32 to vector<8x32xf32>
    %201 = arith.maximumf %199, %200 : vector<8x32xf32>
    %c168 = arith.constant 168 : index
    %c0_155 = arith.constant 0 : index
    %202 = vector.load %arg10[%c168, %c0_155] : memref<392x32xf32, #tpu.memory_space<vmem>>, vector<8x32xf32>
    tpu.vector_store %arg10[%c168, %c0_155], %201 {strides = array<i32>} : memref<392x32xf32, #tpu.memory_space<vmem>>, vector<8x32xf32>,
    %c22 = arith.constant 22 : index
    %c0_156 = arith.constant 0 : index
    %c0_157 = arith.constant 0 : index
    %203 = vector.load %arg1[%c22, %c0_156, %c0_157] : memref<49x8x32xbf16, #tpu.memory_space<vmem>>, vector<1x8x32xbf16>
    %204 = vector.shape_cast %203 : vector<1x8x32xbf16> to vector<8x32xbf16>
    %cst_158 = arith.constant dense<0.000000e+00> : vector<8x32xf32>
    %205 = tpu.matmul %204, %1, %cst_158 {dimension_numbers = #tpu.dot_dimension_numbers<[1], [0], [0], [1], [0, 0, 1, 1], [], []>} : vector<8x32xbf16>, vector<32x32xbf16>, vector<8x32xf32> -> vector<8x32xf32>
    %206 = vector.broadcast %20 : vector<1x32xf32> to vector<8x32xf32>
    %207 = arith.addf %205, %206 : vector<8x32xf32>
    %cst_159 = arith.constant 0.000000e+00 : f32
    %208 = vector.broadcast %cst_159 : f32 to vector<8x32xf32>
    %209 = arith.maximumf %207, %208 : vector<8x32xf32>
    %c176 = arith.constant 176 : index
    %c0_160 = arith.constant 0 : index
    %210 = vector.load %arg10[%c176, %c0_160] : memref<392x32xf32, #tpu.memory_space<vmem>>, vector<8x32xf32>
    tpu.vector_store %arg10[%c176, %c0_160], %209 {strides = array<i32>} : memref<392x32xf32, #tpu.memory_space<vmem>>, vector<8x32xf32>,
    %c23 = arith.constant 23 : index
    %c0_161 = arith.constant 0 : index
    %c0_162 = arith.constant 0 : index
    %211 = vector.load %arg1[%c23, %c0_161, %c0_162] : memref<49x8x32xbf16, #tpu.memory_space<vmem>>, vector<1x8x32xbf16>
    %212 = vector.shape_cast %211 : vector<1x8x32xbf16> to vector<8x32xbf16>
    %cst_163 = arith.constant dense<0.000000e+00> : vector<8x32xf32>
    %213 = tpu.matmul %212, %1, %cst_163 {dimension_numbers = #tpu.dot_dimension_numbers<[1], [0], [0], [1], [0, 0, 1, 1], [], []>} : vector<8x32xbf16>, vector<32x32xbf16>, vector<8x32xf32> -> vector<8x32xf32>
    %214 = vector.broadcast %20 : vector<1x32xf32> to vector<8x32xf32>
    %215 = arith.addf %213, %214 : vector<8x32xf32>
    %cst_164 = arith.constant 0.000000e+00 : f32
    %216 = vector.broadcast %cst_164 : f32 to vector<8x32xf32>
    %217 = arith.maximumf %215, %216 : vector<8x32xf32>
    %c184 = arith.constant 184 : index
    %c0_165 = arith.constant 0 : index
    %218 = vector.load %arg10[%c184, %c0_165] : memref<392x32xf32, #tpu.memory_space<vmem>>, vector<8x32xf32>
    tpu.vector_store %arg10[%c184, %c0_165], %217 {strides = array<i32>} : memref<392x32xf32, #tpu.memory_space<vmem>>, vector<8x32xf32>,
    %c24_166 = arith.constant 24 : index
    %c0_167 = arith.constant 0 : index
    %c0_168 = arith.constant 0 : index
    %219 = vector.load %arg1[%c24_166, %c0_167, %c0_168] : memref<49x8x32xbf16, #tpu.memory_space<vmem>>, vector<1x8x32xbf16>
    %220 = vector.shape_cast %219 : vector<1x8x32xbf16> to vector<8x32xbf16>
    %cst_169 = arith.constant dense<0.000000e+00> : vector<8x32xf32>
    %221 = tpu.matmul %220, %1, %cst_169 {dimension_numbers = #tpu.dot_dimension_numbers<[1], [0], [0], [1], [0, 0, 1, 1], [], []>} : vector<8x32xbf16>, vector<32x32xbf16>, vector<8x32xf32> -> vector<8x32xf32>
    %222 = vector.broadcast %20 : vector<1x32xf32> to vector<8x32xf32>
    %223 = arith.addf %221, %222 : vector<8x32xf32>
    %cst_170 = arith.constant 0.000000e+00 : f32
    %224 = vector.broadcast %cst_170 : f32 to vector<8x32xf32>
    %225 = arith.maximumf %223, %224 : vector<8x32xf32>
    %c192 = arith.constant 192 : index
    %c0_171 = arith.constant 0 : index
    %226 = vector.load %arg10[%c192, %c0_171] : memref<392x32xf32, #tpu.memory_space<vmem>>, vector<8x32xf32>
    tpu.vector_store %arg10[%c192, %c0_171], %225 {strides = array<i32>} : memref<392x32xf32, #tpu.memory_space<vmem>>, vector<8x32xf32>,
    %c25 = arith.constant 25 : index
    %c0_172 = arith.constant 0 : index
    %c0_173 = arith.constant 0 : index
    %227 = vector.load %arg1[%c25, %c0_172, %c0_173] : memref<49x8x32xbf16, #tpu.memory_space<vmem>>, vector<1x8x32xbf16>
    %228 = vector.shape_cast %227 : vector<1x8x32xbf16> to vector<8x32xbf16>
    %cst_174 = arith.constant dense<0.000000e+00> : vector<8x32xf32>
    %229 = tpu.matmul %228, %1, %cst_174 {dimension_numbers = #tpu.dot_dimension_numbers<[1], [0], [0], [1], [0, 0, 1, 1], [], []>} : vector<8x32xbf16>, vector<32x32xbf16>, vector<8x32xf32> -> vector<8x32xf32>
    %230 = vector.broadcast %20 : vector<1x32xf32> to vector<8x32xf32>
    %231 = arith.addf %229, %230 : vector<8x32xf32>
    %cst_175 = arith.constant 0.000000e+00 : f32
    %232 = vector.broadcast %cst_175 : f32 to vector<8x32xf32>
    %233 = arith.maximumf %231, %232 : vector<8x32xf32>
    %c200 = arith.constant 200 : index
    %c0_176 = arith.constant 0 : index
    %234 = vector.load %arg10[%c200, %c0_176] : memref<392x32xf32, #tpu.memory_space<vmem>>, vector<8x32xf32>
    tpu.vector_store %arg10[%c200, %c0_176], %233 {strides = array<i32>} : memref<392x32xf32, #tpu.memory_space<vmem>>, vector<8x32xf32>,
    %c26 = arith.constant 26 : index
    %c0_177 = arith.constant 0 : index
    %c0_178 = arith.constant 0 : index
    %235 = vector.load %arg1[%c26, %c0_177, %c0_178] : memref<49x8x32xbf16, #tpu.memory_space<vmem>>, vector<1x8x32xbf16>
    %236 = vector.shape_cast %235 : vector<1x8x32xbf16> to vector<8x32xbf16>
    %cst_179 = arith.constant dense<0.000000e+00> : vector<8x32xf32>
    %237 = tpu.matmul %236, %1, %cst_179 {dimension_numbers = #tpu.dot_dimension_numbers<[1], [0], [0], [1], [0, 0, 1, 1], [], []>} : vector<8x32xbf16>, vector<32x32xbf16>, vector<8x32xf32> -> vector<8x32xf32>
    %238 = vector.broadcast %20 : vector<1x32xf32> to vector<8x32xf32>
    %239 = arith.addf %237, %238 : vector<8x32xf32>
    %cst_180 = arith.constant 0.000000e+00 : f32
    %240 = vector.broadcast %cst_180 : f32 to vector<8x32xf32>
    %241 = arith.maximumf %239, %240 : vector<8x32xf32>
    %c208 = arith.constant 208 : index
    %c0_181 = arith.constant 0 : index
    %242 = vector.load %arg10[%c208, %c0_181] : memref<392x32xf32, #tpu.memory_space<vmem>>, vector<8x32xf32>
    tpu.vector_store %arg10[%c208, %c0_181], %241 {strides = array<i32>} : memref<392x32xf32, #tpu.memory_space<vmem>>, vector<8x32xf32>,
    %c27 = arith.constant 27 : index
    %c0_182 = arith.constant 0 : index
    %c0_183 = arith.constant 0 : index
    %243 = vector.load %arg1[%c27, %c0_182, %c0_183] : memref<49x8x32xbf16, #tpu.memory_space<vmem>>, vector<1x8x32xbf16>
    %244 = vector.shape_cast %243 : vector<1x8x32xbf16> to vector<8x32xbf16>
    %cst_184 = arith.constant dense<0.000000e+00> : vector<8x32xf32>
    %245 = tpu.matmul %244, %1, %cst_184 {dimension_numbers = #tpu.dot_dimension_numbers<[1], [0], [0], [1], [0, 0, 1, 1], [], []>} : vector<8x32xbf16>, vector<32x32xbf16>, vector<8x32xf32> -> vector<8x32xf32>
    %246 = vector.broadcast %20 : vector<1x32xf32> to vector<8x32xf32>
    %247 = arith.addf %245, %246 : vector<8x32xf32>
    %cst_185 = arith.constant 0.000000e+00 : f32
    %248 = vector.broadcast %cst_185 : f32 to vector<8x32xf32>
    %249 = arith.maximumf %247, %248 : vector<8x32xf32>
    %c216 = arith.constant 216 : index
    %c0_186 = arith.constant 0 : index
    %250 = vector.load %arg10[%c216, %c0_186] : memref<392x32xf32, #tpu.memory_space<vmem>>, vector<8x32xf32>
    tpu.vector_store %arg10[%c216, %c0_186], %249 {strides = array<i32>} : memref<392x32xf32, #tpu.memory_space<vmem>>, vector<8x32xf32>,
    %c28 = arith.constant 28 : index
    %c0_187 = arith.constant 0 : index
    %c0_188 = arith.constant 0 : index
    %251 = vector.load %arg1[%c28, %c0_187, %c0_188] : memref<49x8x32xbf16, #tpu.memory_space<vmem>>, vector<1x8x32xbf16>
    %252 = vector.shape_cast %251 : vector<1x8x32xbf16> to vector<8x32xbf16>
    %cst_189 = arith.constant dense<0.000000e+00> : vector<8x32xf32>
    %253 = tpu.matmul %252, %1, %cst_189 {dimension_numbers = #tpu.dot_dimension_numbers<[1], [0], [0], [1], [0, 0, 1, 1], [], []>} : vector<8x32xbf16>, vector<32x32xbf16>, vector<8x32xf32> -> vector<8x32xf32>
    %254 = vector.broadcast %20 : vector<1x32xf32> to vector<8x32xf32>
    %255 = arith.addf %253, %254 : vector<8x32xf32>
    %cst_190 = arith.constant 0.000000e+00 : f32
    %256 = vector.broadcast %cst_190 : f32 to vector<8x32xf32>
    %257 = arith.maximumf %255, %256 : vector<8x32xf32>
    %c224 = arith.constant 224 : index
    %c0_191 = arith.constant 0 : index
    %258 = vector.load %arg10[%c224, %c0_191] : memref<392x32xf32, #tpu.memory_space<vmem>>, vector<8x32xf32>
    tpu.vector_store %arg10[%c224, %c0_191], %257 {strides = array<i32>} : memref<392x32xf32, #tpu.memory_space<vmem>>, vector<8x32xf32>,
    %c29 = arith.constant 29 : index
    %c0_192 = arith.constant 0 : index
    %c0_193 = arith.constant 0 : index
    %259 = vector.load %arg1[%c29, %c0_192, %c0_193] : memref<49x8x32xbf16, #tpu.memory_space<vmem>>, vector<1x8x32xbf16>
    %260 = vector.shape_cast %259 : vector<1x8x32xbf16> to vector<8x32xbf16>
    %cst_194 = arith.constant dense<0.000000e+00> : vector<8x32xf32>
    %261 = tpu.matmul %260, %1, %cst_194 {dimension_numbers = #tpu.dot_dimension_numbers<[1], [0], [0], [1], [0, 0, 1, 1], [], []>} : vector<8x32xbf16>, vector<32x32xbf16>, vector<8x32xf32> -> vector<8x32xf32>
    %262 = vector.broadcast %20 : vector<1x32xf32> to vector<8x32xf32>
    %263 = arith.addf %261, %262 : vector<8x32xf32>
    %cst_195 = arith.constant 0.000000e+00 : f32
    %264 = vector.broadcast %cst_195 : f32 to vector<8x32xf32>
    %265 = arith.maximumf %263, %264 : vector<8x32xf32>
    %c232 = arith.constant 232 : index
    %c0_196 = arith.constant 0 : index
    %266 = vector.load %arg10[%c232, %c0_196] : memref<392x32xf32, #tpu.memory_space<vmem>>, vector<8x32xf32>
    tpu.vector_store %arg10[%c232, %c0_196], %265 {strides = array<i32>} : memref<392x32xf32, #tpu.memory_space<vmem>>, vector<8x32xf32>,
    %c30 = arith.constant 30 : index
    %c0_197 = arith.constant 0 : index
    %c0_198 = arith.constant 0 : index
    %267 = vector.load %arg1[%c30, %c0_197, %c0_198] : memref<49x8x32xbf16, #tpu.memory_space<vmem>>, vector<1x8x32xbf16>
    %268 = vector.shape_cast %267 : vector<1x8x32xbf16> to vector<8x32xbf16>
    %cst_199 = arith.constant dense<0.000000e+00> : vector<8x32xf32>
    %269 = tpu.matmul %268, %1, %cst_199 {dimension_numbers = #tpu.dot_dimension_numbers<[1], [0], [0], [1], [0, 0, 1, 1], [], []>} : vector<8x32xbf16>, vector<32x32xbf16>, vector<8x32xf32> -> vector<8x32xf32>
    %270 = vector.broadcast %20 : vector<1x32xf32> to vector<8x32xf32>
    %271 = arith.addf %269, %270 : vector<8x32xf32>
    %cst_200 = arith.constant 0.000000e+00 : f32
    %272 = vector.broadcast %cst_200 : f32 to vector<8x32xf32>
    %273 = arith.maximumf %271, %272 : vector<8x32xf32>
    %c240 = arith.constant 240 : index
    %c0_201 = arith.constant 0 : index
    %274 = vector.load %arg10[%c240, %c0_201] : memref<392x32xf32, #tpu.memory_space<vmem>>, vector<8x32xf32>
    tpu.vector_store %arg10[%c240, %c0_201], %273 {strides = array<i32>} : memref<392x32xf32, #tpu.memory_space<vmem>>, vector<8x32xf32>,
    %c31 = arith.constant 31 : index
    %c0_202 = arith.constant 0 : index
    %c0_203 = arith.constant 0 : index
    %275 = vector.load %arg1[%c31, %c0_202, %c0_203] : memref<49x8x32xbf16, #tpu.memory_space<vmem>>, vector<1x8x32xbf16>
    %276 = vector.shape_cast %275 : vector<1x8x32xbf16> to vector<8x32xbf16>
    %cst_204 = arith.constant dense<0.000000e+00> : vector<8x32xf32>
    %277 = tpu.matmul %276, %1, %cst_204 {dimension_numbers = #tpu.dot_dimension_numbers<[1], [0], [0], [1], [0, 0, 1, 1], [], []>} : vector<8x32xbf16>, vector<32x32xbf16>, vector<8x32xf32> -> vector<8x32xf32>
    %278 = vector.broadcast %20 : vector<1x32xf32> to vector<8x32xf32>
    %279 = arith.addf %277, %278 : vector<8x32xf32>
    %cst_205 = arith.constant 0.000000e+00 : f32
    %280 = vector.broadcast %cst_205 : f32 to vector<8x32xf32>
    %281 = arith.maximumf %279, %280 : vector<8x32xf32>
    %c248 = arith.constant 248 : index
    %c0_206 = arith.constant 0 : index
    %282 = vector.load %arg10[%c248, %c0_206] : memref<392x32xf32, #tpu.memory_space<vmem>>, vector<8x32xf32>
    tpu.vector_store %arg10[%c248, %c0_206], %281 {strides = array<i32>} : memref<392x32xf32, #tpu.memory_space<vmem>>, vector<8x32xf32>,
    %c32_207 = arith.constant 32 : index
    %c0_208 = arith.constant 0 : index
    %c0_209 = arith.constant 0 : index
    %283 = vector.load %arg1[%c32_207, %c0_208, %c0_209] : memref<49x8x32xbf16, #tpu.memory_space<vmem>>, vector<1x8x32xbf16>
    %284 = vector.shape_cast %283 : vector<1x8x32xbf16> to vector<8x32xbf16>
    %cst_210 = arith.constant dense<0.000000e+00> : vector<8x32xf32>
    %285 = tpu.matmul %284, %1, %cst_210 {dimension_numbers = #tpu.dot_dimension_numbers<[1], [0], [0], [1], [0, 0, 1, 1], [], []>} : vector<8x32xbf16>, vector<32x32xbf16>, vector<8x32xf32> -> vector<8x32xf32>
    %286 = vector.broadcast %20 : vector<1x32xf32> to vector<8x32xf32>
    %287 = arith.addf %285, %286 : vector<8x32xf32>
    %cst_211 = arith.constant 0.000000e+00 : f32
    %288 = vector.broadcast %cst_211 : f32 to vector<8x32xf32>
    %289 = arith.maximumf %287, %288 : vector<8x32xf32>
    %c256 = arith.constant 256 : index
    %c0_212 = arith.constant 0 : index
    %290 = vector.load %arg10[%c256, %c0_212] : memref<392x32xf32, #tpu.memory_space<vmem>>, vector<8x32xf32>
    tpu.vector_store %arg10[%c256, %c0_212], %289 {strides = array<i32>} : memref<392x32xf32, #tpu.memory_space<vmem>>, vector<8x32xf32>,
    %c33 = arith.constant 33 : index
    %c0_213 = arith.constant 0 : index
    %c0_214 = arith.constant 0 : index
    %291 = vector.load %arg1[%c33, %c0_213, %c0_214] : memref<49x8x32xbf16, #tpu.memory_space<vmem>>, vector<1x8x32xbf16>
    %292 = vector.shape_cast %291 : vector<1x8x32xbf16> to vector<8x32xbf16>
    %cst_215 = arith.constant dense<0.000000e+00> : vector<8x32xf32>
    %293 = tpu.matmul %292, %1, %cst_215 {dimension_numbers = #tpu.dot_dimension_numbers<[1], [0], [0], [1], [0, 0, 1, 1], [], []>} : vector<8x32xbf16>, vector<32x32xbf16>, vector<8x32xf32> -> vector<8x32xf32>
    %294 = vector.broadcast %20 : vector<1x32xf32> to vector<8x32xf32>
    %295 = arith.addf %293, %294 : vector<8x32xf32>
    %cst_216 = arith.constant 0.000000e+00 : f32
    %296 = vector.broadcast %cst_216 : f32 to vector<8x32xf32>
    %297 = arith.maximumf %295, %296 : vector<8x32xf32>
    %c264 = arith.constant 264 : index
    %c0_217 = arith.constant 0 : index
    %298 = vector.load %arg10[%c264, %c0_217] : memref<392x32xf32, #tpu.memory_space<vmem>>, vector<8x32xf32>
    tpu.vector_store %arg10[%c264, %c0_217], %297 {strides = array<i32>} : memref<392x32xf32, #tpu.memory_space<vmem>>, vector<8x32xf32>,
    %c34 = arith.constant 34 : index
    %c0_218 = arith.constant 0 : index
    %c0_219 = arith.constant 0 : index
    %299 = vector.load %arg1[%c34, %c0_218, %c0_219] : memref<49x8x32xbf16, #tpu.memory_space<vmem>>, vector<1x8x32xbf16>
    %300 = vector.shape_cast %299 : vector<1x8x32xbf16> to vector<8x32xbf16>
    %cst_220 = arith.constant dense<0.000000e+00> : vector<8x32xf32>
    %301 = tpu.matmul %300, %1, %cst_220 {dimension_numbers = #tpu.dot_dimension_numbers<[1], [0], [0], [1], [0, 0, 1, 1], [], []>} : vector<8x32xbf16>, vector<32x32xbf16>, vector<8x32xf32> -> vector<8x32xf32>
    %302 = vector.broadcast %20 : vector<1x32xf32> to vector<8x32xf32>
    %303 = arith.addf %301, %302 : vector<8x32xf32>
    %cst_221 = arith.constant 0.000000e+00 : f32
    %304 = vector.broadcast %cst_221 : f32 to vector<8x32xf32>
    %305 = arith.maximumf %303, %304 : vector<8x32xf32>
    %c272 = arith.constant 272 : index
    %c0_222 = arith.constant 0 : index
    %306 = vector.load %arg10[%c272, %c0_222] : memref<392x32xf32, #tpu.memory_space<vmem>>, vector<8x32xf32>
    tpu.vector_store %arg10[%c272, %c0_222], %305 {strides = array<i32>} : memref<392x32xf32, #tpu.memory_space<vmem>>, vector<8x32xf32>,
    %c35 = arith.constant 35 : index
    %c0_223 = arith.constant 0 : index
    %c0_224 = arith.constant 0 : index
    %307 = vector.load %arg1[%c35, %c0_223, %c0_224] : memref<49x8x32xbf16, #tpu.memory_space<vmem>>, vector<1x8x32xbf16>
    %308 = vector.shape_cast %307 : vector<1x8x32xbf16> to vector<8x32xbf16>
    %cst_225 = arith.constant dense<0.000000e+00> : vector<8x32xf32>
    %309 = tpu.matmul %308, %1, %cst_225 {dimension_numbers = #tpu.dot_dimension_numbers<[1], [0], [0], [1], [0, 0, 1, 1], [], []>} : vector<8x32xbf16>, vector<32x32xbf16>, vector<8x32xf32> -> vector<8x32xf32>
    %310 = vector.broadcast %20 : vector<1x32xf32> to vector<8x32xf32>
    %311 = arith.addf %309, %310 : vector<8x32xf32>
    %cst_226 = arith.constant 0.000000e+00 : f32
    %312 = vector.broadcast %cst_226 : f32 to vector<8x32xf32>
    %313 = arith.maximumf %311, %312 : vector<8x32xf32>
    %c280 = arith.constant 280 : index
    %c0_227 = arith.constant 0 : index
    %314 = vector.load %arg10[%c280, %c0_227] : memref<392x32xf32, #tpu.memory_space<vmem>>, vector<8x32xf32>
    tpu.vector_store %arg10[%c280, %c0_227], %313 {strides = array<i32>} : memref<392x32xf32, #tpu.memory_space<vmem>>, vector<8x32xf32>,
    %c36 = arith.constant 36 : index
    %c0_228 = arith.constant 0 : index
    %c0_229 = arith.constant 0 : index
    %315 = vector.load %arg1[%c36, %c0_228, %c0_229] : memref<49x8x32xbf16, #tpu.memory_space<vmem>>, vector<1x8x32xbf16>
    %316 = vector.shape_cast %315 : vector<1x8x32xbf16> to vector<8x32xbf16>
    %cst_230 = arith.constant dense<0.000000e+00> : vector<8x32xf32>
    %317 = tpu.matmul %316, %1, %cst_230 {dimension_numbers = #tpu.dot_dimension_numbers<[1], [0], [0], [1], [0, 0, 1, 1], [], []>} : vector<8x32xbf16>, vector<32x32xbf16>, vector<8x32xf32> -> vector<8x32xf32>
    %318 = vector.broadcast %20 : vector<1x32xf32> to vector<8x32xf32>
    %319 = arith.addf %317, %318 : vector<8x32xf32>
    %cst_231 = arith.constant 0.000000e+00 : f32
    %320 = vector.broadcast %cst_231 : f32 to vector<8x32xf32>
    %321 = arith.maximumf %319, %320 : vector<8x32xf32>
    %c288 = arith.constant 288 : index
    %c0_232 = arith.constant 0 : index
    %322 = vector.load %arg10[%c288, %c0_232] : memref<392x32xf32, #tpu.memory_space<vmem>>, vector<8x32xf32>
    tpu.vector_store %arg10[%c288, %c0_232], %321 {strides = array<i32>} : memref<392x32xf32, #tpu.memory_space<vmem>>, vector<8x32xf32>,
    %c37 = arith.constant 37 : index
    %c0_233 = arith.constant 0 : index
    %c0_234 = arith.constant 0 : index
    %323 = vector.load %arg1[%c37, %c0_233, %c0_234] : memref<49x8x32xbf16, #tpu.memory_space<vmem>>, vector<1x8x32xbf16>
    %324 = vector.shape_cast %323 : vector<1x8x32xbf16> to vector<8x32xbf16>
    %cst_235 = arith.constant dense<0.000000e+00> : vector<8x32xf32>
    %325 = tpu.matmul %324, %1, %cst_235 {dimension_numbers = #tpu.dot_dimension_numbers<[1], [0], [0], [1], [0, 0, 1, 1], [], []>} : vector<8x32xbf16>, vector<32x32xbf16>, vector<8x32xf32> -> vector<8x32xf32>
    %326 = vector.broadcast %20 : vector<1x32xf32> to vector<8x32xf32>
    %327 = arith.addf %325, %326 : vector<8x32xf32>
    %cst_236 = arith.constant 0.000000e+00 : f32
    %328 = vector.broadcast %cst_236 : f32 to vector<8x32xf32>
    %329 = arith.maximumf %327, %328 : vector<8x32xf32>
    %c296 = arith.constant 296 : index
    %c0_237 = arith.constant 0 : index
    %330 = vector.load %arg10[%c296, %c0_237] : memref<392x32xf32, #tpu.memory_space<vmem>>, vector<8x32xf32>
    tpu.vector_store %arg10[%c296, %c0_237], %329 {strides = array<i32>} : memref<392x32xf32, #tpu.memory_space<vmem>>, vector<8x32xf32>,
    %c38 = arith.constant 38 : index
    %c0_238 = arith.constant 0 : index
    %c0_239 = arith.constant 0 : index
    %331 = vector.load %arg1[%c38, %c0_238, %c0_239] : memref<49x8x32xbf16, #tpu.memory_space<vmem>>, vector<1x8x32xbf16>
    %332 = vector.shape_cast %331 : vector<1x8x32xbf16> to vector<8x32xbf16>
    %cst_240 = arith.constant dense<0.000000e+00> : vector<8x32xf32>
    %333 = tpu.matmul %332, %1, %cst_240 {dimension_numbers = #tpu.dot_dimension_numbers<[1], [0], [0], [1], [0, 0, 1, 1], [], []>} : vector<8x32xbf16>, vector<32x32xbf16>, vector<8x32xf32> -> vector<8x32xf32>
    %334 = vector.broadcast %20 : vector<1x32xf32> to vector<8x32xf32>
    %335 = arith.addf %333, %334 : vector<8x32xf32>
    %cst_241 = arith.constant 0.000000e+00 : f32
    %336 = vector.broadcast %cst_241 : f32 to vector<8x32xf32>
    %337 = arith.maximumf %335, %336 : vector<8x32xf32>
    %c304 = arith.constant 304 : index
    %c0_242 = arith.constant 0 : index
    %338 = vector.load %arg10[%c304, %c0_242] : memref<392x32xf32, #tpu.memory_space<vmem>>, vector<8x32xf32>
    tpu.vector_store %arg10[%c304, %c0_242], %337 {strides = array<i32>} : memref<392x32xf32, #tpu.memory_space<vmem>>, vector<8x32xf32>,
    %c39 = arith.constant 39 : index
    %c0_243 = arith.constant 0 : index
    %c0_244 = arith.constant 0 : index
    %339 = vector.load %arg1[%c39, %c0_243, %c0_244] : memref<49x8x32xbf16, #tpu.memory_space<vmem>>, vector<1x8x32xbf16>
    %340 = vector.shape_cast %339 : vector<1x8x32xbf16> to vector<8x32xbf16>
    %cst_245 = arith.constant dense<0.000000e+00> : vector<8x32xf32>
    %341 = tpu.matmul %340, %1, %cst_245 {dimension_numbers = #tpu.dot_dimension_numbers<[1], [0], [0], [1], [0, 0, 1, 1], [], []>} : vector<8x32xbf16>, vector<32x32xbf16>, vector<8x32xf32> -> vector<8x32xf32>
    %342 = vector.broadcast %20 : vector<1x32xf32> to vector<8x32xf32>
    %343 = arith.addf %341, %342 : vector<8x32xf32>
    %cst_246 = arith.constant 0.000000e+00 : f32
    %344 = vector.broadcast %cst_246 : f32 to vector<8x32xf32>
    %345 = arith.maximumf %343, %344 : vector<8x32xf32>
    %c312 = arith.constant 312 : index
    %c0_247 = arith.constant 0 : index
    %346 = vector.load %arg10[%c312, %c0_247] : memref<392x32xf32, #tpu.memory_space<vmem>>, vector<8x32xf32>
    tpu.vector_store %arg10[%c312, %c0_247], %345 {strides = array<i32>} : memref<392x32xf32, #tpu.memory_space<vmem>>, vector<8x32xf32>,
    %c40_248 = arith.constant 40 : index
    %c0_249 = arith.constant 0 : index
    %c0_250 = arith.constant 0 : index
    %347 = vector.load %arg1[%c40_248, %c0_249, %c0_250] : memref<49x8x32xbf16, #tpu.memory_space<vmem>>, vector<1x8x32xbf16>
    %348 = vector.shape_cast %347 : vector<1x8x32xbf16> to vector<8x32xbf16>
    %cst_251 = arith.constant dense<0.000000e+00> : vector<8x32xf32>
    %349 = tpu.matmul %348, %1, %cst_251 {dimension_numbers = #tpu.dot_dimension_numbers<[1], [0], [0], [1], [0, 0, 1, 1], [], []>} : vector<8x32xbf16>, vector<32x32xbf16>, vector<8x32xf32> -> vector<8x32xf32>
    %350 = vector.broadcast %20 : vector<1x32xf32> to vector<8x32xf32>
    %351 = arith.addf %349, %350 : vector<8x32xf32>
    %cst_252 = arith.constant 0.000000e+00 : f32
    %352 = vector.broadcast %cst_252 : f32 to vector<8x32xf32>
    %353 = arith.maximumf %351, %352 : vector<8x32xf32>
    %c320 = arith.constant 320 : index
    %c0_253 = arith.constant 0 : index
    %354 = vector.load %arg10[%c320, %c0_253] : memref<392x32xf32, #tpu.memory_space<vmem>>, vector<8x32xf32>
    tpu.vector_store %arg10[%c320, %c0_253], %353 {strides = array<i32>} : memref<392x32xf32, #tpu.memory_space<vmem>>, vector<8x32xf32>,
    %c41 = arith.constant 41 : index
    %c0_254 = arith.constant 0 : index
    %c0_255 = arith.constant 0 : index
    %355 = vector.load %arg1[%c41, %c0_254, %c0_255] : memref<49x8x32xbf16, #tpu.memory_space<vmem>>, vector<1x8x32xbf16>
    %356 = vector.shape_cast %355 : vector<1x8x32xbf16> to vector<8x32xbf16>
    %cst_256 = arith.constant dense<0.000000e+00> : vector<8x32xf32>
    %357 = tpu.matmul %356, %1, %cst_256 {dimension_numbers = #tpu.dot_dimension_numbers<[1], [0], [0], [1], [0, 0, 1, 1], [], []>} : vector<8x32xbf16>, vector<32x32xbf16>, vector<8x32xf32> -> vector<8x32xf32>
    %358 = vector.broadcast %20 : vector<1x32xf32> to vector<8x32xf32>
    %359 = arith.addf %357, %358 : vector<8x32xf32>
    %cst_257 = arith.constant 0.000000e+00 : f32
    %360 = vector.broadcast %cst_257 : f32 to vector<8x32xf32>
    %361 = arith.maximumf %359, %360 : vector<8x32xf32>
    %c328 = arith.constant 328 : index
    %c0_258 = arith.constant 0 : index
    %362 = vector.load %arg10[%c328, %c0_258] : memref<392x32xf32, #tpu.memory_space<vmem>>, vector<8x32xf32>
    tpu.vector_store %arg10[%c328, %c0_258], %361 {strides = array<i32>} : memref<392x32xf32, #tpu.memory_space<vmem>>, vector<8x32xf32>,
    %c42 = arith.constant 42 : index
    %c0_259 = arith.constant 0 : index
    %c0_260 = arith.constant 0 : index
    %363 = vector.load %arg1[%c42, %c0_259, %c0_260] : memref<49x8x32xbf16, #tpu.memory_space<vmem>>, vector<1x8x32xbf16>
    %364 = vector.shape_cast %363 : vector<1x8x32xbf16> to vector<8x32xbf16>
    %cst_261 = arith.constant dense<0.000000e+00> : vector<8x32xf32>
    %365 = tpu.matmul %364, %1, %cst_261 {dimension_numbers = #tpu.dot_dimension_numbers<[1], [0], [0], [1], [0, 0, 1, 1], [], []>} : vector<8x32xbf16>, vector<32x32xbf16>, vector<8x32xf32> -> vector<8x32xf32>
    %366 = vector.broadcast %20 : vector<1x32xf32> to vector<8x32xf32>
    %367 = arith.addf %365, %366 : vector<8x32xf32>
    %cst_262 = arith.constant 0.000000e+00 : f32
    %368 = vector.broadcast %cst_262 : f32 to vector<8x32xf32>
    %369 = arith.maximumf %367, %368 : vector<8x32xf32>
    %c336 = arith.constant 336 : index
    %c0_263 = arith.constant 0 : index
    %370 = vector.load %arg10[%c336, %c0_263] : memref<392x32xf32, #tpu.memory_space<vmem>>, vector<8x32xf32>
    tpu.vector_store %arg10[%c336, %c0_263], %369 {strides = array<i32>} : memref<392x32xf32, #tpu.memory_space<vmem>>, vector<8x32xf32>,
    %c43 = arith.constant 43 : index
    %c0_264 = arith.constant 0 : index
    %c0_265 = arith.constant 0 : index
    %371 = vector.load %arg1[%c43, %c0_264, %c0_265] : memref<49x8x32xbf16, #tpu.memory_space<vmem>>, vector<1x8x32xbf16>
    %372 = vector.shape_cast %371 : vector<1x8x32xbf16> to vector<8x32xbf16>
    %cst_266 = arith.constant dense<0.000000e+00> : vector<8x32xf32>
    %373 = tpu.matmul %372, %1, %cst_266 {dimension_numbers = #tpu.dot_dimension_numbers<[1], [0], [0], [1], [0, 0, 1, 1], [], []>} : vector<8x32xbf16>, vector<32x32xbf16>, vector<8x32xf32> -> vector<8x32xf32>
    %374 = vector.broadcast %20 : vector<1x32xf32> to vector<8x32xf32>
    %375 = arith.addf %373, %374 : vector<8x32xf32>
    %cst_267 = arith.constant 0.000000e+00 : f32
    %376 = vector.broadcast %cst_267 : f32 to vector<8x32xf32>
    %377 = arith.maximumf %375, %376 : vector<8x32xf32>
    %c344 = arith.constant 344 : index
    %c0_268 = arith.constant 0 : index
    %378 = vector.load %arg10[%c344, %c0_268] : memref<392x32xf32, #tpu.memory_space<vmem>>, vector<8x32xf32>
    tpu.vector_store %arg10[%c344, %c0_268], %377 {strides = array<i32>} : memref<392x32xf32, #tpu.memory_space<vmem>>, vector<8x32xf32>,
    %c44 = arith.constant 44 : index
    %c0_269 = arith.constant 0 : index
    %c0_270 = arith.constant 0 : index
    %379 = vector.load %arg1[%c44, %c0_269, %c0_270] : memref<49x8x32xbf16, #tpu.memory_space<vmem>>, vector<1x8x32xbf16>
    %380 = vector.shape_cast %379 : vector<1x8x32xbf16> to vector<8x32xbf16>
    %cst_271 = arith.constant dense<0.000000e+00> : vector<8x32xf32>
    %381 = tpu.matmul %380, %1, %cst_271 {dimension_numbers = #tpu.dot_dimension_numbers<[1], [0], [0], [1], [0, 0, 1, 1], [], []>} : vector<8x32xbf16>, vector<32x32xbf16>, vector<8x32xf32> -> vector<8x32xf32>
    %382 = vector.broadcast %20 : vector<1x32xf32> to vector<8x32xf32>
    %383 = arith.addf %381, %382 : vector<8x32xf32>
    %cst_272 = arith.constant 0.000000e+00 : f32
    %384 = vector.broadcast %cst_272 : f32 to vector<8x32xf32>
    %385 = arith.maximumf %383, %384 : vector<8x32xf32>
    %c352 = arith.constant 352 : index
    %c0_273 = arith.constant 0 : index
    %386 = vector.load %arg10[%c352, %c0_273] : memref<392x32xf32, #tpu.memory_space<vmem>>, vector<8x32xf32>
    tpu.vector_store %arg10[%c352, %c0_273], %385 {strides = array<i32>} : memref<392x32xf32, #tpu.memory_space<vmem>>, vector<8x32xf32>,
    %c45 = arith.constant 45 : index
    %c0_274 = arith.constant 0 : index
    %c0_275 = arith.constant 0 : index
    %387 = vector.load %arg1[%c45, %c0_274, %c0_275] : memref<49x8x32xbf16, #tpu.memory_space<vmem>>, vector<1x8x32xbf16>
    %388 = vector.shape_cast %387 : vector<1x8x32xbf16> to vector<8x32xbf16>
    %cst_276 = arith.constant dense<0.000000e+00> : vector<8x32xf32>
    %389 = tpu.matmul %388, %1, %cst_276 {dimension_numbers = #tpu.dot_dimension_numbers<[1], [0], [0], [1], [0, 0, 1, 1], [], []>} : vector<8x32xbf16>, vector<32x32xbf16>, vector<8x32xf32> -> vector<8x32xf32>
    %390 = vector.broadcast %20 : vector<1x32xf32> to vector<8x32xf32>
    %391 = arith.addf %389, %390 : vector<8x32xf32>
    %cst_277 = arith.constant 0.000000e+00 : f32
    %392 = vector.broadcast %cst_277 : f32 to vector<8x32xf32>
    %393 = arith.maximumf %391, %392 : vector<8x32xf32>
    %c360 = arith.constant 360 : index
    %c0_278 = arith.constant 0 : index
    %394 = vector.load %arg10[%c360, %c0_278] : memref<392x32xf32, #tpu.memory_space<vmem>>, vector<8x32xf32>
    tpu.vector_store %arg10[%c360, %c0_278], %393 {strides = array<i32>} : memref<392x32xf32, #tpu.memory_space<vmem>>, vector<8x32xf32>,
    %c46 = arith.constant 46 : index
    %c0_279 = arith.constant 0 : index
    %c0_280 = arith.constant 0 : index
    %395 = vector.load %arg1[%c46, %c0_279, %c0_280] : memref<49x8x32xbf16, #tpu.memory_space<vmem>>, vector<1x8x32xbf16>
    %396 = vector.shape_cast %395 : vector<1x8x32xbf16> to vector<8x32xbf16>
    %cst_281 = arith.constant dense<0.000000e+00> : vector<8x32xf32>
    %397 = tpu.matmul %396, %1, %cst_281 {dimension_numbers = #tpu.dot_dimension_numbers<[1], [0], [0], [1], [0, 0, 1, 1], [], []>} : vector<8x32xbf16>, vector<32x32xbf16>, vector<8x32xf32> -> vector<8x32xf32>
    %398 = vector.broadcast %20 : vector<1x32xf32> to vector<8x32xf32>
    %399 = arith.addf %397, %398 : vector<8x32xf32>
    %cst_282 = arith.constant 0.000000e+00 : f32
    %400 = vector.broadcast %cst_282 : f32 to vector<8x32xf32>
    %401 = arith.maximumf %399, %400 : vector<8x32xf32>
    %c368 = arith.constant 368 : index
    %c0_283 = arith.constant 0 : index
    %402 = vector.load %arg10[%c368, %c0_283] : memref<392x32xf32, #tpu.memory_space<vmem>>, vector<8x32xf32>
    tpu.vector_store %arg10[%c368, %c0_283], %401 {strides = array<i32>} : memref<392x32xf32, #tpu.memory_space<vmem>>, vector<8x32xf32>,
    %c47 = arith.constant 47 : index
    %c0_284 = arith.constant 0 : index
    %c0_285 = arith.constant 0 : index
    %403 = vector.load %arg1[%c47, %c0_284, %c0_285] : memref<49x8x32xbf16, #tpu.memory_space<vmem>>, vector<1x8x32xbf16>
    %404 = vector.shape_cast %403 : vector<1x8x32xbf16> to vector<8x32xbf16>
    %cst_286 = arith.constant dense<0.000000e+00> : vector<8x32xf32>
    %405 = tpu.matmul %404, %1, %cst_286 {dimension_numbers = #tpu.dot_dimension_numbers<[1], [0], [0], [1], [0, 0, 1, 1], [], []>} : vector<8x32xbf16>, vector<32x32xbf16>, vector<8x32xf32> -> vector<8x32xf32>
    %406 = vector.broadcast %20 : vector<1x32xf32> to vector<8x32xf32>
    %407 = arith.addf %405, %406 : vector<8x32xf32>
    %cst_287 = arith.constant 0.000000e+00 : f32
    %408 = vector.broadcast %cst_287 : f32 to vector<8x32xf32>
    %409 = arith.maximumf %407, %408 : vector<8x32xf32>
    %c376 = arith.constant 376 : index
    %c0_288 = arith.constant 0 : index
    %410 = vector.load %arg10[%c376, %c0_288] : memref<392x32xf32, #tpu.memory_space<vmem>>, vector<8x32xf32>
    tpu.vector_store %arg10[%c376, %c0_288], %409 {strides = array<i32>} : memref<392x32xf32, #tpu.memory_space<vmem>>, vector<8x32xf32>,
    %c48_289 = arith.constant 48 : index
    %c0_290 = arith.constant 0 : index
    %c0_291 = arith.constant 0 : index
    %411 = vector.load %arg1[%c48_289, %c0_290, %c0_291] : memref<49x8x32xbf16, #tpu.memory_space<vmem>>, vector<1x8x32xbf16>
    %412 = vector.shape_cast %411 : vector<1x8x32xbf16> to vector<8x32xbf16>
    %cst_292 = arith.constant dense<0.000000e+00> : vector<8x32xf32>
    %413 = tpu.matmul %412, %1, %cst_292 {dimension_numbers = #tpu.dot_dimension_numbers<[1], [0], [0], [1], [0, 0, 1, 1], [], []>} : vector<8x32xbf16>, vector<32x32xbf16>, vector<8x32xf32> -> vector<8x32xf32>
    %414 = vector.broadcast %20 : vector<1x32xf32> to vector<8x32xf32>
    %415 = arith.addf %413, %414 : vector<8x32xf32>
    %cst_293 = arith.constant 0.000000e+00 : f32
    %416 = vector.broadcast %cst_293 : f32 to vector<8x32xf32>
    %417 = arith.maximumf %415, %416 : vector<8x32xf32>
    %c384 = arith.constant 384 : index
    %c0_294 = arith.constant 0 : index
    %418 = vector.load %arg10[%c384, %c0_294] : memref<392x32xf32, #tpu.memory_space<vmem>>, vector<8x32xf32>
    tpu.vector_store %arg10[%c384, %c0_294], %417 {strides = array<i32>} : memref<392x32xf32, #tpu.memory_space<vmem>>, vector<8x32xf32>,
    %cst_295 = arith.constant 0.000000e+00 : f32
    %419 = vector.broadcast %cst_295 : f32 to vector<8x32xf32>
    %cst_296 = arith.constant 0.000000e+00 : f32
    %420 = vector.broadcast %cst_296 : f32 to vector<40x32xf32>
    %c0_297 = arith.constant 0 : index
    %c0_298 = arith.constant 0 : index
    %421 = vector.load %arg10[%c0_297, %c0_298] : memref<392x32xf32, #tpu.memory_space<vmem>>, vector<40x32xf32>
    %422 = arith.truncf %421 : vector<40x32xf32> to vector<40x32xbf16>
    %cst_299 = arith.constant dense<0.000000e+00> : vector<40x32xf32>
    %423 = tpu.matmul %422, %3, %cst_299 {dimension_numbers = #tpu.dot_dimension_numbers<[1], [0], [0], [1], [0, 0, 1, 1], [], []>} : vector<40x32xbf16>, vector<32x32xbf16>, vector<40x32xf32> -> vector<40x32xf32>
    %424 = arith.addf %420, %423 : vector<40x32xf32>
    %c8_300 = arith.constant 8 : index
    %c0_301 = arith.constant 0 : index
    %425 = vector.load %arg10[%c8_300, %c0_301] : memref<392x32xf32, #tpu.memory_space<vmem>>, vector<40x32xf32>
    %426 = arith.truncf %425 : vector<40x32xf32> to vector<40x32xbf16>
    %cst_302 = arith.constant dense<0.000000e+00> : vector<40x32xf32>
    %427 = tpu.matmul %426, %5, %cst_302 {dimension_numbers = #tpu.dot_dimension_numbers<[1], [0], [0], [1], [0, 0, 1, 1], [], []>} : vector<40x32xbf16>, vector<32x32xbf16>, vector<40x32xf32> -> vector<40x32xf32>
    %428 = arith.addf %424, %427 : vector<40x32xf32>
    %c16_303 = arith.constant 16 : index
    %c0_304 = arith.constant 0 : index
    %429 = vector.load %arg10[%c16_303, %c0_304] : memref<392x32xf32, #tpu.memory_space<vmem>>, vector<40x32xf32>
    %430 = arith.truncf %429 : vector<40x32xf32> to vector<40x32xbf16>
    %cst_305 = arith.constant dense<0.000000e+00> : vector<40x32xf32>
    %431 = tpu.matmul %430, %7, %cst_305 {dimension_numbers = #tpu.dot_dimension_numbers<[1], [0], [0], [1], [0, 0, 1, 1], [], []>} : vector<40x32xbf16>, vector<32x32xbf16>, vector<40x32xf32> -> vector<40x32xf32>
    %432 = arith.addf %428, %431 : vector<40x32xf32>
    %c56_306 = arith.constant 56 : index
    %c0_307 = arith.constant 0 : index
    %433 = vector.load %arg10[%c56_306, %c0_307] : memref<392x32xf32, #tpu.memory_space<vmem>>, vector<40x32xf32>
    %434 = arith.truncf %433 : vector<40x32xf32> to vector<40x32xbf16>
    %cst_308 = arith.constant dense<0.000000e+00> : vector<40x32xf32>
    %435 = tpu.matmul %434, %9, %cst_308 {dimension_numbers = #tpu.dot_dimension_numbers<[1], [0], [0], [1], [0, 0, 1, 1], [], []>} : vector<40x32xbf16>, vector<32x32xbf16>, vector<40x32xf32> -> vector<40x32xf32>
    %436 = arith.addf %432, %435 : vector<40x32xf32>
    %c64_309 = arith.constant 64 : index
    %c0_310 = arith.constant 0 : index
    %437 = vector.load %arg10[%c64_309, %c0_310] : memref<392x32xf32, #tpu.memory_space<vmem>>, vector<40x32xf32>
    %438 = arith.truncf %437 : vector<40x32xf32> to vector<40x32xbf16>
    %cst_311 = arith.constant dense<0.000000e+00> : vector<40x32xf32>
    %439 = tpu.matmul %438, %11, %cst_311 {dimension_numbers = #tpu.dot_dimension_numbers<[1], [0], [0], [1], [0, 0, 1, 1], [], []>} : vector<40x32xbf16>, vector<32x32xbf16>, vector<40x32xf32> -> vector<40x32xf32>
    %440 = arith.addf %436, %439 : vector<40x32xf32>
    %c72_312 = arith.constant 72 : index
    %c0_313 = arith.constant 0 : index
    %441 = vector.load %arg10[%c72_312, %c0_313] : memref<392x32xf32, #tpu.memory_space<vmem>>, vector<40x32xf32>
    %442 = arith.truncf %441 : vector<40x32xf32> to vector<40x32xbf16>
    %cst_314 = arith.constant dense<0.000000e+00> : vector<40x32xf32>
    %443 = tpu.matmul %442, %13, %cst_314 {dimension_numbers = #tpu.dot_dimension_numbers<[1], [0], [0], [1], [0, 0, 1, 1], [], []>} : vector<40x32xbf16>, vector<32x32xbf16>, vector<40x32xf32> -> vector<40x32xf32>
    %444 = arith.addf %440, %443 : vector<40x32xf32>
    %c112_315 = arith.constant 112 : index
    %c0_316 = arith.constant 0 : index
    %445 = vector.load %arg10[%c112_315, %c0_316] : memref<392x32xf32, #tpu.memory_space<vmem>>, vector<40x32xf32>
    %446 = arith.truncf %445 : vector<40x32xf32> to vector<40x32xbf16>
    %cst_317 = arith.constant dense<0.000000e+00> : vector<40x32xf32>
    %447 = tpu.matmul %446, %15, %cst_317 {dimension_numbers = #tpu.dot_dimension_numbers<[1], [0], [0], [1], [0, 0, 1, 1], [], []>} : vector<40x32xbf16>, vector<32x32xbf16>, vector<40x32xf32> -> vector<40x32xf32>
    %448 = arith.addf %444, %447 : vector<40x32xf32>
    %c120_318 = arith.constant 120 : index
    %c0_319 = arith.constant 0 : index
    %449 = vector.load %arg10[%c120_318, %c0_319] : memref<392x32xf32, #tpu.memory_space<vmem>>, vector<40x32xf32>
    %450 = arith.truncf %449 : vector<40x32xf32> to vector<40x32xbf16>
    %cst_320 = arith.constant dense<0.000000e+00> : vector<40x32xf32>
    %451 = tpu.matmul %450, %17, %cst_320 {dimension_numbers = #tpu.dot_dimension_numbers<[1], [0], [0], [1], [0, 0, 1, 1], [], []>} : vector<40x32xbf16>, vector<32x32xbf16>, vector<40x32xf32> -> vector<40x32xf32>
    %452 = arith.addf %448, %451 : vector<40x32xf32>
    %c128_321 = arith.constant 128 : index
    %c0_322 = arith.constant 0 : index
    %453 = vector.load %arg10[%c128_321, %c0_322] : memref<392x32xf32, #tpu.memory_space<vmem>>, vector<40x32xf32>
    %454 = arith.truncf %453 : vector<40x32xf32> to vector<40x32xbf16>
    %cst_323 = arith.constant dense<0.000000e+00> : vector<40x32xf32>
    %455 = tpu.matmul %454, %19, %cst_323 {dimension_numbers = #tpu.dot_dimension_numbers<[1], [0], [0], [1], [0, 0, 1, 1], [], []>} : vector<40x32xbf16>, vector<32x32xbf16>, vector<40x32xf32> -> vector<40x32xf32>
    %456 = arith.addf %452, %455 : vector<40x32xf32>
    %457 = vector.broadcast %21 : vector<1x32xf32> to vector<40x32xf32>
    %458 = arith.addf %456, %457 : vector<40x32xf32>
    %cst_324 = arith.constant 0.000000e+00 : f32
    %459 = vector.broadcast %cst_324 : f32 to vector<40x32xf32>
    %460 = arith.maximumf %458, %459 : vector<40x32xf32>
    %c10_325 = arith.constant 10 : index
    %c0_326 = arith.constant 0 : index
    %c0_327 = arith.constant 0 : index
    %461 = vector.load %arg3[%c10_325, %c0_326, %c0_327] : memref<37x32x32xbf16, #tpu.memory_space<vmem>>, vector<1x32x32xbf16>
    %462 = vector.shape_cast %461 : vector<1x32x32xbf16> to vector<32x32xbf16>
    %463 = vector.extract_strided_slice %460 {offsets = [0, 0], sizes = [8, 32], strides = [1, 1]} : vector<40x32xf32> to vector<8x32xf32>
    %464 = arith.truncf %463 : vector<8x32xf32> to vector<8x32xbf16>
    %cst_328 = arith.constant dense<0.000000e+00> : vector<8x32xf32>
    %465 = tpu.matmul %464, %462, %cst_328 {dimension_numbers = #tpu.dot_dimension_numbers<[1], [0], [0], [1], [0, 0, 1, 1], [], []>} : vector<8x32xbf16>, vector<32x32xbf16>, vector<8x32xf32> -> vector<8x32xf32>
    %466 = arith.addf %419, %465 : vector<8x32xf32>
    %c11_329 = arith.constant 11 : index
    %c0_330 = arith.constant 0 : index
    %c0_331 = arith.constant 0 : index
    %467 = vector.load %arg3[%c11_329, %c0_330, %c0_331] : memref<37x32x32xbf16, #tpu.memory_space<vmem>>, vector<1x32x32xbf16>
    %468 = vector.shape_cast %467 : vector<1x32x32xbf16> to vector<32x32xbf16>
    %469 = vector.extract_strided_slice %460 {offsets = [8, 0], sizes = [8, 32], strides = [1, 1]} : vector<40x32xf32> to vector<8x32xf32>
    %470 = arith.truncf %469 : vector<8x32xf32> to vector<8x32xbf16>
    %cst_332 = arith.constant dense<0.000000e+00> : vector<8x32xf32>
    %471 = tpu.matmul %470, %468, %cst_332 {dimension_numbers = #tpu.dot_dimension_numbers<[1], [0], [0], [1], [0, 0, 1, 1], [], []>} : vector<8x32xbf16>, vector<32x32xbf16>, vector<8x32xf32> -> vector<8x32xf32>
    %472 = arith.addf %466, %471 : vector<8x32xf32>
    %c12_333 = arith.constant 12 : index
    %c0_334 = arith.constant 0 : index
    %c0_335 = arith.constant 0 : index
    %473 = vector.load %arg3[%c12_333, %c0_334, %c0_335] : memref<37x32x32xbf16, #tpu.memory_space<vmem>>, vector<1x32x32xbf16>
    %474 = vector.shape_cast %473 : vector<1x32x32xbf16> to vector<32x32xbf16>
    %475 = vector.extract_strided_slice %460 {offsets = [16, 0], sizes = [8, 32], strides = [1, 1]} : vector<40x32xf32> to vector<8x32xf32>
    %476 = arith.truncf %475 : vector<8x32xf32> to vector<8x32xbf16>
    %cst_336 = arith.constant dense<0.000000e+00> : vector<8x32xf32>
    %477 = tpu.matmul %476, %474, %cst_336 {dimension_numbers = #tpu.dot_dimension_numbers<[1], [0], [0], [1], [0, 0, 1, 1], [], []>} : vector<8x32xbf16>, vector<32x32xbf16>, vector<8x32xf32> -> vector<8x32xf32>
    %478 = arith.addf %472, %477 : vector<8x32xf32>
    %c13_337 = arith.constant 13 : index
    %c0_338 = arith.constant 0 : index
    %c0_339 = arith.constant 0 : index
    %479 = vector.load %arg3[%c13_337, %c0_338, %c0_339] : memref<37x32x32xbf16, #tpu.memory_space<vmem>>, vector<1x32x32xbf16>
    %480 = vector.shape_cast %479 : vector<1x32x32xbf16> to vector<32x32xbf16>
    %481 = vector.extract_strided_slice %460 {offsets = [24, 0], sizes = [8, 32], strides = [1, 1]} : vector<40x32xf32> to vector<8x32xf32>
    %482 = arith.truncf %481 : vector<8x32xf32> to vector<8x32xbf16>
    %cst_340 = arith.constant dense<0.000000e+00> : vector<8x32xf32>
    %483 = tpu.matmul %482, %480, %cst_340 {dimension_numbers = #tpu.dot_dimension_numbers<[1], [0], [0], [1], [0, 0, 1, 1], [], []>} : vector<8x32xbf16>, vector<32x32xbf16>, vector<8x32xf32> -> vector<8x32xf32>
    %484 = arith.addf %478, %483 : vector<8x32xf32>
    %c14_341 = arith.constant 14 : index
    %c0_342 = arith.constant 0 : index
    %c0_343 = arith.constant 0 : index
    %485 = vector.load %arg3[%c14_341, %c0_342, %c0_343] : memref<37x32x32xbf16, #tpu.memory_space<vmem>>, vector<1x32x32xbf16>
    %486 = vector.shape_cast %485 : vector<1x32x32xbf16> to vector<32x32xbf16>
    %487 = vector.extract_strided_slice %460 {offsets = [32, 0], sizes = [8, 32], strides = [1, 1]} : vector<40x32xf32> to vector<8x32xf32>
    %488 = arith.truncf %487 : vector<8x32xf32> to vector<8x32xbf16>
    %cst_344 = arith.constant dense<0.000000e+00> : vector<8x32xf32>
    %489 = tpu.matmul %488, %486, %cst_344 {dimension_numbers = #tpu.dot_dimension_numbers<[1], [0], [0], [1], [0, 0, 1, 1], [], []>} : vector<8x32xbf16>, vector<32x32xbf16>, vector<8x32xf32> -> vector<8x32xf32>
    %490 = arith.addf %484, %489 : vector<8x32xf32>
    %cst_345 = arith.constant 0.000000e+00 : f32
    %491 = vector.broadcast %cst_345 : f32 to vector<40x32xf32>
    %c56_346 = arith.constant 56 : index
    %c0_347 = arith.constant 0 : index
    %492 = vector.load %arg10[%c56_346, %c0_347] : memref<392x32xf32, #tpu.memory_space<vmem>>, vector<40x32xf32>
    %493 = arith.truncf %492 : vector<40x32xf32> to vector<40x32xbf16>
    %cst_348 = arith.constant dense<0.000000e+00> : vector<40x32xf32>
    %494 = tpu.matmul %493, %3, %cst_348 {dimension_numbers = #tpu.dot_dimension_numbers<[1], [0], [0], [1], [0, 0, 1, 1], [], []>} : vector<40x32xbf16>, vector<32x32xbf16>, vector<40x32xf32> -> vector<40x32xf32>
    %495 = arith.addf %491, %494 : vector<40x32xf32>
    %c64_349 = arith.constant 64 : index
    %c0_350 = arith.constant 0 : index
    %496 = vector.load %arg10[%c64_349, %c0_350] : memref<392x32xf32, #tpu.memory_space<vmem>>, vector<40x32xf32>
    %497 = arith.truncf %496 : vector<40x32xf32> to vector<40x32xbf16>
    %cst_351 = arith.constant dense<0.000000e+00> : vector<40x32xf32>
    %498 = tpu.matmul %497, %5, %cst_351 {dimension_numbers = #tpu.dot_dimension_numbers<[1], [0], [0], [1], [0, 0, 1, 1], [], []>} : vector<40x32xbf16>, vector<32x32xbf16>, vector<40x32xf32> -> vector<40x32xf32>
    %499 = arith.addf %495, %498 : vector<40x32xf32>
    %c72_352 = arith.constant 72 : index
    %c0_353 = arith.constant 0 : index
    %500 = vector.load %arg10[%c72_352, %c0_353] : memref<392x32xf32, #tpu.memory_space<vmem>>, vector<40x32xf32>
    %501 = arith.truncf %500 : vector<40x32xf32> to vector<40x32xbf16>
    %cst_354 = arith.constant dense<0.000000e+00> : vector<40x32xf32>
    %502 = tpu.matmul %501, %7, %cst_354 {dimension_numbers = #tpu.dot_dimension_numbers<[1], [0], [0], [1], [0, 0, 1, 1], [], []>} : vector<40x32xbf16>, vector<32x32xbf16>, vector<40x32xf32> -> vector<40x32xf32>
    %503 = arith.addf %499, %502 : vector<40x32xf32>
    %c112_355 = arith.constant 112 : index
    %c0_356 = arith.constant 0 : index
    %504 = vector.load %arg10[%c112_355, %c0_356] : memref<392x32xf32, #tpu.memory_space<vmem>>, vector<40x32xf32>
    %505 = arith.truncf %504 : vector<40x32xf32> to vector<40x32xbf16>
    %cst_357 = arith.constant dense<0.000000e+00> : vector<40x32xf32>
    %506 = tpu.matmul %505, %9, %cst_357 {dimension_numbers = #tpu.dot_dimension_numbers<[1], [0], [0], [1], [0, 0, 1, 1], [], []>} : vector<40x32xbf16>, vector<32x32xbf16>, vector<40x32xf32> -> vector<40x32xf32>
    %507 = arith.addf %503, %506 : vector<40x32xf32>
    %c120_358 = arith.constant 120 : index
    %c0_359 = arith.constant 0 : index
    %508 = vector.load %arg10[%c120_358, %c0_359] : memref<392x32xf32, #tpu.memory_space<vmem>>, vector<40x32xf32>
    %509 = arith.truncf %508 : vector<40x32xf32> to vector<40x32xbf16>
    %cst_360 = arith.constant dense<0.000000e+00> : vector<40x32xf32>
    %510 = tpu.matmul %509, %11, %cst_360 {dimension_numbers = #tpu.dot_dimension_numbers<[1], [0], [0], [1], [0, 0, 1, 1], [], []>} : vector<40x32xbf16>, vector<32x32xbf16>, vector<40x32xf32> -> vector<40x32xf32>
    %511 = arith.addf %507, %510 : vector<40x32xf32>
    %c128_361 = arith.constant 128 : index
    %c0_362 = arith.constant 0 : index
    %512 = vector.load %arg10[%c128_361, %c0_362] : memref<392x32xf32, #tpu.memory_space<vmem>>, vector<40x32xf32>
    %513 = arith.truncf %512 : vector<40x32xf32> to vector<40x32xbf16>
    %cst_363 = arith.constant dense<0.000000e+00> : vector<40x32xf32>
    %514 = tpu.matmul %513, %13, %cst_363 {dimension_numbers = #tpu.dot_dimension_numbers<[1], [0], [0], [1], [0, 0, 1, 1], [], []>} : vector<40x32xbf16>, vector<32x32xbf16>, vector<40x32xf32> -> vector<40x32xf32>
    %515 = arith.addf %511, %514 : vector<40x32xf32>
    %c168_364 = arith.constant 168 : index
    %c0_365 = arith.constant 0 : index
    %516 = vector.load %arg10[%c168_364, %c0_365] : memref<392x32xf32, #tpu.memory_space<vmem>>, vector<40x32xf32>
    %517 = arith.truncf %516 : vector<40x32xf32> to vector<40x32xbf16>
    %cst_366 = arith.constant dense<0.000000e+00> : vector<40x32xf32>
    %518 = tpu.matmul %517, %15, %cst_366 {dimension_numbers = #tpu.dot_dimension_numbers<[1], [0], [0], [1], [0, 0, 1, 1], [], []>} : vector<40x32xbf16>, vector<32x32xbf16>, vector<40x32xf32> -> vector<40x32xf32>
    %519 = arith.addf %515, %518 : vector<40x32xf32>
    %c176_367 = arith.constant 176 : index
    %c0_368 = arith.constant 0 : index
    %520 = vector.load %arg10[%c176_367, %c0_368] : memref<392x32xf32, #tpu.memory_space<vmem>>, vector<40x32xf32>
    %521 = arith.truncf %520 : vector<40x32xf32> to vector<40x32xbf16>
    %cst_369 = arith.constant dense<0.000000e+00> : vector<40x32xf32>
    %522 = tpu.matmul %521, %17, %cst_369 {dimension_numbers = #tpu.dot_dimension_numbers<[1], [0], [0], [1], [0, 0, 1, 1], [], []>} : vector<40x32xbf16>, vector<32x32xbf16>, vector<40x32xf32> -> vector<40x32xf32>
    %523 = arith.addf %519, %522 : vector<40x32xf32>
    %c184_370 = arith.constant 184 : index
    %c0_371 = arith.constant 0 : index
    %524 = vector.load %arg10[%c184_370, %c0_371] : memref<392x32xf32, #tpu.memory_space<vmem>>, vector<40x32xf32>
    %525 = arith.truncf %524 : vector<40x32xf32> to vector<40x32xbf16>
    %cst_372 = arith.constant dense<0.000000e+00> : vector<40x32xf32>
    %526 = tpu.matmul %525, %19, %cst_372 {dimension_numbers = #tpu.dot_dimension_numbers<[1], [0], [0], [1], [0, 0, 1, 1], [], []>} : vector<40x32xbf16>, vector<32x32xbf16>, vector<40x32xf32> -> vector<40x32xf32>
    %527 = arith.addf %523, %526 : vector<40x32xf32>
    %528 = vector.broadcast %21 : vector<1x32xf32> to vector<40x32xf32>
    %529 = arith.addf %527, %528 : vector<40x32xf32>
    %cst_373 = arith.constant 0.000000e+00 : f32
    %530 = vector.broadcast %cst_373 : f32 to vector<40x32xf32>
    %531 = arith.maximumf %529, %530 : vector<40x32xf32>
    %c15_374 = arith.constant 15 : index
    %c0_375 = arith.constant 0 : index
    %c0_376 = arith.constant 0 : index
    %532 = vector.load %arg3[%c15_374, %c0_375, %c0_376] : memref<37x32x32xbf16, #tpu.memory_space<vmem>>, vector<1x32x32xbf16>
    %533 = vector.shape_cast %532 : vector<1x32x32xbf16> to vector<32x32xbf16>
    %534 = vector.extract_strided_slice %531 {offsets = [0, 0], sizes = [8, 32], strides = [1, 1]} : vector<40x32xf32> to vector<8x32xf32>
    %535 = arith.truncf %534 : vector<8x32xf32> to vector<8x32xbf16>
    %cst_377 = arith.constant dense<0.000000e+00> : vector<8x32xf32>
    %536 = tpu.matmul %535, %533, %cst_377 {dimension_numbers = #tpu.dot_dimension_numbers<[1], [0], [0], [1], [0, 0, 1, 1], [], []>} : vector<8x32xbf16>, vector<32x32xbf16>, vector<8x32xf32> -> vector<8x32xf32>
    %537 = arith.addf %490, %536 : vector<8x32xf32>
    %c16_378 = arith.constant 16 : index
    %c0_379 = arith.constant 0 : index
    %c0_380 = arith.constant 0 : index
    %538 = vector.load %arg3[%c16_378, %c0_379, %c0_380] : memref<37x32x32xbf16, #tpu.memory_space<vmem>>, vector<1x32x32xbf16>
    %539 = vector.shape_cast %538 : vector<1x32x32xbf16> to vector<32x32xbf16>
    %540 = vector.extract_strided_slice %531 {offsets = [8, 0], sizes = [8, 32], strides = [1, 1]} : vector<40x32xf32> to vector<8x32xf32>
    %541 = arith.truncf %540 : vector<8x32xf32> to vector<8x32xbf16>
    %cst_381 = arith.constant dense<0.000000e+00> : vector<8x32xf32>
    %542 = tpu.matmul %541, %539, %cst_381 {dimension_numbers = #tpu.dot_dimension_numbers<[1], [0], [0], [1], [0, 0, 1, 1], [], []>} : vector<8x32xbf16>, vector<32x32xbf16>, vector<8x32xf32> -> vector<8x32xf32>
    %543 = arith.addf %537, %542 : vector<8x32xf32>
    %c17_382 = arith.constant 17 : index
    %c0_383 = arith.constant 0 : index
    %c0_384 = arith.constant 0 : index
    %544 = vector.load %arg3[%c17_382, %c0_383, %c0_384] : memref<37x32x32xbf16, #tpu.memory_space<vmem>>, vector<1x32x32xbf16>
    %545 = vector.shape_cast %544 : vector<1x32x32xbf16> to vector<32x32xbf16>
    %546 = vector.extract_strided_slice %531 {offsets = [16, 0], sizes = [8, 32], strides = [1, 1]} : vector<40x32xf32> to vector<8x32xf32>
    %547 = arith.truncf %546 : vector<8x32xf32> to vector<8x32xbf16>
    %cst_385 = arith.constant dense<0.000000e+00> : vector<8x32xf32>
    %548 = tpu.matmul %547, %545, %cst_385 {dimension_numbers = #tpu.dot_dimension_numbers<[1], [0], [0], [1], [0, 0, 1, 1], [], []>} : vector<8x32xbf16>, vector<32x32xbf16>, vector<8x32xf32> -> vector<8x32xf32>
    %549 = arith.addf %543, %548 : vector<8x32xf32>
    %c18_386 = arith.constant 18 : index
    %c0_387 = arith.constant 0 : index
    %c0_388 = arith.constant 0 : index
    %550 = vector.load %arg3[%c18_386, %c0_387, %c0_388] : memref<37x32x32xbf16, #tpu.memory_space<vmem>>, vector<1x32x32xbf16>
    %551 = vector.shape_cast %550 : vector<1x32x32xbf16> to vector<32x32xbf16>
    %552 = vector.extract_strided_slice %531 {offsets = [24, 0], sizes = [8, 32], strides = [1, 1]} : vector<40x32xf32> to vector<8x32xf32>
    %553 = arith.truncf %552 : vector<8x32xf32> to vector<8x32xbf16>
    %cst_389 = arith.constant dense<0.000000e+00> : vector<8x32xf32>
    %554 = tpu.matmul %553, %551, %cst_389 {dimension_numbers = #tpu.dot_dimension_numbers<[1], [0], [0], [1], [0, 0, 1, 1], [], []>} : vector<8x32xbf16>, vector<32x32xbf16>, vector<8x32xf32> -> vector<8x32xf32>
    %555 = arith.addf %549, %554 : vector<8x32xf32>
    %c19_390 = arith.constant 19 : index
    %c0_391 = arith.constant 0 : index
    %c0_392 = arith.constant 0 : index
    %556 = vector.load %arg3[%c19_390, %c0_391, %c0_392] : memref<37x32x32xbf16, #tpu.memory_space<vmem>>, vector<1x32x32xbf16>
    %557 = vector.shape_cast %556 : vector<1x32x32xbf16> to vector<32x32xbf16>
    %558 = vector.extract_strided_slice %531 {offsets = [32, 0], sizes = [8, 32], strides = [1, 1]} : vector<40x32xf32> to vector<8x32xf32>
    %559 = arith.truncf %558 : vector<8x32xf32> to vector<8x32xbf16>
    %cst_393 = arith.constant dense<0.000000e+00> : vector<8x32xf32>
    %560 = tpu.matmul %559, %557, %cst_393 {dimension_numbers = #tpu.dot_dimension_numbers<[1], [0], [0], [1], [0, 0, 1, 1], [], []>} : vector<8x32xbf16>, vector<32x32xbf16>, vector<8x32xf32> -> vector<8x32xf32>
    %561 = arith.addf %555, %560 : vector<8x32xf32>
    %cst_394 = arith.constant 0.000000e+00 : f32
    %562 = vector.broadcast %cst_394 : f32 to vector<40x32xf32>
    %c112_395 = arith.constant 112 : index
    %c0_396 = arith.constant 0 : index
    %563 = vector.load %arg10[%c112_395, %c0_396] : memref<392x32xf32, #tpu.memory_space<vmem>>, vector<40x32xf32>
    %564 = arith.truncf %563 : vector<40x32xf32> to vector<40x32xbf16>
    %cst_397 = arith.constant dense<0.000000e+00> : vector<40x32xf32>
    %565 = tpu.matmul %564, %3, %cst_397 {dimension_numbers = #tpu.dot_dimension_numbers<[1], [0], [0], [1], [0, 0, 1, 1], [], []>} : vector<40x32xbf16>, vector<32x32xbf16>, vector<40x32xf32> -> vector<40x32xf32>
    %566 = arith.addf %562, %565 : vector<40x32xf32>
    %c120_398 = arith.constant 120 : index
    %c0_399 = arith.constant 0 : index
    %567 = vector.load %arg10[%c120_398, %c0_399] : memref<392x32xf32, #tpu.memory_space<vmem>>, vector<40x32xf32>
    %568 = arith.truncf %567 : vector<40x32xf32> to vector<40x32xbf16>
    %cst_400 = arith.constant dense<0.000000e+00> : vector<40x32xf32>
    %569 = tpu.matmul %568, %5, %cst_400 {dimension_numbers = #tpu.dot_dimension_numbers<[1], [0], [0], [1], [0, 0, 1, 1], [], []>} : vector<40x32xbf16>, vector<32x32xbf16>, vector<40x32xf32> -> vector<40x32xf32>
    %570 = arith.addf %566, %569 : vector<40x32xf32>
    %c128_401 = arith.constant 128 : index
    %c0_402 = arith.constant 0 : index
    %571 = vector.load %arg10[%c128_401, %c0_402] : memref<392x32xf32, #tpu.memory_space<vmem>>, vector<40x32xf32>
    %572 = arith.truncf %571 : vector<40x32xf32> to vector<40x32xbf16>
    %cst_403 = arith.constant dense<0.000000e+00> : vector<40x32xf32>
    %573 = tpu.matmul %572, %7, %cst_403 {dimension_numbers = #tpu.dot_dimension_numbers<[1], [0], [0], [1], [0, 0, 1, 1], [], []>} : vector<40x32xbf16>, vector<32x32xbf16>, vector<40x32xf32> -> vector<40x32xf32>
    %574 = arith.addf %570, %573 : vector<40x32xf32>
    %c168_404 = arith.constant 168 : index
    %c0_405 = arith.constant 0 : index
    %575 = vector.load %arg10[%c168_404, %c0_405] : memref<392x32xf32, #tpu.memory_space<vmem>>, vector<40x32xf32>
    %576 = arith.truncf %575 : vector<40x32xf32> to vector<40x32xbf16>
    %cst_406 = arith.constant dense<0.000000e+00> : vector<40x32xf32>
    %577 = tpu.matmul %576, %9, %cst_406 {dimension_numbers = #tpu.dot_dimension_numbers<[1], [0], [0], [1], [0, 0, 1, 1], [], []>} : vector<40x32xbf16>, vector<32x32xbf16>, vector<40x32xf32> -> vector<40x32xf32>
    %578 = arith.addf %574, %577 : vector<40x32xf32>
    %c176_407 = arith.constant 176 : index
    %c0_408 = arith.constant 0 : index
    %579 = vector.load %arg10[%c176_407, %c0_408] : memref<392x32xf32, #tpu.memory_space<vmem>>, vector<40x32xf32>
    %580 = arith.truncf %579 : vector<40x32xf32> to vector<40x32xbf16>
    %cst_409 = arith.constant dense<0.000000e+00> : vector<40x32xf32>
    %581 = tpu.matmul %580, %11, %cst_409 {dimension_numbers = #tpu.dot_dimension_numbers<[1], [0], [0], [1], [0, 0, 1, 1], [], []>} : vector<40x32xbf16>, vector<32x32xbf16>, vector<40x32xf32> -> vector<40x32xf32>
    %582 = arith.addf %578, %581 : vector<40x32xf32>
    %c184_410 = arith.constant 184 : index
    %c0_411 = arith.constant 0 : index
    %583 = vector.load %arg10[%c184_410, %c0_411] : memref<392x32xf32, #tpu.memory_space<vmem>>, vector<40x32xf32>
    %584 = arith.truncf %583 : vector<40x32xf32> to vector<40x32xbf16>
    %cst_412 = arith.constant dense<0.000000e+00> : vector<40x32xf32>
    %585 = tpu.matmul %584, %13, %cst_412 {dimension_numbers = #tpu.dot_dimension_numbers<[1], [0], [0], [1], [0, 0, 1, 1], [], []>} : vector<40x32xbf16>, vector<32x32xbf16>, vector<40x32xf32> -> vector<40x32xf32>
    %586 = arith.addf %582, %585 : vector<40x32xf32>
    %c224_413 = arith.constant 224 : index
    %c0_414 = arith.constant 0 : index
    %587 = vector.load %arg10[%c224_413, %c0_414] : memref<392x32xf32, #tpu.memory_space<vmem>>, vector<40x32xf32>
    %588 = arith.truncf %587 : vector<40x32xf32> to vector<40x32xbf16>
    %cst_415 = arith.constant dense<0.000000e+00> : vector<40x32xf32>
    %589 = tpu.matmul %588, %15, %cst_415 {dimension_numbers = #tpu.dot_dimension_numbers<[1], [0], [0], [1], [0, 0, 1, 1], [], []>} : vector<40x32xbf16>, vector<32x32xbf16>, vector<40x32xf32> -> vector<40x32xf32>
    %590 = arith.addf %586, %589 : vector<40x32xf32>
    %c232_416 = arith.constant 232 : index
    %c0_417 = arith.constant 0 : index
    %591 = vector.load %arg10[%c232_416, %c0_417] : memref<392x32xf32, #tpu.memory_space<vmem>>, vector<40x32xf32>
    %592 = arith.truncf %591 : vector<40x32xf32> to vector<40x32xbf16>
    %cst_418 = arith.constant dense<0.000000e+00> : vector<40x32xf32>
    %593 = tpu.matmul %592, %17, %cst_418 {dimension_numbers = #tpu.dot_dimension_numbers<[1], [0], [0], [1], [0, 0, 1, 1], [], []>} : vector<40x32xbf16>, vector<32x32xbf16>, vector<40x32xf32> -> vector<40x32xf32>
    %594 = arith.addf %590, %593 : vector<40x32xf32>
    %c240_419 = arith.constant 240 : index
    %c0_420 = arith.constant 0 : index
    %595 = vector.load %arg10[%c240_419, %c0_420] : memref<392x32xf32, #tpu.memory_space<vmem>>, vector<40x32xf32>
    %596 = arith.truncf %595 : vector<40x32xf32> to vector<40x32xbf16>
    %cst_421 = arith.constant dense<0.000000e+00> : vector<40x32xf32>
    %597 = tpu.matmul %596, %19, %cst_421 {dimension_numbers = #tpu.dot_dimension_numbers<[1], [0], [0], [1], [0, 0, 1, 1], [], []>} : vector<40x32xbf16>, vector<32x32xbf16>, vector<40x32xf32> -> vector<40x32xf32>
    %598 = arith.addf %594, %597 : vector<40x32xf32>
    %599 = vector.broadcast %21 : vector<1x32xf32> to vector<40x32xf32>
    %600 = arith.addf %598, %599 : vector<40x32xf32>
    %cst_422 = arith.constant 0.000000e+00 : f32
    %601 = vector.broadcast %cst_422 : f32 to vector<40x32xf32>
    %602 = arith.maximumf %600, %601 : vector<40x32xf32>
    %c20_423 = arith.constant 20 : index
    %c0_424 = arith.constant 0 : index
    %c0_425 = arith.constant 0 : index
    %603 = vector.load %arg3[%c20_423, %c0_424, %c0_425] : memref<37x32x32xbf16, #tpu.memory_space<vmem>>, vector<1x32x32xbf16>
    %604 = vector.shape_cast %603 : vector<1x32x32xbf16> to vector<32x32xbf16>
    %605 = vector.extract_strided_slice %602 {offsets = [0, 0], sizes = [8, 32], strides = [1, 1]} : vector<40x32xf32> to vector<8x32xf32>
    %606 = arith.truncf %605 : vector<8x32xf32> to vector<8x32xbf16>
    %cst_426 = arith.constant dense<0.000000e+00> : vector<8x32xf32>
    %607 = tpu.matmul %606, %604, %cst_426 {dimension_numbers = #tpu.dot_dimension_numbers<[1], [0], [0], [1], [0, 0, 1, 1], [], []>} : vector<8x32xbf16>, vector<32x32xbf16>, vector<8x32xf32> -> vector<8x32xf32>
    %608 = arith.addf %561, %607 : vector<8x32xf32>
    %c21_427 = arith.constant 21 : index
    %c0_428 = arith.constant 0 : index
    %c0_429 = arith.constant 0 : index
    %609 = vector.load %arg3[%c21_427, %c0_428, %c0_429] : memref<37x32x32xbf16, #tpu.memory_space<vmem>>, vector<1x32x32xbf16>
    %610 = vector.shape_cast %609 : vector<1x32x32xbf16> to vector<32x32xbf16>
    %611 = vector.extract_strided_slice %602 {offsets = [8, 0], sizes = [8, 32], strides = [1, 1]} : vector<40x32xf32> to vector<8x32xf32>
    %612 = arith.truncf %611 : vector<8x32xf32> to vector<8x32xbf16>
    %cst_430 = arith.constant dense<0.000000e+00> : vector<8x32xf32>
    %613 = tpu.matmul %612, %610, %cst_430 {dimension_numbers = #tpu.dot_dimension_numbers<[1], [0], [0], [1], [0, 0, 1, 1], [], []>} : vector<8x32xbf16>, vector<32x32xbf16>, vector<8x32xf32> -> vector<8x32xf32>
    %614 = arith.addf %608, %613 : vector<8x32xf32>
    %c22_431 = arith.constant 22 : index
    %c0_432 = arith.constant 0 : index
    %c0_433 = arith.constant 0 : index
    %615 = vector.load %arg3[%c22_431, %c0_432, %c0_433] : memref<37x32x32xbf16, #tpu.memory_space<vmem>>, vector<1x32x32xbf16>
    %616 = vector.shape_cast %615 : vector<1x32x32xbf16> to vector<32x32xbf16>
    %617 = vector.extract_strided_slice %602 {offsets = [16, 0], sizes = [8, 32], strides = [1, 1]} : vector<40x32xf32> to vector<8x32xf32>
    %618 = arith.truncf %617 : vector<8x32xf32> to vector<8x32xbf16>
    %cst_434 = arith.constant dense<0.000000e+00> : vector<8x32xf32>
    %619 = tpu.matmul %618, %616, %cst_434 {dimension_numbers = #tpu.dot_dimension_numbers<[1], [0], [0], [1], [0, 0, 1, 1], [], []>} : vector<8x32xbf16>, vector<32x32xbf16>, vector<8x32xf32> -> vector<8x32xf32>
    %620 = arith.addf %614, %619 : vector<8x32xf32>
    %c23_435 = arith.constant 23 : index
    %c0_436 = arith.constant 0 : index
    %c0_437 = arith.constant 0 : index
    %621 = vector.load %arg3[%c23_435, %c0_436, %c0_437] : memref<37x32x32xbf16, #tpu.memory_space<vmem>>, vector<1x32x32xbf16>
    %622 = vector.shape_cast %621 : vector<1x32x32xbf16> to vector<32x32xbf16>
    %623 = vector.extract_strided_slice %602 {offsets = [24, 0], sizes = [8, 32], strides = [1, 1]} : vector<40x32xf32> to vector<8x32xf32>
    %624 = arith.truncf %623 : vector<8x32xf32> to vector<8x32xbf16>
    %cst_438 = arith.constant dense<0.000000e+00> : vector<8x32xf32>
    %625 = tpu.matmul %624, %622, %cst_438 {dimension_numbers = #tpu.dot_dimension_numbers<[1], [0], [0], [1], [0, 0, 1, 1], [], []>} : vector<8x32xbf16>, vector<32x32xbf16>, vector<8x32xf32> -> vector<8x32xf32>
    %626 = arith.addf %620, %625 : vector<8x32xf32>
    %c24_439 = arith.constant 24 : index
    %c0_440 = arith.constant 0 : index
    %c0_441 = arith.constant 0 : index
    %627 = vector.load %arg3[%c24_439, %c0_440, %c0_441] : memref<37x32x32xbf16, #tpu.memory_space<vmem>>, vector<1x32x32xbf16>
    %628 = vector.shape_cast %627 : vector<1x32x32xbf16> to vector<32x32xbf16>
    %629 = vector.extract_strided_slice %602 {offsets = [32, 0], sizes = [8, 32], strides = [1, 1]} : vector<40x32xf32> to vector<8x32xf32>
    %630 = arith.truncf %629 : vector<8x32xf32> to vector<8x32xbf16>
    %cst_442 = arith.constant dense<0.000000e+00> : vector<8x32xf32>
    %631 = tpu.matmul %630, %628, %cst_442 {dimension_numbers = #tpu.dot_dimension_numbers<[1], [0], [0], [1], [0, 0, 1, 1], [], []>} : vector<8x32xbf16>, vector<32x32xbf16>, vector<8x32xf32> -> vector<8x32xf32>
    %632 = arith.addf %626, %631 : vector<8x32xf32>
    %cst_443 = arith.constant 0.000000e+00 : f32
    %633 = vector.broadcast %cst_443 : f32 to vector<40x32xf32>
    %c168_444 = arith.constant 168 : index
    %c0_445 = arith.constant 0 : index
    %634 = vector.load %arg10[%c168_444, %c0_445] : memref<392x32xf32, #tpu.memory_space<vmem>>, vector<40x32xf32>
    %635 = arith.truncf %634 : vector<40x32xf32> to vector<40x32xbf16>
    %cst_446 = arith.constant dense<0.000000e+00> : vector<40x32xf32>
    %636 = tpu.matmul %635, %3, %cst_446 {dimension_numbers = #tpu.dot_dimension_numbers<[1], [0], [0], [1], [0, 0, 1, 1], [], []>} : vector<40x32xbf16>, vector<32x32xbf16>, vector<40x32xf32> -> vector<40x32xf32>
    %637 = arith.addf %633, %636 : vector<40x32xf32>
    %c176_447 = arith.constant 176 : index
    %c0_448 = arith.constant 0 : index
    %638 = vector.load %arg10[%c176_447, %c0_448] : memref<392x32xf32, #tpu.memory_space<vmem>>, vector<40x32xf32>
    %639 = arith.truncf %638 : vector<40x32xf32> to vector<40x32xbf16>
    %cst_449 = arith.constant dense<0.000000e+00> : vector<40x32xf32>
    %640 = tpu.matmul %639, %5, %cst_449 {dimension_numbers = #tpu.dot_dimension_numbers<[1], [0], [0], [1], [0, 0, 1, 1], [], []>} : vector<40x32xbf16>, vector<32x32xbf16>, vector<40x32xf32> -> vector<40x32xf32>
    %641 = arith.addf %637, %640 : vector<40x32xf32>
    %c184_450 = arith.constant 184 : index
    %c0_451 = arith.constant 0 : index
    %642 = vector.load %arg10[%c184_450, %c0_451] : memref<392x32xf32, #tpu.memory_space<vmem>>, vector<40x32xf32>
    %643 = arith.truncf %642 : vector<40x32xf32> to vector<40x32xbf16>
    %cst_452 = arith.constant dense<0.000000e+00> : vector<40x32xf32>
    %644 = tpu.matmul %643, %7, %cst_452 {dimension_numbers = #tpu.dot_dimension_numbers<[1], [0], [0], [1], [0, 0, 1, 1], [], []>} : vector<40x32xbf16>, vector<32x32xbf16>, vector<40x32xf32> -> vector<40x32xf32>
    %645 = arith.addf %641, %644 : vector<40x32xf32>
    %c224_453 = arith.constant 224 : index
    %c0_454 = arith.constant 0 : index
    %646 = vector.load %arg10[%c224_453, %c0_454] : memref<392x32xf32, #tpu.memory_space<vmem>>, vector<40x32xf32>
    %647 = arith.truncf %646 : vector<40x32xf32> to vector<40x32xbf16>
    %cst_455 = arith.constant dense<0.000000e+00> : vector<40x32xf32>
    %648 = tpu.matmul %647, %9, %cst_455 {dimension_numbers = #tpu.dot_dimension_numbers<[1], [0], [0], [1], [0, 0, 1, 1], [], []>} : vector<40x32xbf16>, vector<32x32xbf16>, vector<40x32xf32> -> vector<40x32xf32>
    %649 = arith.addf %645, %648 : vector<40x32xf32>
    %c232_456 = arith.constant 232 : index
    %c0_457 = arith.constant 0 : index
    %650 = vector.load %arg10[%c232_456, %c0_457] : memref<392x32xf32, #tpu.memory_space<vmem>>, vector<40x32xf32>
    %651 = arith.truncf %650 : vector<40x32xf32> to vector<40x32xbf16>
    %cst_458 = arith.constant dense<0.000000e+00> : vector<40x32xf32>
    %652 = tpu.matmul %651, %11, %cst_458 {dimension_numbers = #tpu.dot_dimension_numbers<[1], [0], [0], [1], [0, 0, 1, 1], [], []>} : vector<40x32xbf16>, vector<32x32xbf16>, vector<40x32xf32> -> vector<40x32xf32>
    %653 = arith.addf %649, %652 : vector<40x32xf32>
    %c240_459 = arith.constant 240 : index
    %c0_460 = arith.constant 0 : index
    %654 = vector.load %arg10[%c240_459, %c0_460] : memref<392x32xf32, #tpu.memory_space<vmem>>, vector<40x32xf32>
    %655 = arith.truncf %654 : vector<40x32xf32> to vector<40x32xbf16>
    %cst_461 = arith.constant dense<0.000000e+00> : vector<40x32xf32>
    %656 = tpu.matmul %655, %13, %cst_461 {dimension_numbers = #tpu.dot_dimension_numbers<[1], [0], [0], [1], [0, 0, 1, 1], [], []>} : vector<40x32xbf16>, vector<32x32xbf16>, vector<40x32xf32> -> vector<40x32xf32>
    %657 = arith.addf %653, %656 : vector<40x32xf32>
    %c280_462 = arith.constant 280 : index
    %c0_463 = arith.constant 0 : index
    %658 = vector.load %arg10[%c280_462, %c0_463] : memref<392x32xf32, #tpu.memory_space<vmem>>, vector<40x32xf32>
    %659 = arith.truncf %658 : vector<40x32xf32> to vector<40x32xbf16>
    %cst_464 = arith.constant dense<0.000000e+00> : vector<40x32xf32>
    %660 = tpu.matmul %659, %15, %cst_464 {dimension_numbers = #tpu.dot_dimension_numbers<[1], [0], [0], [1], [0, 0, 1, 1], [], []>} : vector<40x32xbf16>, vector<32x32xbf16>, vector<40x32xf32> -> vector<40x32xf32>
    %661 = arith.addf %657, %660 : vector<40x32xf32>
    %c288_465 = arith.constant 288 : index
    %c0_466 = arith.constant 0 : index
    %662 = vector.load %arg10[%c288_465, %c0_466] : memref<392x32xf32, #tpu.memory_space<vmem>>, vector<40x32xf32>
    %663 = arith.truncf %662 : vector<40x32xf32> to vector<40x32xbf16>
    %cst_467 = arith.constant dense<0.000000e+00> : vector<40x32xf32>
    %664 = tpu.matmul %663, %17, %cst_467 {dimension_numbers = #tpu.dot_dimension_numbers<[1], [0], [0], [1], [0, 0, 1, 1], [], []>} : vector<40x32xbf16>, vector<32x32xbf16>, vector<40x32xf32> -> vector<40x32xf32>
    %665 = arith.addf %661, %664 : vector<40x32xf32>
    %c296_468 = arith.constant 296 : index
    %c0_469 = arith.constant 0 : index
    %666 = vector.load %arg10[%c296_468, %c0_469] : memref<392x32xf32, #tpu.memory_space<vmem>>, vector<40x32xf32>
    %667 = arith.truncf %666 : vector<40x32xf32> to vector<40x32xbf16>
    %cst_470 = arith.constant dense<0.000000e+00> : vector<40x32xf32>
    %668 = tpu.matmul %667, %19, %cst_470 {dimension_numbers = #tpu.dot_dimension_numbers<[1], [0], [0], [1], [0, 0, 1, 1], [], []>} : vector<40x32xbf16>, vector<32x32xbf16>, vector<40x32xf32> -> vector<40x32xf32>
    %669 = arith.addf %665, %668 : vector<40x32xf32>
    %670 = vector.broadcast %21 : vector<1x32xf32> to vector<40x32xf32>
    %671 = arith.addf %669, %670 : vector<40x32xf32>
    %cst_471 = arith.constant 0.000000e+00 : f32
    %672 = vector.broadcast %cst_471 : f32 to vector<40x32xf32>
    %673 = arith.maximumf %671, %672 : vector<40x32xf32>
    %c25_472 = arith.constant 25 : index
    %c0_473 = arith.constant 0 : index
    %c0_474 = arith.constant 0 : index
    %674 = vector.load %arg3[%c25_472, %c0_473, %c0_474] : memref<37x32x32xbf16, #tpu.memory_space<vmem>>, vector<1x32x32xbf16>
    %675 = vector.shape_cast %674 : vector<1x32x32xbf16> to vector<32x32xbf16>
    %676 = vector.extract_strided_slice %673 {offsets = [0, 0], sizes = [8, 32], strides = [1, 1]} : vector<40x32xf32> to vector<8x32xf32>
    %677 = arith.truncf %676 : vector<8x32xf32> to vector<8x32xbf16>
    %cst_475 = arith.constant dense<0.000000e+00> : vector<8x32xf32>
    %678 = tpu.matmul %677, %675, %cst_475 {dimension_numbers = #tpu.dot_dimension_numbers<[1], [0], [0], [1], [0, 0, 1, 1], [], []>} : vector<8x32xbf16>, vector<32x32xbf16>, vector<8x32xf32> -> vector<8x32xf32>
    %679 = arith.addf %632, %678 : vector<8x32xf32>
    %c26_476 = arith.constant 26 : index
    %c0_477 = arith.constant 0 : index
    %c0_478 = arith.constant 0 : index
    %680 = vector.load %arg3[%c26_476, %c0_477, %c0_478] : memref<37x32x32xbf16, #tpu.memory_space<vmem>>, vector<1x32x32xbf16>
    %681 = vector.shape_cast %680 : vector<1x32x32xbf16> to vector<32x32xbf16>
    %682 = vector.extract_strided_slice %673 {offsets = [8, 0], sizes = [8, 32], strides = [1, 1]} : vector<40x32xf32> to vector<8x32xf32>
    %683 = arith.truncf %682 : vector<8x32xf32> to vector<8x32xbf16>
    %cst_479 = arith.constant dense<0.000000e+00> : vector<8x32xf32>
    %684 = tpu.matmul %683, %681, %cst_479 {dimension_numbers = #tpu.dot_dimension_numbers<[1], [0], [0], [1], [0, 0, 1, 1], [], []>} : vector<8x32xbf16>, vector<32x32xbf16>, vector<8x32xf32> -> vector<8x32xf32>
    %685 = arith.addf %679, %684 : vector<8x32xf32>
    %c27_480 = arith.constant 27 : index
    %c0_481 = arith.constant 0 : index
    %c0_482 = arith.constant 0 : index
    %686 = vector.load %arg3[%c27_480, %c0_481, %c0_482] : memref<37x32x32xbf16, #tpu.memory_space<vmem>>, vector<1x32x32xbf16>
    %687 = vector.shape_cast %686 : vector<1x32x32xbf16> to vector<32x32xbf16>
    %688 = vector.extract_strided_slice %673 {offsets = [16, 0], sizes = [8, 32], strides = [1, 1]} : vector<40x32xf32> to vector<8x32xf32>
    %689 = arith.truncf %688 : vector<8x32xf32> to vector<8x32xbf16>
    %cst_483 = arith.constant dense<0.000000e+00> : vector<8x32xf32>
    %690 = tpu.matmul %689, %687, %cst_483 {dimension_numbers = #tpu.dot_dimension_numbers<[1], [0], [0], [1], [0, 0, 1, 1], [], []>} : vector<8x32xbf16>, vector<32x32xbf16>, vector<8x32xf32> -> vector<8x32xf32>
    %691 = arith.addf %685, %690 : vector<8x32xf32>
    %c28_484 = arith.constant 28 : index
    %c0_485 = arith.constant 0 : index
    %c0_486 = arith.constant 0 : index
    %692 = vector.load %arg3[%c28_484, %c0_485, %c0_486] : memref<37x32x32xbf16, #tpu.memory_space<vmem>>, vector<1x32x32xbf16>
    %693 = vector.shape_cast %692 : vector<1x32x32xbf16> to vector<32x32xbf16>
    %694 = vector.extract_strided_slice %673 {offsets = [24, 0], sizes = [8, 32], strides = [1, 1]} : vector<40x32xf32> to vector<8x32xf32>
    %695 = arith.truncf %694 : vector<8x32xf32> to vector<8x32xbf16>
    %cst_487 = arith.constant dense<0.000000e+00> : vector<8x32xf32>
    %696 = tpu.matmul %695, %693, %cst_487 {dimension_numbers = #tpu.dot_dimension_numbers<[1], [0], [0], [1], [0, 0, 1, 1], [], []>} : vector<8x32xbf16>, vector<32x32xbf16>, vector<8x32xf32> -> vector<8x32xf32>
    %697 = arith.addf %691, %696 : vector<8x32xf32>
    %c29_488 = arith.constant 29 : index
    %c0_489 = arith.constant 0 : index
    %c0_490 = arith.constant 0 : index
    %698 = vector.load %arg3[%c29_488, %c0_489, %c0_490] : memref<37x32x32xbf16, #tpu.memory_space<vmem>>, vector<1x32x32xbf16>
    %699 = vector.shape_cast %698 : vector<1x32x32xbf16> to vector<32x32xbf16>
    %700 = vector.extract_strided_slice %673 {offsets = [32, 0], sizes = [8, 32], strides = [1, 1]} : vector<40x32xf32> to vector<8x32xf32>
    %701 = arith.truncf %700 : vector<8x32xf32> to vector<8x32xbf16>
    %cst_491 = arith.constant dense<0.000000e+00> : vector<8x32xf32>
    %702 = tpu.matmul %701, %699, %cst_491 {dimension_numbers = #tpu.dot_dimension_numbers<[1], [0], [0], [1], [0, 0, 1, 1], [], []>} : vector<8x32xbf16>, vector<32x32xbf16>, vector<8x32xf32> -> vector<8x32xf32>
    %703 = arith.addf %697, %702 : vector<8x32xf32>
    %cst_492 = arith.constant 0.000000e+00 : f32
    %704 = vector.broadcast %cst_492 : f32 to vector<40x32xf32>
    %c224_493 = arith.constant 224 : index
    %c0_494 = arith.constant 0 : index
    %705 = vector.load %arg10[%c224_493, %c0_494] : memref<392x32xf32, #tpu.memory_space<vmem>>, vector<40x32xf32>
    %706 = arith.truncf %705 : vector<40x32xf32> to vector<40x32xbf16>
    %cst_495 = arith.constant dense<0.000000e+00> : vector<40x32xf32>
    %707 = tpu.matmul %706, %3, %cst_495 {dimension_numbers = #tpu.dot_dimension_numbers<[1], [0], [0], [1], [0, 0, 1, 1], [], []>} : vector<40x32xbf16>, vector<32x32xbf16>, vector<40x32xf32> -> vector<40x32xf32>
    %708 = arith.addf %704, %707 : vector<40x32xf32>
    %c232_496 = arith.constant 232 : index
    %c0_497 = arith.constant 0 : index
    %709 = vector.load %arg10[%c232_496, %c0_497] : memref<392x32xf32, #tpu.memory_space<vmem>>, vector<40x32xf32>
    %710 = arith.truncf %709 : vector<40x32xf32> to vector<40x32xbf16>
    %cst_498 = arith.constant dense<0.000000e+00> : vector<40x32xf32>
    %711 = tpu.matmul %710, %5, %cst_498 {dimension_numbers = #tpu.dot_dimension_numbers<[1], [0], [0], [1], [0, 0, 1, 1], [], []>} : vector<40x32xbf16>, vector<32x32xbf16>, vector<40x32xf32> -> vector<40x32xf32>
    %712 = arith.addf %708, %711 : vector<40x32xf32>
    %c240_499 = arith.constant 240 : index
    %c0_500 = arith.constant 0 : index
    %713 = vector.load %arg10[%c240_499, %c0_500] : memref<392x32xf32, #tpu.memory_space<vmem>>, vector<40x32xf32>
    %714 = arith.truncf %713 : vector<40x32xf32> to vector<40x32xbf16>
    %cst_501 = arith.constant dense<0.000000e+00> : vector<40x32xf32>
    %715 = tpu.matmul %714, %7, %cst_501 {dimension_numbers = #tpu.dot_dimension_numbers<[1], [0], [0], [1], [0, 0, 1, 1], [], []>} : vector<40x32xbf16>, vector<32x32xbf16>, vector<40x32xf32> -> vector<40x32xf32>
    %716 = arith.addf %712, %715 : vector<40x32xf32>
    %c280_502 = arith.constant 280 : index
    %c0_503 = arith.constant 0 : index
    %717 = vector.load %arg10[%c280_502, %c0_503] : memref<392x32xf32, #tpu.memory_space<vmem>>, vector<40x32xf32>
    %718 = arith.truncf %717 : vector<40x32xf32> to vector<40x32xbf16>
    %cst_504 = arith.constant dense<0.000000e+00> : vector<40x32xf32>
    %719 = tpu.matmul %718, %9, %cst_504 {dimension_numbers = #tpu.dot_dimension_numbers<[1], [0], [0], [1], [0, 0, 1, 1], [], []>} : vector<40x32xbf16>, vector<32x32xbf16>, vector<40x32xf32> -> vector<40x32xf32>
    %720 = arith.addf %716, %719 : vector<40x32xf32>
    %c288_505 = arith.constant 288 : index
    %c0_506 = arith.constant 0 : index
    %721 = vector.load %arg10[%c288_505, %c0_506] : memref<392x32xf32, #tpu.memory_space<vmem>>, vector<40x32xf32>
    %722 = arith.truncf %721 : vector<40x32xf32> to vector<40x32xbf16>
    %cst_507 = arith.constant dense<0.000000e+00> : vector<40x32xf32>
    %723 = tpu.matmul %722, %11, %cst_507 {dimension_numbers = #tpu.dot_dimension_numbers<[1], [0], [0], [1], [0, 0, 1, 1], [], []>} : vector<40x32xbf16>, vector<32x32xbf16>, vector<40x32xf32> -> vector<40x32xf32>
    %724 = arith.addf %720, %723 : vector<40x32xf32>
    %c296_508 = arith.constant 296 : index
    %c0_509 = arith.constant 0 : index
    %725 = vector.load %arg10[%c296_508, %c0_509] : memref<392x32xf32, #tpu.memory_space<vmem>>, vector<40x32xf32>
    %726 = arith.truncf %725 : vector<40x32xf32> to vector<40x32xbf16>
    %cst_510 = arith.constant dense<0.000000e+00> : vector<40x32xf32>
    %727 = tpu.matmul %726, %13, %cst_510 {dimension_numbers = #tpu.dot_dimension_numbers<[1], [0], [0], [1], [0, 0, 1, 1], [], []>} : vector<40x32xbf16>, vector<32x32xbf16>, vector<40x32xf32> -> vector<40x32xf32>
    %728 = arith.addf %724, %727 : vector<40x32xf32>
    %c336_511 = arith.constant 336 : index
    %c0_512 = arith.constant 0 : index
    %729 = vector.load %arg10[%c336_511, %c0_512] : memref<392x32xf32, #tpu.memory_space<vmem>>, vector<40x32xf32>
    %730 = arith.truncf %729 : vector<40x32xf32> to vector<40x32xbf16>
    %cst_513 = arith.constant dense<0.000000e+00> : vector<40x32xf32>
    %731 = tpu.matmul %730, %15, %cst_513 {dimension_numbers = #tpu.dot_dimension_numbers<[1], [0], [0], [1], [0, 0, 1, 1], [], []>} : vector<40x32xbf16>, vector<32x32xbf16>, vector<40x32xf32> -> vector<40x32xf32>
    %732 = arith.addf %728, %731 : vector<40x32xf32>
    %c344_514 = arith.constant 344 : index
    %c0_515 = arith.constant 0 : index
    %733 = vector.load %arg10[%c344_514, %c0_515] : memref<392x32xf32, #tpu.memory_space<vmem>>, vector<40x32xf32>
    %734 = arith.truncf %733 : vector<40x32xf32> to vector<40x32xbf16>
    %cst_516 = arith.constant dense<0.000000e+00> : vector<40x32xf32>
    %735 = tpu.matmul %734, %17, %cst_516 {dimension_numbers = #tpu.dot_dimension_numbers<[1], [0], [0], [1], [0, 0, 1, 1], [], []>} : vector<40x32xbf16>, vector<32x32xbf16>, vector<40x32xf32> -> vector<40x32xf32>
    %736 = arith.addf %732, %735 : vector<40x32xf32>
    %c352_517 = arith.constant 352 : index
    %c0_518 = arith.constant 0 : index
    %737 = vector.load %arg10[%c352_517, %c0_518] : memref<392x32xf32, #tpu.memory_space<vmem>>, vector<40x32xf32>
    %738 = arith.truncf %737 : vector<40x32xf32> to vector<40x32xbf16>
    %cst_519 = arith.constant dense<0.000000e+00> : vector<40x32xf32>
    %739 = tpu.matmul %738, %19, %cst_519 {dimension_numbers = #tpu.dot_dimension_numbers<[1], [0], [0], [1], [0, 0, 1, 1], [], []>} : vector<40x32xbf16>, vector<32x32xbf16>, vector<40x32xf32> -> vector<40x32xf32>
    %740 = arith.addf %736, %739 : vector<40x32xf32>
    %741 = vector.broadcast %21 : vector<1x32xf32> to vector<40x32xf32>
    %742 = arith.addf %740, %741 : vector<40x32xf32>
    %cst_520 = arith.constant 0.000000e+00 : f32
    %743 = vector.broadcast %cst_520 : f32 to vector<40x32xf32>
    %744 = arith.maximumf %742, %743 : vector<40x32xf32>
    %c30_521 = arith.constant 30 : index
    %c0_522 = arith.constant 0 : index
    %c0_523 = arith.constant 0 : index
    %745 = vector.load %arg3[%c30_521, %c0_522, %c0_523] : memref<37x32x32xbf16, #tpu.memory_space<vmem>>, vector<1x32x32xbf16>
    %746 = vector.shape_cast %745 : vector<1x32x32xbf16> to vector<32x32xbf16>
    %747 = vector.extract_strided_slice %744 {offsets = [0, 0], sizes = [8, 32], strides = [1, 1]} : vector<40x32xf32> to vector<8x32xf32>
    %748 = arith.truncf %747 : vector<8x32xf32> to vector<8x32xbf16>
    %cst_524 = arith.constant dense<0.000000e+00> : vector<8x32xf32>
    %749 = tpu.matmul %748, %746, %cst_524 {dimension_numbers = #tpu.dot_dimension_numbers<[1], [0], [0], [1], [0, 0, 1, 1], [], []>} : vector<8x32xbf16>, vector<32x32xbf16>, vector<8x32xf32> -> vector<8x32xf32>
    %750 = arith.addf %703, %749 : vector<8x32xf32>
    %c31_525 = arith.constant 31 : index
    %c0_526 = arith.constant 0 : index
    %c0_527 = arith.constant 0 : index
    %751 = vector.load %arg3[%c31_525, %c0_526, %c0_527] : memref<37x32x32xbf16, #tpu.memory_space<vmem>>, vector<1x32x32xbf16>
    %752 = vector.shape_cast %751 : vector<1x32x32xbf16> to vector<32x32xbf16>
    %753 = vector.extract_strided_slice %744 {offsets = [8, 0], sizes = [8, 32], strides = [1, 1]} : vector<40x32xf32> to vector<8x32xf32>
    %754 = arith.truncf %753 : vector<8x32xf32> to vector<8x32xbf16>
    %cst_528 = arith.constant dense<0.000000e+00> : vector<8x32xf32>
    %755 = tpu.matmul %754, %752, %cst_528 {dimension_numbers = #tpu.dot_dimension_numbers<[1], [0], [0], [1], [0, 0, 1, 1], [], []>} : vector<8x32xbf16>, vector<32x32xbf16>, vector<8x32xf32> -> vector<8x32xf32>
    %756 = arith.addf %750, %755 : vector<8x32xf32>
    %c32_529 = arith.constant 32 : index
    %c0_530 = arith.constant 0 : index
    %c0_531 = arith.constant 0 : index
    %757 = vector.load %arg3[%c32_529, %c0_530, %c0_531] : memref<37x32x32xbf16, #tpu.memory_space<vmem>>, vector<1x32x32xbf16>
    %758 = vector.shape_cast %757 : vector<1x32x32xbf16> to vector<32x32xbf16>
    %759 = vector.extract_strided_slice %744 {offsets = [16, 0], sizes = [8, 32], strides = [1, 1]} : vector<40x32xf32> to vector<8x32xf32>
    %760 = arith.truncf %759 : vector<8x32xf32> to vector<8x32xbf16>
    %cst_532 = arith.constant dense<0.000000e+00> : vector<8x32xf32>
    %761 = tpu.matmul %760, %758, %cst_532 {dimension_numbers = #tpu.dot_dimension_numbers<[1], [0], [0], [1], [0, 0, 1, 1], [], []>} : vector<8x32xbf16>, vector<32x32xbf16>, vector<8x32xf32> -> vector<8x32xf32>
    %762 = arith.addf %756, %761 : vector<8x32xf32>
    %c33_533 = arith.constant 33 : index
    %c0_534 = arith.constant 0 : index
    %c0_535 = arith.constant 0 : index
    %763 = vector.load %arg3[%c33_533, %c0_534, %c0_535] : memref<37x32x32xbf16, #tpu.memory_space<vmem>>, vector<1x32x32xbf16>
    %764 = vector.shape_cast %763 : vector<1x32x32xbf16> to vector<32x32xbf16>
    %765 = vector.extract_strided_slice %744 {offsets = [24, 0], sizes = [8, 32], strides = [1, 1]} : vector<40x32xf32> to vector<8x32xf32>
    %766 = arith.truncf %765 : vector<8x32xf32> to vector<8x32xbf16>
    %cst_536 = arith.constant dense<0.000000e+00> : vector<8x32xf32>
    %767 = tpu.matmul %766, %764, %cst_536 {dimension_numbers = #tpu.dot_dimension_numbers<[1], [0], [0], [1], [0, 0, 1, 1], [], []>} : vector<8x32xbf16>, vector<32x32xbf16>, vector<8x32xf32> -> vector<8x32xf32>
    %768 = arith.addf %762, %767 : vector<8x32xf32>
    %c34_537 = arith.constant 34 : index
    %c0_538 = arith.constant 0 : index
    %c0_539 = arith.constant 0 : index
    %769 = vector.load %arg3[%c34_537, %c0_538, %c0_539] : memref<37x32x32xbf16, #tpu.memory_space<vmem>>, vector<1x32x32xbf16>
    %770 = vector.shape_cast %769 : vector<1x32x32xbf16> to vector<32x32xbf16>
    %771 = vector.extract_strided_slice %744 {offsets = [32, 0], sizes = [8, 32], strides = [1, 1]} : vector<40x32xf32> to vector<8x32xf32>
    %772 = arith.truncf %771 : vector<8x32xf32> to vector<8x32xbf16>
    %cst_540 = arith.constant dense<0.000000e+00> : vector<8x32xf32>
    %773 = tpu.matmul %772, %770, %cst_540 {dimension_numbers = #tpu.dot_dimension_numbers<[1], [0], [0], [1], [0, 0, 1, 1], [], []>} : vector<8x32xbf16>, vector<32x32xbf16>, vector<8x32xf32> -> vector<8x32xf32>
    %774 = arith.addf %768, %773 : vector<8x32xf32>
    %775 = vector.broadcast %22 : vector<1x32xf32> to vector<8x32xf32>
    %776 = arith.addf %774, %775 : vector<8x32xf32>
    %cst_541 = arith.constant dense<0.000000e+00> : vector<8xf32>
    %777 = vector.multi_reduction <add>, %776, %cst_541 [1] : vector<8x32xf32> to vector<8xf32>
    %778 = vector.shape_cast %777 : vector<8xf32> to vector<8x1xf32>
    %cst_542 = arith.constant 3.200000e+01 : f32
    %779 = vector.broadcast %cst_542 : f32 to vector<8x1xf32>
    %780 = arith.divf %778, %779 : vector<8x1xf32>
    %781 = vector.broadcast %780 : vector<8x1xf32> to vector<8x32xf32>
    %782 = arith.subf %776, %781 : vector<8x32xf32>
    %783 = arith.mulf %782, %782 : vector<8x32xf32>
    %cst_543 = arith.constant dense<0.000000e+00> : vector<8xf32>
    %784 = vector.multi_reduction <add>, %783, %cst_543 [1] : vector<8x32xf32> to vector<8xf32>
    %785 = vector.shape_cast %784 : vector<8xf32> to vector<8x1xf32>
    %cst_544 = arith.constant 3.200000e+01 : f32
    %786 = vector.broadcast %cst_544 : f32 to vector<8x1xf32>
    %787 = arith.divf %785, %786 : vector<8x1xf32>
    %788 = vector.broadcast %780 : vector<8x1xf32> to vector<8x32xf32>
    %789 = arith.subf %776, %788 : vector<8x32xf32>
    %cst_545 = arith.constant 9.99999974E-6 : f32
    %790 = vector.broadcast %cst_545 : f32 to vector<8x1xf32>
    %791 = arith.addf %787, %790 : vector<8x1xf32>
    %792 = math.rsqrt %791 : vector<8x1xf32>
    %793 = vector.broadcast %792 : vector<8x1xf32> to vector<8x32xf32>
    %794 = arith.mulf %789, %793 : vector<8x32xf32>
    %795 = vector.broadcast %23 : vector<1x32xf32> to vector<8x32xf32>
    %796 = arith.mulf %794, %795 : vector<8x32xf32>
    %797 = vector.broadcast %24 : vector<1x32xf32> to vector<8x32xf32>
    %798 = arith.addf %796, %797 : vector<8x32xf32>
    %799 = math.tanh %798 : vector<8x32xf32>
    %c0_546 = arith.constant 0 : index
    %c0_547 = arith.constant 0 : index
    %800 = vector.load %arg2[%c0_546, %c0_547] : memref<8x32xbf16, #tpu.memory_space<vmem>>, vector<8x32xbf16>
    %c35_548 = arith.constant 35 : index
    %c0_549 = arith.constant 0 : index
    %c0_550 = arith.constant 0 : index
    %801 = vector.load %arg3[%c35_548, %c0_549, %c0_550] : memref<37x32x32xbf16, #tpu.memory_space<vmem>>, vector<1x32x32xbf16>
    %802 = vector.shape_cast %801 : vector<1x32x32xbf16> to vector<32x32xbf16>
    %cst_551 = arith.constant dense<0.000000e+00> : vector<8x32xf32>
    %803 = tpu.matmul %800, %802, %cst_551 {dimension_numbers = #tpu.dot_dimension_numbers<[1], [0], [0], [1], [0, 0, 1, 1], [], []>} : vector<8x32xbf16>, vector<32x32xbf16>, vector<8x32xf32> -> vector<8x32xf32>
    %804 = vector.broadcast %25 : vector<1x32xf32> to vector<8x32xf32>
    %805 = arith.addf %803, %804 : vector<8x32xf32>
    %806 = math.tanh %805 : vector<8x32xf32>
    %807 = arith.truncf %806 : vector<8x32xf32> to vector<8x32xbf16>
    %c36_552 = arith.constant 36 : index
    %c0_553 = arith.constant 0 : index
    %c0_554 = arith.constant 0 : index
    %808 = vector.load %arg3[%c36_552, %c0_553, %c0_554] : memref<37x32x32xbf16, #tpu.memory_space<vmem>>, vector<1x32x32xbf16>
    %809 = vector.shape_cast %808 : vector<1x32x32xbf16> to vector<32x32xbf16>
    %cst_555 = arith.constant dense<0.000000e+00> : vector<8x32xf32>
    %810 = tpu.matmul %807, %809, %cst_555 {dimension_numbers = #tpu.dot_dimension_numbers<[1], [0], [0], [1], [0, 0, 1, 1], [], []>} : vector<8x32xbf16>, vector<32x32xbf16>, vector<8x32xf32> -> vector<8x32xf32>
    %811 = vector.broadcast %26 : vector<1x32xf32> to vector<8x32xf32>
    %812 = arith.addf %810, %811 : vector<8x32xf32>
    %813 = math.tanh %812 : vector<8x32xf32>
    %814 = arith.truncf %799 : vector<8x32xf32> to vector<8x32xbf16>
    %c0_556 = arith.constant 0 : index
    %c0_557 = arith.constant 0 : index
    %c0_558 = arith.constant 0 : index
    %815 = vector.load %arg5[%c0_556, %c0_557, %c0_558] : memref<2x32x64xbf16, #tpu.memory_space<vmem>>, vector<1x32x64xbf16>
    %816 = vector.shape_cast %815 : vector<1x32x64xbf16> to vector<32x64xbf16>
    %cst_559 = arith.constant dense<0.000000e+00> : vector<8x64xf32>
    %817 = tpu.matmul %814, %816, %cst_559 {dimension_numbers = #tpu.dot_dimension_numbers<[1], [0], [0], [1], [0, 0, 1, 1], [], []>} : vector<8x32xbf16>, vector<32x64xbf16>, vector<8x64xf32> -> vector<8x64xf32>
    %818 = arith.truncf %813 : vector<8x32xf32> to vector<8x32xbf16>
    %c1_560 = arith.constant 1 : index
    %c0_561 = arith.constant 0 : index
    %c0_562 = arith.constant 0 : index
    %819 = vector.load %arg5[%c1_560, %c0_561, %c0_562] : memref<2x32x64xbf16, #tpu.memory_space<vmem>>, vector<1x32x64xbf16>
    %820 = vector.shape_cast %819 : vector<1x32x64xbf16> to vector<32x64xbf16>
    %cst_563 = arith.constant dense<0.000000e+00> : vector<8x64xf32>
    %821 = tpu.matmul %818, %820, %cst_563 {dimension_numbers = #tpu.dot_dimension_numbers<[1], [0], [0], [1], [0, 0, 1, 1], [], []>} : vector<8x32xbf16>, vector<32x64xbf16>, vector<8x64xf32> -> vector<8x64xf32>
    %822 = arith.addf %817, %821 : vector<8x64xf32>
    %c0_564 = arith.constant 0 : index
    %c0_565 = arith.constant 0 : index
    %823 = vector.load %arg6[%c0_564, %c0_565] : memref<1x64xf32, #tpu.memory_space<vmem>>, vector<1x64xf32>
    %824 = vector.broadcast %823 : vector<1x64xf32> to vector<8x64xf32>
    %825 = arith.addf %822, %824 : vector<8x64xf32>
    %826 = math.tanh %825 : vector<8x64xf32>
    %827 = arith.truncf %826 : vector<8x64xf32> to vector<8x64xbf16>
    %c0_566 = arith.constant 0 : index
    %c0_567 = arith.constant 0 : index
    %828 = vector.load %arg7[%c0_566, %c0_567] : memref<64x2xbf16, #tpu.memory_space<vmem>>, vector<64x2xbf16>
    %cst_568 = arith.constant dense<0.000000e+00> : vector<8x2xf32>
    %829 = tpu.matmul %827, %828, %cst_568 {dimension_numbers = #tpu.dot_dimension_numbers<[1], [0], [0], [1], [0, 0, 1, 1], [], []>} : vector<8x64xbf16>, vector<64x2xbf16>, vector<8x2xf32> -> vector<8x2xf32>
    %c0_569 = arith.constant 0 : index
    %c0_570 = arith.constant 0 : index
    %830 = vector.load %arg8[%c0_569, %c0_570] : memref<1x2xf32, #tpu.memory_space<vmem>>, vector<1x2xf32>
    %831 = vector.broadcast %830 : vector<1x2xf32> to vector<8x2xf32>
    %832 = arith.addf %829, %831 : vector<8x2xf32>
    %c0_571 = arith.constant 0 : index
    %c0_572 = arith.constant 0 : index
    %833 = vector.load %arg9[%c0_571, %c0_572] : memref<8x2xf32, #tpu.memory_space<vmem>>, vector<8x2xf32>
    tpu.vector_store %arg9[%c0_571, %c0_572], %832 {strides = array<i32>} : memref<8x2xf32, #tpu.memory_space<vmem>>, vector<8x2xf32>,
    return
  }
  func.func @transform_0(%arg0: i32) -> (i32, i32, i32) {
    %c0_i32 = arith.constant 0 : i32
    %c0_i32_0 = arith.constant 0 : i32
    %c0_i32_1 = arith.constant 0 : i32
    return %c0_i32, %arg0, %c0_i32_0 : i32, i32, i32
  }
  func.func @transform_1(%arg0: i32) -> (i32, i32) {
    %c0_i32 = arith.constant 0 : i32
    %c0_i32_0 = arith.constant 0 : i32
    return %arg0, %c0_i32 : i32, i32
  }
  func.func @transform_2(%arg0: i32) -> (i32, i32, i32) {
    %c0_i32 = arith.constant 0 : i32
    %c0_i32_0 = arith.constant 0 : i32
    %c0_i32_1 = arith.constant 0 : i32
    %c0_i32_2 = arith.constant 0 : i32
    return %c0_i32, %c0_i32_0, %c0_i32_1 : i32, i32, i32
  }
  func.func @transform_3(%arg0: i32) -> (i32, i32) {
    %c0_i32 = arith.constant 0 : i32
    %c0_i32_0 = arith.constant 0 : i32
    %c0_i32_1 = arith.constant 0 : i32
    return %c0_i32, %c0_i32_0 : i32, i32
  }
  func.func @transform_4(%arg0: i32) -> (i32, i32, i32) {
    %c0_i32 = arith.constant 0 : i32
    %c0_i32_0 = arith.constant 0 : i32
    %c0_i32_1 = arith.constant 0 : i32
    %c0_i32_2 = arith.constant 0 : i32
    return %c0_i32, %c0_i32_0, %c0_i32_1 : i32, i32, i32
  }
  func.func @transform_5(%arg0: i32) -> (i32, i32) {
    %c0_i32 = arith.constant 0 : i32
    %c0_i32_0 = arith.constant 0 : i32
    %c0_i32_1 = arith.constant 0 : i32
    return %c0_i32, %c0_i32_0 : i32, i32
  }
  func.func @transform_6(%arg0: i32) -> (i32, i32) {
    %c0_i32 = arith.constant 0 : i32
    %c0_i32_0 = arith.constant 0 : i32
    %c0_i32_1 = arith.constant 0 : i32
    return %c0_i32, %c0_i32_0 : i32, i32
  }
  func.func @transform_7(%arg0: i32) -> (i32, i32) {
    %c0_i32 = arith.constant 0 : i32
    %c0_i32_0 = arith.constant 0 : i32
    %c0_i32_1 = arith.constant 0 : i32
    return %c0_i32, %c0_i32_0 : i32, i32
  }
  func.func @transform_8(%arg0: i32) -> (i32, i32) {
    %c0_i32 = arith.constant 0 : i32
    %c0_i32_0 = arith.constant 0 : i32
    return %arg0, %c0_i32 : i32, i32
  }
}

</mosaic_0001>

<llo_original>
// kernel: critic_dict_obs_forward.1
$region0: #{critic_dict_obs_forward.1}
  #allocation0 [shape = 'u32[]', space=smem, size = 0x4, offset = 0x4, fixed_abs, tag = 'smem constant byte address 0x4 - core index']
  #allocation1 [shape = 'u32[72,128]{1,0:T(1,128)}', space=vmem, size = 0x9000, scoped, tag = 'internal scratch']
  #allocation2 [shape = 'f32[392,32]{1,0:T(8,128)}', space=vmem, size = 0x31000, scoped, tag = 'scratch operand']
  %s0 = inlined_call_operand.vmem [shape: bf16[49,8,32], index: 0, kind: input, shape index: {}]
  %s1 = inlined_call_operand.vmem [shape: bf16[8,32], index: 1, kind: input, shape index: {}]
  %s2 = inlined_call_operand.vmem [shape: bf16[37,32,32], index: 2, kind: input, shape index: {}]
  %s3 = inlined_call_operand.vmem [shape: f32[8,32], index: 3, kind: input, shape index: {}]
  %s4 = inlined_call_operand.vmem [shape: bf16[2,32,64], index: 4, kind: input, shape index: {}]
  %s5 = inlined_call_operand.vmem [shape: f32[1,64], index: 5, kind: input, shape index: {}]
  %s6 = inlined_call_operand.vmem [shape: bf16[64,2], index: 6, kind: input, shape index: {}]
  %s7 = inlined_call_operand.vmem [shape: f32[1,2], index: 7, kind: input, shape index: {}]
  %s8 = inlined_call_operand.vmem [shape: f32[8,2], index: 8, kind: output, shape index: {}]
  %s9 = sld [smem:[#allocation0]]
  $region42: #{critic_dict_obs_forward.1} parent=0
    _
  %s11 = ssub.s32 1, %s9
  %s12 = scalar_select 0, %s11, %s9
  // Predicated region
  $region2: #{critic_dict_obs_forward.1} parent=0 // pred_check
    _
  $region3: #{critic_dict_obs_forward.1} parent=0 // pred_check_branch
    %14 = sbr.rel (0) target = $region5
  $region4: #{critic_dict_obs_forward.1} parent=0 // pred_region
    _
  $region5: #{critic_dict_obs_forward.1} parent=0 // pred_fallthru
    _
  // Predicated region
  $region6: #{critic_dict_obs_forward.1} parent=0 // pred_check
    _
  $region7: #{critic_dict_obs_forward.1} parent=0 // pred_check_branch
    %16 = sbr.rel (0) target = $region9
  $region8: #{critic_dict_obs_forward.1} parent=0 // pred_region
    _
  $region9: #{critic_dict_obs_forward.1} parent=0 // pred_fallthru
    _
  // Predicated region
  $region10: #{critic_dict_obs_forward.1} parent=0 // pred_check
    _
  $region11: #{critic_dict_obs_forward.1} parent=0 // pred_check_branch
    %18 = sbr.rel (0) target = $region13
  $region12: #{critic_dict_obs_forward.1} parent=0 // pred_region
    _
  $region13: #{critic_dict_obs_forward.1} parent=0 // pred_fallthru
    _
  // Predicated region
  $region14: #{critic_dict_obs_forward.1} parent=0 // pred_check
    _
  $region15: #{critic_dict_obs_forward.1} parent=0 // pred_check_branch
    %20 = sbr.rel (0) target = $region17
  $region16: #{critic_dict_obs_forward.1} parent=0 // pred_region
    _
  $region17: #{critic_dict_obs_forward.1} parent=0 // pred_fallthru
    _
  // Predicated region
  $region18: #{critic_dict_obs_forward.1} parent=0 // pred_check
    _
  $region19: #{critic_dict_obs_forward.1} parent=0 // pred_check_branch
    %22 = sbr.rel (0) target = $region21
  $region20: #{critic_dict_obs_forward.1} parent=0 // pred_region
    _
  $region21: #{critic_dict_obs_forward.1} parent=0 // pred_fallthru
    _
  // Predicated region
  $region22: #{critic_dict_obs_forward.1} parent=0 // pred_check
    _
  $region23: #{critic_dict_obs_forward.1} parent=0 // pred_check_branch
    %24 = sbr.rel (0) target = $region25
  $region24: #{critic_dict_obs_forward.1} parent=0 // pred_region
    _
  $region25: #{critic_dict_obs_forward.1} parent=0 // pred_fallthru
    _
  // Predicated region
  $region26: #{critic_dict_obs_forward.1} parent=0 // pred_check
    _
  $region27: #{critic_dict_obs_forward.1} parent=0 // pred_check_branch
    %26 = sbr.rel (0) target = $region29
  $region28: #{critic_dict_obs_forward.1} parent=0 // pred_region
    _
  $region29: #{critic_dict_obs_forward.1} parent=0 // pred_fallthru
    _
  // Predicated region
  $region30: #{critic_dict_obs_forward.1} parent=0 // pred_check
    _
  $region31: #{critic_dict_obs_forward.1} parent=0 // pred_check_branch
    %28 = sbr.rel (0) target = $region33
  $region32: #{critic_dict_obs_forward.1} parent=0 // pred_region
    _
  $region33: #{critic_dict_obs_forward.1} parent=0 // pred_fallthru
    _
  %v30 = vld [vmem:[%s2] sm:$0xf]
  %v31 = vld [vmem:[%s2 + $0x4] sm:$0xf]
  %v32 = vld [vmem:[%s2 + $0x8] sm:$0xf]
  %v33 = vld [vmem:[%s2 + $0xc] sm:$0xf]
  %s34 = scalar_lea.vmem %s2, 16
  %v35 = vld [vmem:[%s34] sm:$0xf]
  %v36 = vld [vmem:[%s34 + $0x4] sm:$0xf]
  %v37 = vld [vmem:[%s34 + $0x8] sm:$0xf]
  %v38 = vld [vmem:[%s34 + $0xc] sm:$0xf]
  %s39 = scalar_lea.vmem %s2, 32
  %v40 = vld [vmem:[%s39] sm:$0xf]
  %v41 = vld [vmem:[%s39 + $0x4] sm:$0xf]
  %v42 = vld [vmem:[%s39 + $0x8] sm:$0xf]
  %v43 = vld [vmem:[%s39 + $0xc] sm:$0xf]
  %s44 = scalar_lea.vmem %s2, 48
  %v45 = vld [vmem:[%s44] sm:$0xf]
  %v46 = vld [vmem:[%s44 + $0x4] sm:$0xf]
  %v47 = vld [vmem:[%s44 + $0x8] sm:$0xf]
  %v48 = vld [vmem:[%s44 + $0xc] sm:$0xf]
  %s49 = scalar_lea.vmem %s2, 64
  %v50 = vld [vmem:[%s49] sm:$0xf]
  %v51 = vld [vmem:[%s49 + $0x4] sm:$0xf]
  %v52 = vld [vmem:[%s49 + $0x8] sm:$0xf]
  %v53 = vld [vmem:[%s49 + $0xc] sm:$0xf]
  %s54 = scalar_lea.vmem %s2, 80
  %v55 = vld [vmem:[%s54] sm:$0xf]
  %v56 = vld [vmem:[%s54 + $0x4] sm:$0xf]
  %v57 = vld [vmem:[%s54 + $0x8] sm:$0xf]
  %v58 = vld [vmem:[%s54 + $0xc] sm:$0xf]
  %s59 = scalar_lea.vmem %s2, 96
  %v60 = vld [vmem:[%s59] sm:$0xf]
  %v61 = vld [vmem:[%s59 + $0x4] sm:$0xf]
  %v62 = vld [vmem:[%s59 + $0x8] sm:$0xf]
  %v63 = vld [vmem:[%s59 + $0xc] sm:$0xf]
  %s64 = scalar_lea.vmem %s2, 112
  %v65 = vld [vmem:[%s64] sm:$0xf]
  %v66 = vld [vmem:[%s64 + $0x4] sm:$0xf]
  %v67 = vld [vmem:[%s64 + $0x8] sm:$0xf]
  %v68 = vld [vmem:[%s64 + $0xc] sm:$0xf]
  %s69 = scalar_lea.vmem %s2, 128
  %v70 = vld [vmem:[%s69] sm:$0xf]
  %v71 = vld [vmem:[%s69 + $0x4] sm:$0xf]
  %v72 = vld [vmem:[%s69 + $0x8] sm:$0xf]
  %v73 = vld [vmem:[%s69 + $0xc] sm:$0xf]
  %s74 = scalar_lea.vmem %s2, 144
  %v75 = vld [vmem:[%s74] sm:$0xf]
  %v76 = vld [vmem:[%s74 + $0x4] sm:$0xf]
  %v77 = vld [vmem:[%s74 + $0x8] sm:$0xf]
  %v78 = vld [vmem:[%s74 + $0xc] sm:$0xf]
  %v79 = vld [vmem:[%s3] sm:$0x1]
  %v80 = vld [vmem:[%s3 + $0x1] sm:$0x1]
  %v81 = vld [vmem:[%s3 + $0x2] sm:$0x1]
  %v82 = vld [vmem:[%s3 + $0x3] sm:$0x1]
  %v83 = vld [vmem:[%s3 + $0x4] sm:$0x1]
  %v84 = vld [vmem:[%s3 + $0x5] sm:$0x1]
  %v85 = vld [vmem:[%s3 + $0x6] sm:$0x1]
  %v86 = vld [vmem:[%s0] sm:$0xf]
  %v87 = vperm.slane %v79, 0
  %v92 = vunpack.c.l.b16 %v30
  %v93 = vunpack.c.l.b16 %v31
  %v94 = vunpack.c.l.b16 %v32
  %v95 = vunpack.c.l.b16 %v33
  %v96 = vpack.c.b16 %v93, %v92
  %v97 = vpack.c.b16 %v95, %v94
  %vm100 = vcmask 261120
  %v102 = vsel %vm100, %v86, 0
  %104 = vmatpush.bf16.msra.mxu0 0
  %105 = vmatpush.bf16.msra.mxu0 0
  %106 = vmatpush.bf16.msra.mxu0 0
  %107 = vmatpush.bf16.msra.mxu0 0
  %108 = vmatpush.bf16.msra.mxu0 0
  %109 = vmatpush.bf16.msra.mxu0 0
  %110 = vmatpush.bf16.msra.mxu0 %v97
  %111 = vmatpush.bf16.msra.mxu0 %v96
  %112 = vmatmul.bf16.gmra.mxu0 %v102
  %v113 = vpop.f32.mrf.mxu0
  %v114 = vadd.f32 %v87, %v113
  %v115 = vpop.f32.mrf.mxu0
  %116 = vdwg.mxu0
  %v117 = vmax.f32 %v114, 0.0
  %118 = vst.msk [vmem:[#allocation2] sm:$0xff] %vm100, %v117
  %s119 = scalar_lea.vmem %s0, 4
  %v120 = vld [vmem:[%s119] sm:$0xf]
  %v122 = vsel %vm100, %v120, 0
  %124 = vmatpush.bf16.msra.mxu0 0
  %125 = vmatpush.bf16.msra.mxu0 0
  %126 = vmatpush.bf16.msra.mxu0 0
  %127 = vmatpush.bf16.msra.mxu0 0
  %128 = vmatpush.bf16.msra.mxu0 0
  %129 = vmatpush.bf16.msra.mxu0 0
  %130 = vmatpush.bf16.msra.mxu0 %v97
  %131 = vmatpush.bf16.msra.mxu0 %v96
  %132 = vmatmul.bf16.gmra.mxu0 %v122
  %v133 = vpop.f32.mrf.mxu0
  %v134 = vadd.f32 %v87, %v133
  %v135 = vpop.f32.mrf.mxu0
  %136 = vdwg.mxu0
  %v137 = vmax.f32 %v134, 0.0
  %138 = vst.msk [vmem:[#allocation2 + $0x8] sm:$0xff] %vm100, %v137
  %s139 = scalar_lea.vmem %s0, 8
  %v140 = vld [vmem:[%s139] sm:$0xf]
  %v142 = vsel %vm100, %v140, 0
  %144 = vmatpush.bf16.msra.mxu0 0
  %145 = vmatpush.bf16.msra.mxu0 0
  %146 = vmatpush.bf16.msra.mxu0 0
  %147 = vmatpush.bf16.msra.mxu0 0
  %148 = vmatpush.bf16.msra.mxu0 0
  %149 = vmatpush.bf16.msra.mxu0 0
  %150 = vmatpush.bf16.msra.mxu0 %v97
  %151 = vmatpush.bf16.msra.mxu0 %v96
  %152 = vmatmul.bf16.gmra.mxu0 %v142
  %v153 = vpop.f32.mrf.mxu0
  %v154 = vadd.f32 %v87, %v153
  %v155 = vpop.f32.mrf.mxu0
  %156 = vdwg.mxu0
  %v157 = vmax.f32 %v154, 0.0
  %158 = vst.msk [vmem:[#allocation2 + $0x10] sm:$0xff] %vm100, %v157
  %s159 = scalar_lea.vmem %s0, 12
  %v160 = vld [vmem:[%s159] sm:$0xf]
  %v162 = vsel %vm100, %v160, 0
  %164 = vmatpush.bf16.msra.mxu0 0
  %165 = vmatpush.bf16.msra.mxu0 0
  %166 = vmatpush.bf16.msra.mxu0 0
  %167 = vmatpush.bf16.msra.mxu0 0
  %168 = vmatpush.bf16.msra.mxu0 0
  %169 = vmatpush.bf16.msra.mxu0 0
  %170 = vmatpush.bf16.msra.mxu0 %v97
  %171 = vmatpush.bf16.msra.mxu0 %v96
  %172 = vmatmul.bf16.gmra.mxu0 %v162
  %v173 = vpop.f32.mrf.mxu0
  %v174 = vadd.f32 %v87, %v173
  %v175 = vpop.f32.mrf.mxu0
  %176 = vdwg.mxu0
  %v177 = vmax.f32 %v174, 0.0
  %178 = vst.msk [vmem:[#allocation2 + $0x18] sm:$0xff] %vm100, %v177
  %s179 = scalar_lea.vmem %s0, 16
  %v180 = vld [vmem:[%s179] sm:$0xf]
  %v182 = vsel %vm100, %v180, 0
  %184 = vmatpush.bf16.msra.mxu0 0
  %185 = vmatpush.bf16.msra.mxu0 0
  %186 = vmatpush.bf16.msra.mxu0 0
  %187 = vmatpush.bf16.msra.mxu0 0
  %188 = vmatpush.bf16.msra.mxu0 0
  %189 = vmatpush.bf16.msra.mxu0 0
  %190 = vmatpush.bf16.msra.mxu0 %v97
  %191 = vmatpush.bf16.msra.mxu0 %v96
  %192 = vmatmul.bf16.gmra.mxu0 %v182
  %v193 = vpop.f32.mrf.mxu0
  %v194 = vadd.f32 %v87, %v193
  %v195 = vpop.f32.mrf.mxu0
  %196 = vdwg.mxu0
  %v197 = vmax.f32 %v194, 0.0
  %198 = vst.msk [vmem:[#allocation2 + $0x20] sm:$0xff] %vm100, %v197
  %s199 = scalar_lea.vmem %s0, 20
  %v200 = vld [vmem:[%s199] sm:$0xf]
  %v202 = vsel %vm100, %v200, 0
  %204 = vmatpush.bf16.msra.mxu0 0
  %205 = vmatpush.bf16.msra.mxu0 0
  %206 = vmatpush.bf16.msra.mxu0 0
  %207 = vmatpush.bf16.msra.mxu0 0
  %208 = vmatpush.bf16.msra.mxu0 0
  %209 = vmatpush.bf16.msra.mxu0 0
  %210 = vmatpush.bf16.msra.mxu0 %v97
  %211 = vmatpush.bf16.msra.mxu0 %v96
  %212 = vmatmul.bf16.gmra.mxu0 %v202
  %v213 = vpop.f32.mrf.mxu0
  %v214 = vadd.f32 %v87, %v213
  %v215 = vpop.f32.mrf.mxu0
  %216 = vdwg.mxu0
  %v217 = vmax.f32 %v214, 0.0
  %218 = vst.msk [vmem:[#allocation2 + $0x28] sm:$0xff] %vm100, %v217
  %s219 = scalar_lea.vmem %s0, 24
  %v220 = vld [vmem:[%s219] sm:$0xf]
  %v222 = vsel %vm100, %v220, 0
  %224 = vmatpush.bf16.msra.mxu0 0
  %225 = vmatpush.bf16.msra.mxu0 0
  %226 = vmatpush.bf16.msra.mxu0 0
  %227 = vmatpush.bf16.msra.mxu0 0
  %228 = vmatpush.bf16.msra.mxu0 0
  %229 = vmatpush.bf16.msra.mxu0 0
  %230 = vmatpush.bf16.msra.mxu0 %v97
  %231 = vmatpush.bf16.msra.mxu0 %v96
  %232 = vmatmul.bf16.gmra.mxu0 %v222
  %v233 = vpop.f32.mrf.mxu0
  %v234 = vadd.f32 %v87, %v233
  %v235 = vpop.f32.mrf.mxu0
  %236 = vdwg.mxu0
  %v237 = vmax.f32 %v234, 0.0
  %238 = vst.msk [vmem:[#allocation2 + $0x30] sm:$0xff] %vm100, %v237
  %s239 = scalar_lea.vmem %s0, 28
  %v240 = vld [vmem:[%s239] sm:$0xf]
  %v242 = vsel %vm100, %v240, 0
  %244 = vmatpush.bf16.msra.mxu0 0
  %245 = vmatpush.bf16.msra.mxu0 0
  %246 = vmatpush.bf16.msra.mxu0 0
  %247 = vmatpush.bf16.msra.mxu0 0
  %248 = vmatpush.bf16.msra.mxu0 0
  %249 = vmatpush.bf16.msra.mxu0 0
  %250 = vmatpush.bf16.msra.mxu0 %v97
  %251 = vmatpush.bf16.msra.mxu0 %v96
  %252 = vmatmul.bf16.gmra.mxu0 %v242
  %v253 = vpop.f32.mrf.mxu0
  %v254 = vadd.f32 %v87, %v253
  %v255 = vpop.f32.mrf.mxu0
  %256 = vdwg.mxu0
  %v257 = vmax.f32 %v254, 0.0
  %258 = vst.msk [vmem:[#allocation2 + $0x38] sm:$0xff] %vm100, %v257
  %s259 = scalar_lea.vmem %s0, 32
  %v260 = vld [vmem:[%s259] sm:$0xf]
  %v262 = vsel %vm100, %v260, 0
  %264 = vmatpush.bf16.msra.mxu0 0
  %265 = vmatpush.bf16.msra.mxu0 0
  %266 = vmatpush.bf16.msra.mxu0 0
  %267 = vmatpush.bf16.msra.mxu0 0
  %268 = vmatpush.bf16.msra.mxu0 0
  %269 = vmatpush.bf16.msra.mxu0 0
  %270 = vmatpush.bf16.msra.mxu0 %v97
  %271 = vmatpush.bf16.msra.mxu0 %v96
  %272 = vmatmul.bf16.gmra.mxu0 %v262
  %v273 = vpop.f32.mrf.mxu0
  %v274 = vadd.f32 %v87, %v273
  %v275 = vpop.f32.mrf.mxu0
  %276 = vdwg.mxu0
  %v277 = vmax.f32 %v274, 0.0
  %278 = vst.msk [vmem:[#allocation2 + $0x40] sm:$0xff] %vm100, %v277
  %s279 = scalar_lea.vmem %s0, 36
  %v280 = vld [vmem:[%s279] sm:$0xf]
  %v282 = vsel %vm100, %v280, 0
  %284 = vmatpush.bf16.msra.mxu0 0
  %285 = vmatpush.bf16.msra.mxu0 0
  %286 = vmatpush.bf16.msra.mxu0 0
  %287 = vmatpush.bf16.msra.mxu0 0
  %288 = vmatpush.bf16.msra.mxu0 0
  %289 = vmatpush.bf16.msra.mxu0 0
  %290 = vmatpush.bf16.msra.mxu0 %v97
  %291 = vmatpush.bf16.msra.mxu0 %v96
  %292 = vmatmul.bf16.gmra.mxu0 %v282
  %v293 = vpop.f32.mrf.mxu0
  %v294 = vadd.f32 %v87, %v293
  %v295 = vpop.f32.mrf.mxu0
  %296 = vdwg.mxu0
  %v297 = vmax.f32 %v294, 0.0
  %298 = vst.msk [vmem:[#allocation2 + $0x48] sm:$0xff] %vm100, %v297
  %s299 = scalar_lea.vmem %s0, 40
  %v300 = vld [vmem:[%s299] sm:$0xf]
  %v302 = vsel %vm100, %v300, 0
  %304 = vmatpush.bf16.msra.mxu0 0
  %305 = vmatpush.bf16.msra.mxu0 0
  %306 = vmatpush.bf16.msra.mxu0 0
  %307 = vmatpush.bf16.msra.mxu0 0
  %308 = vmatpush.bf16.msra.mxu0 0
  %309 = vmatpush.bf16.msra.mxu0 0
  %310 = vmatpush.bf16.msra.mxu0 %v97
  %311 = vmatpush.bf16.msra.mxu0 %v96
  %312 = vmatmul.bf16.gmra.mxu0 %v302
  %v313 = vpop.f32.mrf.mxu0
  %v314 = vadd.f32 %v87, %v313
  %v315 = vpop.f32.mrf.mxu0
  %316 = vdwg.mxu0
  %v317 = vmax.f32 %v314, 0.0
  %318 = vst.msk [vmem:[#allocation2 + $0x50] sm:$0xff] %vm100, %v317
  %s319 = scalar_lea.vmem %s0, 44
  %v320 = vld [vmem:[%s319] sm:$0xf]
  %v322 = vsel %vm100, %v320, 0
  %324 = vmatpush.bf16.msra.mxu0 0
  %325 = vmatpush.bf16.msra.mxu0 0
  %326 = vmatpush.bf16.msra.mxu0 0
  %327 = vmatpush.bf16.msra.mxu0 0
  %328 = vmatpush.bf16.msra.mxu0 0
  %329 = vmatpush.bf16.msra.mxu0 0
  %330 = vmatpush.bf16.msra.mxu0 %v97
  %331 = vmatpush.bf16.msra.mxu0 %v96
  %332 = vmatmul.bf16.gmra.mxu0 %v322
  %v333 = vpop.f32.mrf.mxu0
  %v334 = vadd.f32 %v87, %v333
  %v335 = vpop.f32.mrf.mxu0
  %336 = vdwg.mxu0
  %v337 = vmax.f32 %v334, 0.0
  %338 = vst.msk [vmem:[#allocation2 + $0x58] sm:$0xff] %vm100, %v337
  %s339 = scalar_lea.vmem %s0, 48
  %v340 = vld [vmem:[%s339] sm:$0xf]
  %v342 = vsel %vm100, %v340, 0
  %344 = vmatpush.bf16.msra.mxu0 0
  %345 = vmatpush.bf16.msra.mxu0 0
  %346 = vmatpush.bf16.msra.mxu0 0
  %347 = vmatpush.bf16.msra.mxu0 0
  %348 = vmatpush.bf16.msra.mxu0 0
  %349 = vmatpush.bf16.msra.mxu0 0
  %350 = vmatpush.bf16.msra.mxu0 %v97
  %351 = vmatpush.bf16.msra.mxu0 %v96
  %352 = vmatmul.bf16.gmra.mxu0 %v342
  %v353 = vpop.f32.mrf.mxu0
  %v354 = vadd.f32 %v87, %v353
  %v355 = vpop.f32.mrf.mxu0
  %356 = vdwg.mxu0
  %v357 = vmax.f32 %v354, 0.0
  %358 = vst.msk [vmem:[#allocation2 + $0x60] sm:$0xff] %vm100, %v357
  %s359 = scalar_lea.vmem %s0, 52
  %v360 = vld [vmem:[%s359] sm:$0xf]
  %v362 = vsel %vm100, %v360, 0
  %364 = vmatpush.bf16.msra.mxu0 0
  %365 = vmatpush.bf16.msra.mxu0 0
  %366 = vmatpush.bf16.msra.mxu0 0
  %367 = vmatpush.bf16.msra.mxu0 0
  %368 = vmatpush.bf16.msra.mxu0 0
  %369 = vmatpush.bf16.msra.mxu0 0
  %370 = vmatpush.bf16.msra.mxu0 %v97
  %371 = vmatpush.bf16.msra.mxu0 %v96
  %372 = vmatmul.bf16.gmra.mxu0 %v362
  %v373 = vpop.f32.mrf.mxu0
  %v374 = vadd.f32 %v87, %v373
  %v375 = vpop.f32.mrf.mxu0
  %376 = vdwg.mxu0
  %v377 = vmax.f32 %v374, 0.0
  %378 = vst.msk [vmem:[#allocation2 + $0x68] sm:$0xff] %vm100, %v377
  %s379 = scalar_lea.vmem %s0, 56
  %v380 = vld [vmem:[%s379] sm:$0xf]
  %v382 = vsel %vm100, %v380, 0
  %384 = vmatpush.bf16.msra.mxu0 0
  %385 = vmatpush.bf16.msra.mxu0 0
  %386 = vmatpush.bf16.msra.mxu0 0
  %387 = vmatpush.bf16.msra.mxu0 0
  %388 = vmatpush.bf16.msra.mxu0 0
  %389 = vmatpush.bf16.msra.mxu0 0
  %390 = vmatpush.bf16.msra.mxu0 %v97
  %391 = vmatpush.bf16.msra.mxu0 %v96
  %392 = vmatmul.bf16.gmra.mxu0 %v382
  %v393 = vpop.f32.mrf.mxu0
  %v394 = vadd.f32 %v87, %v393
  %v395 = vpop.f32.mrf.mxu0
  %396 = vdwg.mxu0
  %v397 = vmax.f32 %v394, 0.0
  %398 = vst.msk [vmem:[#allocation2 + $0x70] sm:$0xff] %vm100, %v397
  %s399 = scalar_lea.vmem %s0, 60
  %v400 = vld [vmem:[%s399] sm:$0xf]
  %v402 = vsel %vm100, %v400, 0
  %404 = vmatpush.bf16.msra.mxu0 0
  %405 = vmatpush.bf16.msra.mxu0 0
  %406 = vmatpush.bf16.msra.mxu0 0
  %407 = vmatpush.bf16.msra.mxu0 0
  %408 = vmatpush.bf16.msra.mxu0 0
  %409 = vmatpush.bf16.msra.mxu0 0
  %410 = vmatpush.bf16.msra.mxu0 %v97
  %411 = vmatpush.bf16.msra.mxu0 %v96
  %412 = vmatmul.bf16.gmra.mxu0 %v402
  %v413 = vpop.f32.mrf.mxu0
  %v414 = vadd.f32 %v87, %v413
  %v415 = vpop.f32.mrf.mxu0
  %416 = vdwg.mxu0
  %v417 = vmax.f32 %v414, 0.0
  %418 = vst.msk [vmem:[#allocation2 + $0x78] sm:$0xff] %vm100, %v417
  %s419 = scalar_lea.vmem %s0, 64
  %v420 = vld [vmem:[%s419] sm:$0xf]
  %v422 = vsel %vm100, %v420, 0
  %424 = vmatpush.bf16.msra.mxu0 0
  %425 = vmatpush.bf16.msra.mxu0 0
  %426 = vmatpush.bf16.msra.mxu0 0
  %427 = vmatpush.bf16.msra.mxu0 0
  %428 = vmatpush.bf16.msra.mxu0 0
  %429 = vmatpush.bf16.msra.mxu0 0
  %430 = vmatpush.bf16.msra.mxu0 %v97
  %431 = vmatpush.bf16.msra.mxu0 %v96
  %432 = vmatmul.bf16.gmra.mxu0 %v422
  %v433 = vpop.f32.mrf.mxu0
  %v434 = vadd.f32 %v87, %v433
  %v435 = vpop.f32.mrf.mxu0
  %436 = vdwg.mxu0
  %v437 = vmax.f32 %v434, 0.0
  %438 = vst.msk [vmem:[#allocation2 + $0x80] sm:$0xff] %vm100, %v437
  %s439 = scalar_lea.vmem %s0, 68
  %v440 = vld [vmem:[%s439] sm:$0xf]
  %v442 = vsel %vm100, %v440, 0
  %444 = vmatpush.bf16.msra.mxu0 0
  %445 = vmatpush.bf16.msra.mxu0 0
  %446 = vmatpush.bf16.msra.mxu0 0
  %447 = vmatpush.bf16.msra.mxu0 0
  %448 = vmatpush.bf16.msra.mxu0 0
  %449 = vmatpush.bf16.msra.mxu0 0
  %450 = vmatpush.bf16.msra.mxu0 %v97
  %451 = vmatpush.bf16.msra.mxu0 %v96
  %452 = vmatmul.bf16.gmra.mxu0 %v442
  %v453 = vpop.f32.mrf.mxu0
  %v454 = vadd.f32 %v87, %v453
  %v455 = vpop.f32.mrf.mxu0
  %456 = vdwg.mxu0
  %v457 = vmax.f32 %v454, 0.0
  %458 = vst.msk [vmem:[#allocation2 + $0x88] sm:$0xff] %vm100, %v457
  %s459 = scalar_lea.vmem %s0, 72
  %v460 = vld [vmem:[%s459] sm:$0xf]
  %v462 = vsel %vm100, %v460, 0
  %464 = vmatpush.bf16.msra.mxu0 0
  %465 = vmatpush.bf16.msra.mxu0 0
  %466 = vmatpush.bf16.msra.mxu0 0
  %467 = vmatpush.bf16.msra.mxu0 0
  %468 = vmatpush.bf16.msra.mxu0 0
  %469 = vmatpush.bf16.msra.mxu0 0
  %470 = vmatpush.bf16.msra.mxu0 %v97
  %471 = vmatpush.bf16.msra.mxu0 %v96
  %472 = vmatmul.bf16.gmra.mxu0 %v462
  %v473 = vpop.f32.mrf.mxu0
  %v474 = vadd.f32 %v87, %v473
  %v475 = vpop.f32.mrf.mxu0
  %476 = vdwg.mxu0
  %v477 = vmax.f32 %v474, 0.0
  %478 = vst.msk [vmem:[#allocation2 + $0x90] sm:$0xff] %vm100, %v477
  %s479 = scalar_lea.vmem %s0, 76
  %v480 = vld [vmem:[%s479] sm:$0xf]
  %v482 = vsel %vm100, %v480, 0
  %484 = vmatpush.bf16.msra.mxu0 0
  %485 = vmatpush.bf16.msra.mxu0 0
  %486 = vmatpush.bf16.msra.mxu0 0
  %487 = vmatpush.bf16.msra.mxu0 0
  %488 = vmatpush.bf16.msra.mxu0 0
  %489 = vmatpush.bf16.msra.mxu0 0
  %490 = vmatpush.bf16.msra.mxu0 %v97
  %491 = vmatpush.bf16.msra.mxu0 %v96
  %492 = vmatmul.bf16.gmra.mxu0 %v482
  %v493 = vpop.f32.mrf.mxu0
  %v494 = vadd.f32 %v87, %v493
  %v495 = vpop.f32.mrf.mxu0
  %496 = vdwg.mxu0
  %v497 = vmax.f32 %v494, 0.0
  %498 = vst.msk [vmem:[#allocation2 + $0x98] sm:$0xff] %vm100, %v497
  %s499 = scalar_lea.vmem %s0, 80
  %v500 = vld [vmem:[%s499] sm:$0xf]
  %v502 = vsel %vm100, %v500, 0
  %504 = vmatpush.bf16.msra.mxu0 0
  %505 = vmatpush.bf16.msra.mxu0 0
  %506 = vmatpush.bf16.msra.mxu0 0
  %507 = vmatpush.bf16.msra.mxu0 0
  %508 = vmatpush.bf16.msra.mxu0 0
  %509 = vmatpush.bf16.msra.mxu0 0
  %510 = vmatpush.bf16.msra.mxu0 %v97
  %511 = vmatpush.bf16.msra.mxu0 %v96
  %512 = vmatmul.bf16.gmra.mxu0 %v502
  %v513 = vpop.f32.mrf.mxu0
  %v514 = vadd.f32 %v87, %v513
  %v515 = vpop.f32.mrf.mxu0
  %516 = vdwg.mxu0
  %v517 = vmax.f32 %v514, 0.0
  %518 = vst.msk [vmem:[#allocation2 + $0xa0] sm:$0xff] %vm100, %v517
  %s519 = scalar_lea.vmem %s0, 84
  %v520 = vld [vmem:[%s519] sm:$0xf]
  %v522 = vsel %vm100, %v520, 0
  %524 = vmatpush.bf16.msra.mxu0 0
  %525 = vmatpush.bf16.msra.mxu0 0
  %526 = vmatpush.bf16.msra.mxu0 0
  %527 = vmatpush.bf16.msra.mxu0 0
  %528 = vmatpush.bf16.msra.mxu0 0
  %529 = vmatpush.bf16.msra.mxu0 0
  %530 = vmatpush.bf16.msra.mxu0 %v97
  %531 = vmatpush.bf16.msra.mxu0 %v96
  %532 = vmatmul.bf16.gmra.mxu0 %v522
  %v533 = vpop.f32.mrf.mxu0
  %v534 = vadd.f32 %v87, %v533
  %v535 = vpop.f32.mrf.mxu0
  %536 = vdwg.mxu0
  %v537 = vmax.f32 %v534, 0.0
  %538 = vst.msk [vmem:[#allocation2 + $0xa8] sm:$0xff] %vm100, %v537
  %s539 = scalar_lea.vmem %s0, 88
  %v540 = vld [vmem:[%s539] sm:$0xf]
  %v542 = vsel %vm100, %v540, 0
  %544 = vmatpush.bf16.msra.mxu0 0
  %545 = vmatpush.bf16.msra.mxu0 0
  %546 = vmatpush.bf16.msra.mxu0 0
  %547 = vmatpush.bf16.msra.mxu0 0
  %548 = vmatpush.bf16.msra.mxu0 0
  %549 = vmatpush.bf16.msra.mxu0 0
  %550 = vmatpush.bf16.msra.mxu0 %v97
  %551 = vmatpush.bf16.msra.mxu0 %v96
  %552 = vmatmul.bf16.gmra.mxu0 %v542
  %v553 = vpop.f32.mrf.mxu0
  %v554 = vadd.f32 %v87, %v553
  %v555 = vpop.f32.mrf.mxu0
  %556 = vdwg.mxu0
  %v557 = vmax.f32 %v554, 0.0
  %558 = vst.msk [vmem:[#allocation2 + $0xb0] sm:$0xff] %vm100, %v557
  %s559 = scalar_lea.vmem %s0, 92
  %v560 = vld [vmem:[%s559] sm:$0xf]
  %v562 = vsel %vm100, %v560, 0
  %564 = vmatpush.bf16.msra.mxu0 0
  %565 = vmatpush.bf16.msra.mxu0 0
  %566 = vmatpush.bf16.msra.mxu0 0
  %567 = vmatpush.bf16.msra.mxu0 0
  %568 = vmatpush.bf16.msra.mxu0 0
  %569 = vmatpush.bf16.msra.mxu0 0
  %570 = vmatpush.bf16.msra.mxu0 %v97
  %571 = vmatpush.bf16.msra.mxu0 %v96
  %572 = vmatmul.bf16.gmra.mxu0 %v562
  %v573 = vpop.f32.mrf.mxu0
  %v574 = vadd.f32 %v87, %v573
  %v575 = vpop.f32.mrf.mxu0
  %576 = vdwg.mxu0
  %v577 = vmax.f32 %v574, 0.0
  %578 = vst.msk [vmem:[#allocation2 + $0xb8] sm:$0xff] %vm100, %v577
  %s579 = scalar_lea.vmem %s0, 96
  %v580 = vld [vmem:[%s579] sm:$0xf]
  %v582 = vsel %vm100, %v580, 0
  %584 = vmatpush.bf16.msra.mxu0 0
  %585 = vmatpush.bf16.msra.mxu0 0
  %586 = vmatpush.bf16.msra.mxu0 0
  %587 = vmatpush.bf16.msra.mxu0 0
  %588 = vmatpush.bf16.msra.mxu0 0
  %589 = vmatpush.bf16.msra.mxu0 0
  %590 = vmatpush.bf16.msra.mxu0 %v97
  %591 = vmatpush.bf16.msra.mxu0 %v96
  %592 = vmatmul.bf16.gmra.mxu0 %v582
  %v593 = vpop.f32.mrf.mxu0
  %v594 = vadd.f32 %v87, %v593
  %v595 = vpop.f32.mrf.mxu0
  %596 = vdwg.mxu0
  %v597 = vmax.f32 %v594, 0.0
  %598 = vst.msk [vmem:[#allocation2 + $0xc0] sm:$0xff] %vm100, %v597
  %s599 = scalar_lea.vmem %s0, 100
  %v600 = vld [vmem:[%s599] sm:$0xf]
  %v602 = vsel %vm100, %v600, 0
  %604 = vmatpush.bf16.msra.mxu0 0
  %605 = vmatpush.bf16.msra.mxu0 0
  %606 = vmatpush.bf16.msra.mxu0 0
  %607 = vmatpush.bf16.msra.mxu0 0
  %608 = vmatpush.bf16.msra.mxu0 0
  %609 = vmatpush.bf16.msra.mxu0 0
  %610 = vmatpush.bf16.msra.mxu0 %v97
  %611 = vmatpush.bf16.msra.mxu0 %v96
  %612 = vmatmul.bf16.gmra.mxu0 %v602
  %v613 = vpop.f32.mrf.mxu0
  %v614 = vadd.f32 %v87, %v613
  %v615 = vpop.f32.mrf.mxu0
  %616 = vdwg.mxu0
  %v617 = vmax.f32 %v614, 0.0
  %618 = vst.msk [vmem:[#allocation2 + $0xc8] sm:$0xff] %vm100, %v617
  %s619 = scalar_lea.vmem %s0, 104
  %v620 = vld [vmem:[%s619] sm:$0xf]
  %v622 = vsel %vm100, %v620, 0
  %624 = vmatpush.bf16.msra.mxu0 0
  %625 = vmatpush.bf16.msra.mxu0 0
  %626 = vmatpush.bf16.msra.mxu0 0
  %627 = vmatpush.bf16.msra.mxu0 0
  %628 = vmatpush.bf16.msra.mxu0 0
  %629 = vmatpush.bf16.msra.mxu0 0
  %630 = vmatpush.bf16.msra.mxu0 %v97
  %631 = vmatpush.bf16.msra.mxu0 %v96
  %632 = vmatmul.bf16.gmra.mxu0 %v622
  %v633 = vpop.f32.mrf.mxu0
  %v634 = vadd.f32 %v87, %v633
  %v635 = vpop.f32.mrf.mxu0
  %636 = vdwg.mxu0
  %v637 = vmax.f32 %v634, 0.0
  %638 = vst.msk [vmem:[#allocation2 + $0xd0] sm:$0xff] %vm100, %v637
  %s639 = scalar_lea.vmem %s0, 108
  %v640 = vld [vmem:[%s639] sm:$0xf]
  %v642 = vsel %vm100, %v640, 0
  %644 = vmatpush.bf16.msra.mxu0 0
  %645 = vmatpush.bf16.msra.mxu0 0
  %646 = vmatpush.bf16.msra.mxu0 0
  %647 = vmatpush.bf16.msra.mxu0 0
  %648 = vmatpush.bf16.msra.mxu0 0
  %649 = vmatpush.bf16.msra.mxu0 0
  %650 = vmatpush.bf16.msra.mxu0 %v97
  %651 = vmatpush.bf16.msra.mxu0 %v96
  %652 = vmatmul.bf16.gmra.mxu0 %v642
  %v653 = vpop.f32.mrf.mxu0
  %v654 = vadd.f32 %v87, %v653
  %v655 = vpop.f32.mrf.mxu0
  %656 = vdwg.mxu0
  %v657 = vmax.f32 %v654, 0.0
  %658 = vst.msk [vmem:[#allocation2 + $0xd8] sm:$0xff] %vm100, %v657
  %s659 = scalar_lea.vmem %s0, 112
  %v660 = vld [vmem:[%s659] sm:$0xf]
  %v662 = vsel %vm100, %v660, 0
  %664 = vmatpush.bf16.msra.mxu0 0
  %665 = vmatpush.bf16.msra.mxu0 0
  %666 = vmatpush.bf16.msra.mxu0 0
  %667 = vmatpush.bf16.msra.mxu0 0
  %668 = vmatpush.bf16.msra.mxu0 0
  %669 = vmatpush.bf16.msra.mxu0 0
  %670 = vmatpush.bf16.msra.mxu0 %v97
  %671 = vmatpush.bf16.msra.mxu0 %v96
  %672 = vmatmul.bf16.gmra.mxu0 %v662
  %v673 = vpop.f32.mrf.mxu0
  %v674 = vadd.f32 %v87, %v673
  %v675 = vpop.f32.mrf.mxu0
  %676 = vdwg.mxu0
  %v677 = vmax.f32 %v674, 0.0
  %678 = vst.msk [vmem:[#allocation2 + $0xe0] sm:$0xff] %vm100, %v677
  %s679 = scalar_lea.vmem %s0, 116
  %v680 = vld [vmem:[%s679] sm:$0xf]
  %v682 = vsel %vm100, %v680, 0
  %684 = vmatpush.bf16.msra.mxu0 0
  %685 = vmatpush.bf16.msra.mxu0 0
  %686 = vmatpush.bf16.msra.mxu0 0
  %687 = vmatpush.bf16.msra.mxu0 0
  %688 = vmatpush.bf16.msra.mxu0 0
  %689 = vmatpush.bf16.msra.mxu0 0
  %690 = vmatpush.bf16.msra.mxu0 %v97
  %691 = vmatpush.bf16.msra.mxu0 %v96
  %692 = vmatmul.bf16.gmra.mxu0 %v682
  %v693 = vpop.f32.mrf.mxu0
  %v694 = vadd.f32 %v87, %v693
  %v695 = vpop.f32.mrf.mxu0
  %696 = vdwg.mxu0
  %v697 = vmax.f32 %v694, 0.0
  %698 = vst.msk [vmem:[#allocation2 + $0xe8] sm:$0xff] %vm100, %v697
  %s699 = scalar_lea.vmem %s0, 120
  %v700 = vld [vmem:[%s699] sm:$0xf]
  %v702 = vsel %vm100, %v700, 0
  %704 = vmatpush.bf16.msra.mxu0 0
  %705 = vmatpush.bf16.msra.mxu0 0
  %706 = vmatpush.bf16.msra.mxu0 0
  %707 = vmatpush.bf16.msra.mxu0 0
  %708 = vmatpush.bf16.msra.mxu0 0
  %709 = vmatpush.bf16.msra.mxu0 0
  %710 = vmatpush.bf16.msra.mxu0 %v97
  %711 = vmatpush.bf16.msra.mxu0 %v96
  %712 = vmatmul.bf16.gmra.mxu0 %v702
  %v713 = vpop.f32.mrf.mxu0
  %v714 = vadd.f32 %v87, %v713
  %v715 = vpop.f32.mrf.mxu0
  %716 = vdwg.mxu0
  %v717 = vmax.f32 %v714, 0.0
  %718 = vst.msk [vmem:[#allocation2 + $0xf0] sm:$0xff] %vm100, %v717
  %s719 = scalar_lea.vmem %s0, 124
  %v720 = vld [vmem:[%s719] sm:$0xf]
  %v722 = vsel %vm100, %v720, 0
  %724 = vmatpush.bf16.msra.mxu0 0
  %725 = vmatpush.bf16.msra.mxu0 0
  %726 = vmatpush.bf16.msra.mxu0 0
  %727 = vmatpush.bf16.msra.mxu0 0
  %728 = vmatpush.bf16.msra.mxu0 0
  %729 = vmatpush.bf16.msra.mxu0 0
  %730 = vmatpush.bf16.msra.mxu0 %v97
  %731 = vmatpush.bf16.msra.mxu0 %v96
  %732 = vmatmul.bf16.gmra.mxu0 %v722
  %v733 = vpop.f32.mrf.mxu0
  %v734 = vadd.f32 %v87, %v733
  %v735 = vpop.f32.mrf.mxu0
  %736 = vdwg.mxu0
  %v737 = vmax.f32 %v734, 0.0
  %738 = vst.msk [vmem:[#allocation2 + $0xf8] sm:$0xff] %vm100, %v737
  %s739 = scalar_lea.vmem %s0, 128
  %v740 = vld [vmem:[%s739] sm:$0xf]
  %v742 = vsel %vm100, %v740, 0
  %744 = vmatpush.bf16.msra.mxu0 0
  %745 = vmatpush.bf16.msra.mxu0 0
  %746 = vmatpush.bf16.msra.mxu0 0
  %747 = vmatpush.bf16.msra.mxu0 0
  %748 = vmatpush.bf16.msra.mxu0 0
  %749 = vmatpush.bf16.msra.mxu0 0
  %750 = vmatpush.bf16.msra.mxu0 %v97
  %751 = vmatpush.bf16.msra.mxu0 %v96
  %752 = vmatmul.bf16.gmra.mxu0 %v742
  %v753 = vpop.f32.mrf.mxu0
  %v754 = vadd.f32 %v87, %v753
  %v755 = vpop.f32.mrf.mxu0
  %756 = vdwg.mxu0
  %v757 = vmax.f32 %v754, 0.0
  %758 = vst.msk [vmem:[#allocation2 + $0x100] sm:$0xff] %vm100, %v757
  %s759 = scalar_lea.vmem %s0, 132
  %v760 = vld [vmem:[%s759] sm:$0xf]
  %v762 = vsel %vm100, %v760, 0
  %764 = vmatpush.bf16.msra.mxu0 0
  %765 = vmatpush.bf16.msra.mxu0 0
  %766 = vmatpush.bf16.msra.mxu0 0
  %767 = vmatpush.bf16.msra.mxu0 0
  %768 = vmatpush.bf16.msra.mxu0 0
  %769 = vmatpush.bf16.msra.mxu0 0
  %770 = vmatpush.bf16.msra.mxu0 %v97
  %771 = vmatpush.bf16.msra.mxu0 %v96
  %772 = vmatmul.bf16.gmra.mxu0 %v762
  %v773 = vpop.f32.mrf.mxu0
  %v774 = vadd.f32 %v87, %v773
  %v775 = vpop.f32.mrf.mxu0
  %776 = vdwg.mxu0
  %v777 = vmax.f32 %v774, 0.0
  %778 = vst.msk [vmem:[#allocation2 + $0x108] sm:$0xff] %vm100, %v777
  %s779 = scalar_lea.vmem %s0, 136
  %v780 = vld [vmem:[%s779] sm:$0xf]
  %v782 = vsel %vm100, %v780, 0
  %784 = vmatpush.bf16.msra.mxu0 0
  %785 = vmatpush.bf16.msra.mxu0 0
  %786 = vmatpush.bf16.msra.mxu0 0
  %787 = vmatpush.bf16.msra.mxu0 0
  %788 = vmatpush.bf16.msra.mxu0 0
  %789 = vmatpush.bf16.msra.mxu0 0
  %790 = vmatpush.bf16.msra.mxu0 %v97
  %791 = vmatpush.bf16.msra.mxu0 %v96
  %792 = vmatmul.bf16.gmra.mxu0 %v782
  %v793 = vpop.f32.mrf.mxu0
  %v794 = vadd.f32 %v87, %v793
  %v795 = vpop.f32.mrf.mxu0
  %796 = vdwg.mxu0
  %v797 = vmax.f32 %v794, 0.0
  %798 = vst.msk [vmem:[#allocation2 + $0x110] sm:$0xff] %vm100, %v797
  %s799 = scalar_lea.vmem %s0, 140
  %v800 = vld [vmem:[%s799] sm:$0xf]
  %v802 = vsel %vm100, %v800, 0
  %804 = vmatpush.bf16.msra.mxu0 0
  %805 = vmatpush.bf16.msra.mxu0 0
  %806 = vmatpush.bf16.msra.mxu0 0
  %807 = vmatpush.bf16.msra.mxu0 0
  %808 = vmatpush.bf16.msra.mxu0 0
  %809 = vmatpush.bf16.msra.mxu0 0
  %810 = vmatpush.bf16.msra.mxu0 %v97
  %811 = vmatpush.bf16.msra.mxu0 %v96
  %812 = vmatmul.bf16.gmra.mxu0 %v802
  %v813 = vpop.f32.mrf.mxu0
  %v814 = vadd.f32 %v87, %v813
  %v815 = vpop.f32.mrf.mxu0
  %816 = vdwg.mxu0
  %v817 = vmax.f32 %v814, 0.0
  %818 = vst.msk [vmem:[#allocation2 + $0x118] sm:$0xff] %vm100, %v817
  %s819 = scalar_lea.vmem %s0, 144
  %v820 = vld [vmem:[%s819] sm:$0xf]
  %v822 = vsel %vm100, %v820, 0
  %824 = vmatpush.bf16.msra.mxu0 0
  %825 = vmatpush.bf16.msra.mxu0 0
  %826 = vmatpush.bf16.msra.mxu0 0
  %827 = vmatpush.bf16.msra.mxu0 0
  %828 = vmatpush.bf16.msra.mxu0 0
  %829 = vmatpush.bf16.msra.mxu0 0
  %830 = vmatpush.bf16.msra.mxu0 %v97
  %831 = vmatpush.bf16.msra.mxu0 %v96
  %832 = vmatmul.bf16.gmra.mxu0 %v822
  %v833 = vpop.f32.mrf.mxu0
  %v834 = vadd.f32 %v87, %v833
  %v835 = vpop.f32.mrf.mxu0
  %836 = vdwg.mxu0
  %v837 = vmax.f32 %v834, 0.0
  %838 = vst.msk [vmem:[#allocation2 + $0x120] sm:$0xff] %vm100, %v837
  %s839 = scalar_lea.vmem %s0, 148
  %v840 = vld [vmem:[%s839] sm:$0xf]
  %v842 = vsel %vm100, %v840, 0
  %844 = vmatpush.bf16.msra.mxu0 0
  %845 = vmatpush.bf16.msra.mxu0 0
  %846 = vmatpush.bf16.msra.mxu0 0
  %847 = vmatpush.bf16.msra.mxu0 0
  %848 = vmatpush.bf16.msra.mxu0 0
  %849 = vmatpush.bf16.msra.mxu0 0
  %850 = vmatpush.bf16.msra.mxu0 %v97
  %851 = vmatpush.bf16.msra.mxu0 %v96
  %852 = vmatmul.bf16.gmra.mxu0 %v842
  %v853 = vpop.f32.mrf.mxu0
  %v854 = vadd.f32 %v87, %v853
  %v855 = vpop.f32.mrf.mxu0
  %856 = vdwg.mxu0
  %v857 = vmax.f32 %v854, 0.0
  %858 = vst.msk [vmem:[#allocation2 + $0x128] sm:$0xff] %vm100, %v857
  %s859 = scalar_lea.vmem %s0, 152
  %v860 = vld [vmem:[%s859] sm:$0xf]
  %v862 = vsel %vm100, %v860, 0
  %864 = vmatpush.bf16.msra.mxu0 0
  %865 = vmatpush.bf16.msra.mxu0 0
  %866 = vmatpush.bf16.msra.mxu0 0
  %867 = vmatpush.bf16.msra.mxu0 0
  %868 = vmatpush.bf16.msra.mxu0 0
  %869 = vmatpush.bf16.msra.mxu0 0
  %870 = vmatpush.bf16.msra.mxu0 %v97
  %871 = vmatpush.bf16.msra.mxu0 %v96
  %872 = vmatmul.bf16.gmra.mxu0 %v862
  %v873 = vpop.f32.mrf.mxu0
  %v874 = vadd.f32 %v87, %v873
  %v875 = vpop.f32.mrf.mxu0
  %876 = vdwg.mxu0
  %v877 = vmax.f32 %v874, 0.0
  %878 = vst.msk [vmem:[#allocation2 + $0x130] sm:$0xff] %vm100, %v877
  %s879 = scalar_lea.vmem %s0, 156
  %v880 = vld [vmem:[%s879] sm:$0xf]
  %v882 = vsel %vm100, %v880, 0
  %884 = vmatpush.bf16.msra.mxu0 0
  %885 = vmatpush.bf16.msra.mxu0 0
  %886 = vmatpush.bf16.msra.mxu0 0
  %887 = vmatpush.bf16.msra.mxu0 0
  %888 = vmatpush.bf16.msra.mxu0 0
  %889 = vmatpush.bf16.msra.mxu0 0
  %890 = vmatpush.bf16.msra.mxu0 %v97
  %891 = vmatpush.bf16.msra.mxu0 %v96
  %892 = vmatmul.bf16.gmra.mxu0 %v882
  %v893 = vpop.f32.mrf.mxu0
  %v894 = vadd.f32 %v87, %v893
  %v895 = vpop.f32.mrf.mxu0
  %896 = vdwg.mxu0
  %v897 = vmax.f32 %v894, 0.0
  %898 = vst.msk [vmem:[#allocation2 + $0x138] sm:$0xff] %vm100, %v897
  %s899 = scalar_lea.vmem %s0, 160
  %v900 = vld [vmem:[%s899] sm:$0xf]
  %v902 = vsel %vm100, %v900, 0
  %904 = vmatpush.bf16.msra.mxu0 0
  %905 = vmatpush.bf16.msra.mxu0 0
  %906 = vmatpush.bf16.msra.mxu0 0
  %907 = vmatpush.bf16.msra.mxu0 0
  %908 = vmatpush.bf16.msra.mxu0 0
  %909 = vmatpush.bf16.msra.mxu0 0
  %910 = vmatpush.bf16.msra.mxu0 %v97
  %911 = vmatpush.bf16.msra.mxu0 %v96
  %912 = vmatmul.bf16.gmra.mxu0 %v902
  %v913 = vpop.f32.mrf.mxu0
  %v914 = vadd.f32 %v87, %v913
  %v915 = vpop.f32.mrf.mxu0
  %916 = vdwg.mxu0
  %v917 = vmax.f32 %v914, 0.0
  %918 = vst.msk [vmem:[#allocation2 + $0x140] sm:$0xff] %vm100, %v917
  %s919 = scalar_lea.vmem %s0, 164
  %v920 = vld [vmem:[%s919] sm:$0xf]
  %v922 = vsel %vm100, %v920, 0
  %924 = vmatpush.bf16.msra.mxu0 0
  %925 = vmatpush.bf16.msra.mxu0 0
  %926 = vmatpush.bf16.msra.mxu0 0
  %927 = vmatpush.bf16.msra.mxu0 0
  %928 = vmatpush.bf16.msra.mxu0 0
  %929 = vmatpush.bf16.msra.mxu0 0
  %930 = vmatpush.bf16.msra.mxu0 %v97
  %931 = vmatpush.bf16.msra.mxu0 %v96
  %932 = vmatmul.bf16.gmra.mxu0 %v922
  %v933 = vpop.f32.mrf.mxu0
  %v934 = vadd.f32 %v87, %v933
  %v935 = vpop.f32.mrf.mxu0
  %936 = vdwg.mxu0
  %v937 = vmax.f32 %v934, 0.0
  %938 = vst.msk [vmem:[#allocation2 + $0x148] sm:$0xff] %vm100, %v937
  %s939 = scalar_lea.vmem %s0, 168
  %v940 = vld [vmem:[%s939] sm:$0xf]
  %v942 = vsel %vm100, %v940, 0
  %944 = vmatpush.bf16.msra.mxu0 0
  %945 = vmatpush.bf16.msra.mxu0 0
  %946 = vmatpush.bf16.msra.mxu0 0
  %947 = vmatpush.bf16.msra.mxu0 0
  %948 = vmatpush.bf16.msra.mxu0 0
  %949 = vmatpush.bf16.msra.mxu0 0
  %950 = vmatpush.bf16.msra.mxu0 %v97
  %951 = vmatpush.bf16.msra.mxu0 %v96
  %952 = vmatmul.bf16.gmra.mxu0 %v942
  %v953 = vpop.f32.mrf.mxu0
  %v954 = vadd.f32 %v87, %v953
  %v955 = vpop.f32.mrf.mxu0
  %956 = vdwg.mxu0
  %v957 = vmax.f32 %v954, 0.0
  %958 = vst.msk [vmem:[#allocation2 + $0x150] sm:$0xff] %vm100, %v957
  %s959 = scalar_lea.vmem %s0, 172
  %v960 = vld [vmem:[%s959] sm:$0xf]
  %v962 = vsel %vm100, %v960, 0
  %964 = vmatpush.bf16.msra.mxu0 0
  %965 = vmatpush.bf16.msra.mxu0 0
  %966 = vmatpush.bf16.msra.mxu0 0
  %967 = vmatpush.bf16.msra.mxu0 0
  %968 = vmatpush.bf16.msra.mxu0 0
  %969 = vmatpush.bf16.msra.mxu0 0
  %970 = vmatpush.bf16.msra.mxu0 %v97
  %971 = vmatpush.bf16.msra.mxu0 %v96
  %972 = vmatmul.bf16.gmra.mxu0 %v962
  %v973 = vpop.f32.mrf.mxu0
  %v974 = vadd.f32 %v87, %v973
  %v975 = vpop.f32.mrf.mxu0
  %976 = vdwg.mxu0
  %v977 = vmax.f32 %v974, 0.0
  %978 = vst.msk [vmem:[#allocation2 + $0x158] sm:$0xff] %vm100, %v977
  %s979 = scalar_lea.vmem %s0, 176
  %v980 = vld [vmem:[%s979] sm:$0xf]
  %v982 = vsel %vm100, %v980, 0
  %984 = vmatpush.bf16.msra.mxu0 0
  %985 = vmatpush.bf16.msra.mxu0 0
  %986 = vmatpush.bf16.msra.mxu0 0
  %987 = vmatpush.bf16.msra.mxu0 0
  %988 = vmatpush.bf16.msra.mxu0 0
  %989 = vmatpush.bf16.msra.mxu0 0
  %990 = vmatpush.bf16.msra.mxu0 %v97
  %991 = vmatpush.bf16.msra.mxu0 %v96
  %992 = vmatmul.bf16.gmra.mxu0 %v982
  %v993 = vpop.f32.mrf.mxu0
  %v994 = vadd.f32 %v87, %v993
  %v995 = vpop.f32.mrf.mxu0
  %996 = vdwg.mxu0
  %v997 = vmax.f32 %v994, 0.0
  %998 = vst.msk [vmem:[#allocation2 + $0x160] sm:$0xff] %vm100, %v997
  %s999 = scalar_lea.vmem %s0, 180
  %v1000 = vld [vmem:[%s999] sm:$0xf]
  %v1002 = vsel %vm100, %v1000, 0
  %1004 = vmatpush.bf16.msra.mxu0 0
  %1005 = vmatpush.bf16.msra.mxu0 0
  %1006 = vmatpush.bf16.msra.mxu0 0
  %1007 = vmatpush.bf16.msra.mxu0 0
  %1008 = vmatpush.bf16.msra.mxu0 0
  %1009 = vmatpush.bf16.msra.mxu0 0
  %1010 = vmatpush.bf16.msra.mxu0 %v97
  %1011 = vmatpush.bf16.msra.mxu0 %v96
  %1012 = vmatmul.bf16.gmra.mxu0 %v1002
  %v1013 = vpop.f32.mrf.mxu0
  %v1014 = vadd.f32 %v87, %v1013
  %v1015 = vpop.f32.mrf.mxu0
  %1016 = vdwg.mxu0
  %v1017 = vmax.f32 %v1014, 0.0
  %1018 = vst.msk [vmem:[#allocation2 + $0x168] sm:$0xff] %vm100, %v1017
  %s1019 = scalar_lea.vmem %s0, 184
  %v1020 = vld [vmem:[%s1019] sm:$0xf]
  %v1022 = vsel %vm100, %v1020, 0
  %1024 = vmatpush.bf16.msra.mxu0 0
  %1025 = vmatpush.bf16.msra.mxu0 0
  %1026 = vmatpush.bf16.msra.mxu0 0
  %1027 = vmatpush.bf16.msra.mxu0 0
  %1028 = vmatpush.bf16.msra.mxu0 0
  %1029 = vmatpush.bf16.msra.mxu0 0
  %1030 = vmatpush.bf16.msra.mxu0 %v97
  %1031 = vmatpush.bf16.msra.mxu0 %v96
  %1032 = vmatmul.bf16.gmra.mxu0 %v1022
  %v1033 = vpop.f32.mrf.mxu0
  %v1034 = vadd.f32 %v87, %v1033
  %v1035 = vpop.f32.mrf.mxu0
  %1036 = vdwg.mxu0
  %v1037 = vmax.f32 %v1034, 0.0
  %1038 = vst.msk [vmem:[#allocation2 + $0x170] sm:$0xff] %vm100, %v1037
  %s1039 = scalar_lea.vmem %s0, 188
  %v1040 = vld [vmem:[%s1039] sm:$0xf]
  %v1042 = vsel %vm100, %v1040, 0
  %1044 = vmatpush.bf16.msra.mxu0 0
  %1045 = vmatpush.bf16.msra.mxu0 0
  %1046 = vmatpush.bf16.msra.mxu0 0
  %1047 = vmatpush.bf16.msra.mxu0 0
  %1048 = vmatpush.bf16.msra.mxu0 0
  %1049 = vmatpush.bf16.msra.mxu0 0
  %1050 = vmatpush.bf16.msra.mxu0 %v97
  %1051 = vmatpush.bf16.msra.mxu0 %v96
  %1052 = vmatmul.bf16.gmra.mxu0 %v1042
  %v1053 = vpop.f32.mrf.mxu0
  %v1054 = vadd.f32 %v87, %v1053
  %v1055 = vpop.f32.mrf.mxu0
  %1056 = vdwg.mxu0
  %v1057 = vmax.f32 %v1054, 0.0
  %1058 = vst.msk [vmem:[#allocation2 + $0x178] sm:$0xff] %vm100, %v1057
  %s1059 = scalar_lea.vmem %s0, 192
  %v1060 = vld [vmem:[%s1059] sm:$0xf]
  %v1062 = vsel %vm100, %v1060, 0
  %1064 = vmatpush.bf16.msra.mxu0 0
  %1065 = vmatpush.bf16.msra.mxu0 0
  %1066 = vmatpush.bf16.msra.mxu0 0
  %1067 = vmatpush.bf16.msra.mxu0 0
  %1068 = vmatpush.bf16.msra.mxu0 0
  %1069 = vmatpush.bf16.msra.mxu0 0
  %1070 = vmatpush.bf16.msra.mxu0 %v97
  %1071 = vmatpush.bf16.msra.mxu0 %v96
  %1072 = vmatmul.bf16.gmra.mxu0 %v1062
  %v1073 = vpop.f32.mrf.mxu0
  %v1074 = vadd.f32 %v87, %v1073
  %v1075 = vpop.f32.mrf.mxu0
  %1076 = vdwg.mxu0
  %v1077 = vmax.f32 %v1074, 0.0
  %1078 = vst.msk [vmem:[#allocation2 + $0x180] sm:$0xff] %vm100, %v1077
  %v1079 = vld [vmem:[#allocation2] sm:$0xff]
  %v1080 = vld [vmem:[#allocation2 + $0x8] sm:$0xff]
  %v1081 = vld [vmem:[#allocation2 + $0x10] sm:$0xff]
  %v1082 = vld [vmem:[#allocation2 + $0x18] sm:$0xff]
  %v1083 = vld [vmem:[#allocation2 + $0x20] sm:$0xff]
  %v1084 = vpack.c.bf16 %v1080, %v1079
  %v1085 = vpack.c.bf16 %v1082, %v1081
  %v1086 = vpack.c.bf16 %v1083, %v1083
  %v1087 = vld [vmem:[#allocation2 + $0x28] sm:$0xff]
  %v1088 = vpack.c.bf16 %v1081, %v1080
  %v1089 = vpack.c.bf16 %v1083, %v1082
  %v1090 = vpack.c.bf16 %v1087, %v1087
  %v1095 = vunpack.c.l.b16 %v40
  %v1096 = vunpack.c.l.b16 %v41
  %v1097 = vunpack.c.l.b16 %v42
  %v1098 = vunpack.c.l.b16 %v43
  %v1099 = vpack.c.b16 %v1096, %v1095
  %v1100 = vpack.c.b16 %v1098, %v1097
  %v1104 = vsel %vm100, %v1088, 0
  %v1107 = vsel %vm100, %v1089, 0
  %v1110 = vsel %vm100, %v1090, 0
  %1112 = vmatpush.bf16.msra.mxu0 0
  %1113 = vmatpush.bf16.msra.mxu0 0
  %1114 = vmatpush.bf16.msra.mxu0 0
  %1115 = vmatpush.bf16.msra.mxu0 0
  %1116 = vmatpush.bf16.msra.mxu0 0
  %1117 = vmatpush.bf16.msra.mxu0 0
  %1118 = vmatpush.bf16.msra.mxu0 %v1100
  %1119 = vmatpush.bf16.msra.mxu0 %v1099
  %1120 = vmatmul.bf16.gmra.mxu0 %v1104
  %v1121 = vpop.f32.mrf.mxu0
  %v1122 = vadd.f32 0.0, %v1121
  %v1123 = vpop.f32.mrf.mxu0
  %v1124 = vadd.f32 0.0, %v1123
  %1125 = vmatmul.bf16.gmra.mxu0 %v1107
  %v1126 = vpop.f32.mrf.mxu0
  %v1127 = vadd.f32 0.0, %v1126
  %v1128 = vpop.f32.mrf.mxu0
  %v1129 = vadd.f32 0.0, %v1128
  %1130 = vmatmul.bf16.gmra.mxu0 %v1110
  %v1131 = vpop.f32.mrf.mxu0
  %v1132 = vadd.f32 0.0, %v1131
  %v1133 = vpop.f32.mrf.mxu0
  %1134 = vdwg.mxu0
  %v1139 = vunpack.c.l.b16 %v35
  %v1140 = vunpack.c.l.b16 %v36
  %v1141 = vunpack.c.l.b16 %v37
  %v1142 = vunpack.c.l.b16 %v38
  %v1143 = vpack.c.b16 %v1140, %v1139
  %v1144 = vpack.c.b16 %v1142, %v1141
  %v1148 = vsel %vm100, %v1084, 0
  %v1151 = vsel %vm100, %v1085, 0
  %v1154 = vsel %vm100, %v1086, 0
  %1156 = vmatpush.bf16.msra.mxu0 0
  %1157 = vmatpush.bf16.msra.mxu0 0
  %1158 = vmatpush.bf16.msra.mxu0 0
  %1159 = vmatpush.bf16.msra.mxu0 0
  %1160 = vmatpush.bf16.msra.mxu0 0
  %1161 = vmatpush.bf16.msra.mxu0 0
  %1162 = vmatpush.bf16.msra.mxu0 %v1144
  %1163 = vmatpush.bf16.msra.mxu0 %v1143
  %1164 = vmatmul.bf16.gmra.mxu0 %v1148
  %v1165 = vpop.f32.mrf.mxu0
  %v1166 = vadd.f32 %v1122, %v1165
  %v1167 = vpop.f32.mrf.mxu0
  %v1168 = vadd.f32 %v1124, %v1167
  %1169 = vmatmul.bf16.gmra.mxu0 %v1151
  %v1170 = vpop.f32.mrf.mxu0
  %v1171 = vadd.f32 %v1127, %v1170
  %v1172 = vpop.f32.mrf.mxu0
  %v1173 = vadd.f32 %v1129, %v1172
  %1174 = vmatmul.bf16.gmra.mxu0 %v1154
  %v1175 = vpop.f32.mrf.mxu0
  %v1176 = vadd.f32 %v1132, %v1175
  %v1177 = vpop.f32.mrf.mxu0
  %1178 = vdwg.mxu0
  %v1179 = vld [vmem:[#allocation2 + $0x10] sm:$0xff]
  %v1180 = vld [vmem:[#allocation2 + $0x18] sm:$0xff]
  %v1181 = vld [vmem:[#allocation2 + $0x20] sm:$0xff]
  %v1182 = vld [vmem:[#allocation2 + $0x28] sm:$0xff]
  %v1183 = vld [vmem:[#allocation2 + $0x30] sm:$0xff]
  %v1184 = vpack.c.bf16 %v1180, %v1179
  %v1185 = vpack.c.bf16 %v1182, %v1181
  %v1186 = vpack.c.bf16 %v1183, %v1183
  %v1191 = vunpack.c.l.b16 %v45
  %v1192 = vunpack.c.l.b16 %v46
  %v1193 = vunpack.c.l.b16 %v47
  %v1194 = vunpack.c.l.b16 %v48
  %v1195 = vpack.c.b16 %v1192, %v1191
  %v1196 = vpack.c.b16 %v1194, %v1193
  %v1200 = vsel %vm100, %v1184, 0
  %v1203 = vsel %vm100, %v1185, 0
  %v1206 = vsel %vm100, %v1186, 0
  %1208 = vmatpush.bf16.msra.mxu0 0
  %1209 = vmatpush.bf16.msra.mxu0 0
  %1210 = vmatpush.bf16.msra.mxu0 0
  %1211 = vmatpush.bf16.msra.mxu0 0
  %1212 = vmatpush.bf16.msra.mxu0 0
  %1213 = vmatpush.bf16.msra.mxu0 0
  %1214 = vmatpush.bf16.msra.mxu0 %v1196
  %1215 = vmatpush.bf16.msra.mxu0 %v1195
  %1216 = vmatmul.bf16.gmra.mxu0 %v1200
  %v1217 = vpop.f32.mrf.mxu0
  %v1218 = vadd.f32 0.0, %v1217
  %v1219 = vpop.f32.mrf.mxu0
  %v1220 = vadd.f32 0.0, %v1219
  %1221 = vmatmul.bf16.gmra.mxu0 %v1203
  %v1222 = vpop.f32.mrf.mxu0
  %v1223 = vadd.f32 0.0, %v1222
  %v1224 = vpop.f32.mrf.mxu0
  %v1225 = vadd.f32 0.0, %v1224
  %1226 = vmatmul.bf16.gmra.mxu0 %v1206
  %v1227 = vpop.f32.mrf.mxu0
  %v1228 = vadd.f32 0.0, %v1227
  %v1229 = vpop.f32.mrf.mxu0
  %1230 = vdwg.mxu0
  %v1231 = vadd.f32 %v1166, %v1218
  %v1232 = vadd.f32 %v1168, %v1220
  %v1233 = vadd.f32 %v1171, %v1223
  %v1234 = vadd.f32 %v1173, %v1225
  %v1235 = vadd.f32 %v1176, %v1228
  %v1236 = vld [vmem:[#allocation2 + $0x38] sm:$0xff]
  %v1237 = vld [vmem:[#allocation2 + $0x40] sm:$0xff]
  %v1238 = vld [vmem:[#allocation2 + $0x48] sm:$0xff]
  %v1239 = vld [vmem:[#allocation2 + $0x50] sm:$0xff]
  %v1240 = vld [vmem:[#allocation2 + $0x58] sm:$0xff]
  %v1241 = vpack.c.bf16 %v1237, %v1236
  %v1242 = vpack.c.bf16 %v1239, %v1238
  %v1243 = vpack.c.bf16 %v1240, %v1240
  %v1248 = vunpack.c.l.b16 %v50
  %v1249 = vunpack.c.l.b16 %v51
  %v1250 = vunpack.c.l.b16 %v52
  %v1251 = vunpack.c.l.b16 %v53
  %v1252 = vpack.c.b16 %v1249, %v1248
  %v1253 = vpack.c.b16 %v1251, %v1250
  %v1257 = vsel %vm100, %v1241, 0
  %v1260 = vsel %vm100, %v1242, 0
  %v1263 = vsel %vm100, %v1243, 0
  %1265 = vmatpush.bf16.msra.mxu0 0
  %1266 = vmatpush.bf16.msra.mxu0 0
  %1267 = vmatpush.bf16.msra.mxu0 0
  %1268 = vmatpush.bf16.msra.mxu0 0
  %1269 = vmatpush.bf16.msra.mxu0 0
  %1270 = vmatpush.bf16.msra.mxu0 0
  %1271 = vmatpush.bf16.msra.mxu0 %v1253
  %1272 = vmatpush.bf16.msra.mxu0 %v1252
  %1273 = vmatmul.bf16.gmra.mxu0 %v1257
  %v1274 = vpop.f32.mrf.mxu0
  %v1275 = vadd.f32 0.0, %v1274
  %v1276 = vpop.f32.mrf.mxu0
  %v1277 = vadd.f32 0.0, %v1276
  %1278 = vmatmul.bf16.gmra.mxu0 %v1260
  %v1279 = vpop.f32.mrf.mxu0
  %v1280 = vadd.f32 0.0, %v1279
  %v1281 = vpop.f32.mrf.mxu0
  %v1282 = vadd.f32 0.0, %v1281
  %1283 = vmatmul.bf16.gmra.mxu0 %v1263
  %v1284 = vpop.f32.mrf.mxu0
  %v1285 = vadd.f32 0.0, %v1284
  %v1286 = vpop.f32.mrf.mxu0
  %1287 = vdwg.mxu0
  %v1288 = vadd.f32 %v1231, %v1275
  %v1289 = vadd.f32 %v1232, %v1277
  %v1290 = vadd.f32 %v1233, %v1280
  %v1291 = vadd.f32 %v1234, %v1282
  %v1292 = vadd.f32 %v1235, %v1285
  %v1293 = vld [vmem:[#allocation2 + $0x40] sm:$0xff]
  %v1294 = vld [vmem:[#allocation2 + $0x48] sm:$0xff]
  %v1295 = vld [vmem:[#allocation2 + $0x50] sm:$0xff]
  %v1296 = vld [vmem:[#allocation2 + $0x58] sm:$0xff]
  %v1297 = vld [vmem:[#allocation2 + $0x60] sm:$0xff]
  %v1298 = vpack.c.bf16 %v1294, %v1293
  %v1299 = vpack.c.bf16 %v1296, %v1295
  %v1300 = vpack.c.bf16 %v1297, %v1297
  %v1305 = vunpack.c.l.b16 %v55
  %v1306 = vunpack.c.l.b16 %v56
  %v1307 = vunpack.c.l.b16 %v57
  %v1308 = vunpack.c.l.b16 %v58
  %v1309 = vpack.c.b16 %v1306, %v1305
  %v1310 = vpack.c.b16 %v1308, %v1307
  %v1314 = vsel %vm100, %v1298, 0
  %v1317 = vsel %vm100, %v1299, 0
  %v1320 = vsel %vm100, %v1300, 0
  %1322 = vmatpush.bf16.msra.mxu0 0
  %1323 = vmatpush.bf16.msra.mxu0 0
  %1324 = vmatpush.bf16.msra.mxu0 0
  %1325 = vmatpush.bf16.msra.mxu0 0
  %1326 = vmatpush.bf16.msra.mxu0 0
  %1327 = vmatpush.bf16.msra.mxu0 0
  %1328 = vmatpush.bf16.msra.mxu0 %v1310
  %1329 = vmatpush.bf16.msra.mxu0 %v1309
  %1330 = vmatmul.bf16.gmra.mxu0 %v1314
  %v1331 = vpop.f32.mrf.mxu0
  %v1332 = vadd.f32 0.0, %v1331
  %v1333 = vpop.f32.mrf.mxu0
  %v1334 = vadd.f32 0.0, %v1333
  %1335 = vmatmul.bf16.gmra.mxu0 %v1317
  %v1336 = vpop.f32.mrf.mxu0
  %v1337 = vadd.f32 0.0, %v1336
  %v1338 = vpop.f32.mrf.mxu0
  %v1339 = vadd.f32 0.0, %v1338
  %1340 = vmatmul.bf16.gmra.mxu0 %v1320
  %v1341 = vpop.f32.mrf.mxu0
  %v1342 = vadd.f32 0.0, %v1341
  %v1343 = vpop.f32.mrf.mxu0
  %1344 = vdwg.mxu0
  %v1345 = vadd.f32 %v1288, %v1332
  %v1346 = vadd.f32 %v1289, %v1334
  %v1347 = vadd.f32 %v1290, %v1337
  %v1348 = vadd.f32 %v1291, %v1339
  %v1349 = vadd.f32 %v1292, %v1342
  %v1350 = vld [vmem:[#allocation2 + $0x48] sm:$0xff]
  %v1351 = vld [vmem:[#allocation2 + $0x50] sm:$0xff]
  %v1352 = vld [vmem:[#allocation2 + $0x58] sm:$0xff]
  %v1353 = vld [vmem:[#allocation2 + $0x60] sm:$0xff]
  %v1354 = vld [vmem:[#allocation2 + $0x68] sm:$0xff]
  %v1355 = vpack.c.bf16 %v1351, %v1350
  %v1356 = vpack.c.bf16 %v1353, %v1352
  %v1357 = vpack.c.bf16 %v1354, %v1354
  %v1362 = vunpack.c.l.b16 %v60
  %v1363 = vunpack.c.l.b16 %v61
  %v1364 = vunpack.c.l.b16 %v62
  %v1365 = vunpack.c.l.b16 %v63
  %v1366 = vpack.c.b16 %v1363, %v1362
  %v1367 = vpack.c.b16 %v1365, %v1364
  %v1371 = vsel %vm100, %v1355, 0
  %v1374 = vsel %vm100, %v1356, 0
  %v1377 = vsel %vm100, %v1357, 0
  %1379 = vmatpush.bf16.msra.mxu0 0
  %1380 = vmatpush.bf16.msra.mxu0 0
  %1381 = vmatpush.bf16.msra.mxu0 0
  %1382 = vmatpush.bf16.msra.mxu0 0
  %1383 = vmatpush.bf16.msra.mxu0 0
  %1384 = vmatpush.bf16.msra.mxu0 0
  %1385 = vmatpush.bf16.msra.mxu0 %v1367
  %1386 = vmatpush.bf16.msra.mxu0 %v1366
  %1387 = vmatmul.bf16.gmra.mxu0 %v1371
  %v1388 = vpop.f32.mrf.mxu0
  %v1389 = vadd.f32 0.0, %v1388
  %v1390 = vpop.f32.mrf.mxu0
  %v1391 = vadd.f32 0.0, %v1390
  %1392 = vmatmul.bf16.gmra.mxu0 %v1374
  %v1393 = vpop.f32.mrf.mxu0
  %v1394 = vadd.f32 0.0, %v1393
  %v1395 = vpop.f32.mrf.mxu0
  %v1396 = vadd.f32 0.0, %v1395
  %1397 = vmatmul.bf16.gmra.mxu0 %v1377
  %v1398 = vpop.f32.mrf.mxu0
  %v1399 = vadd.f32 0.0, %v1398
  %v1400 = vpop.f32.mrf.mxu0
  %1401 = vdwg.mxu0
  %v1402 = vadd.f32 %v1345, %v1389
  %v1403 = vadd.f32 %v1346, %v1391
  %v1404 = vadd.f32 %v1347, %v1394
  %v1405 = vadd.f32 %v1348, %v1396
  %v1406 = vadd.f32 %v1349, %v1399
  %v1407 = vld [vmem:[#allocation2 + $0x70] sm:$0xff]
  %v1408 = vld [vmem:[#allocation2 + $0x78] sm:$0xff]
  %v1409 = vld [vmem:[#allocation2 + $0x80] sm:$0xff]
  %v1410 = vld [vmem:[#allocation2 + $0x88] sm:$0xff]
  %v1411 = vld [vmem:[#allocation2 + $0x90] sm:$0xff]
  %v1412 = vpack.c.bf16 %v1408, %v1407
  %v1413 = vpack.c.bf16 %v1410, %v1409
  %v1414 = vpack.c.bf16 %v1411, %v1411
  %v1419 = vunpack.c.l.b16 %v65
  %v1420 = vunpack.c.l.b16 %v66
  %v1421 = vunpack.c.l.b16 %v67
  %v1422 = vunpack.c.l.b16 %v68
  %v1423 = vpack.c.b16 %v1420, %v1419
  %v1424 = vpack.c.b16 %v1422, %v1421
  %v1428 = vsel %vm100, %v1412, 0
  %v1431 = vsel %vm100, %v1413, 0
  %v1434 = vsel %vm100, %v1414, 0
  %1436 = vmatpush.bf16.msra.mxu0 0
  %1437 = vmatpush.bf16.msra.mxu0 0
  %1438 = vmatpush.bf16.msra.mxu0 0
  %1439 = vmatpush.bf16.msra.mxu0 0
  %1440 = vmatpush.bf16.msra.mxu0 0
  %1441 = vmatpush.bf16.msra.mxu0 0
  %1442 = vmatpush.bf16.msra.mxu0 %v1424
  %1443 = vmatpush.bf16.msra.mxu0 %v1423
  %1444 = vmatmul.bf16.gmra.mxu0 %v1428
  %v1445 = vpop.f32.mrf.mxu0
  %v1446 = vadd.f32 0.0, %v1445
  %v1447 = vpop.f32.mrf.mxu0
  %v1448 = vadd.f32 0.0, %v1447
  %1449 = vmatmul.bf16.gmra.mxu0 %v1431
  %v1450 = vpop.f32.mrf.mxu0
  %v1451 = vadd.f32 0.0, %v1450
  %v1452 = vpop.f32.mrf.mxu0
  %v1453 = vadd.f32 0.0, %v1452
  %1454 = vmatmul.bf16.gmra.mxu0 %v1434
  %v1455 = vpop.f32.mrf.mxu0
  %v1456 = vadd.f32 0.0, %v1455
  %v1457 = vpop.f32.mrf.mxu0
  %1458 = vdwg.mxu0
  %v1459 = vadd.f32 %v1402, %v1446
  %v1460 = vadd.f32 %v1403, %v1448
  %v1461 = vadd.f32 %v1404, %v1451
  %v1462 = vadd.f32 %v1405, %v1453
  %v1463 = vadd.f32 %v1406, %v1456
  %v1464 = vld [vmem:[#allocation2 + $0x78] sm:$0xff]
  %v1465 = vld [vmem:[#allocation2 + $0x80] sm:$0xff]
  %v1466 = vld [vmem:[#allocation2 + $0x88] sm:$0xff]
  %v1467 = vld [vmem:[#allocation2 + $0x90] sm:$0xff]
  %v1468 = vld [vmem:[#allocation2 + $0x98] sm:$0xff]
  %v1469 = vpack.c.bf16 %v1465, %v1464
  %v1470 = vpack.c.bf16 %v1467, %v1466
  %v1471 = vpack.c.bf16 %v1468, %v1468
  %v1476 = vunpack.c.l.b16 %v70
  %v1477 = vunpack.c.l.b16 %v71
  %v1478 = vunpack.c.l.b16 %v72
  %v1479 = vunpack.c.l.b16 %v73
  %v1480 = vpack.c.b16 %v1477, %v1476
  %v1481 = vpack.c.b16 %v1479, %v1478
  %v1485 = vsel %vm100, %v1469, 0
  %v1488 = vsel %vm100, %v1470, 0
  %v1491 = vsel %vm100, %v1471, 0
  %1493 = vmatpush.bf16.msra.mxu0 0
  %1494 = vmatpush.bf16.msra.mxu0 0
  %1495 = vmatpush.bf16.msra.mxu0 0
  %1496 = vmatpush.bf16.msra.mxu0 0
  %1497 = vmatpush.bf16.msra.mxu0 0
  %1498 = vmatpush.bf16.msra.mxu0 0
  %1499 = vmatpush.bf16.msra.mxu0 %v1481
  %1500 = vmatpush.bf16.msra.mxu0 %v1480
  %1501 = vmatmul.bf16.gmra.mxu0 %v1485
  %v1502 = vpop.f32.mrf.mxu0
  %v1503 = vadd.f32 0.0, %v1502
  %v1504 = vpop.f32.mrf.mxu0
  %v1505 = vadd.f32 0.0, %v1504
  %1506 = vmatmul.bf16.gmra.mxu0 %v1488
  %v1507 = vpop.f32.mrf.mxu0
  %v1508 = vadd.f32 0.0, %v1507
  %v1509 = vpop.f32.mrf.mxu0
  %v1510 = vadd.f32 0.0, %v1509
  %1511 = vmatmul.bf16.gmra.mxu0 %v1491
  %v1512 = vpop.f32.mrf.mxu0
  %v1513 = vadd.f32 0.0, %v1512
  %v1514 = vpop.f32.mrf.mxu0
  %1515 = vdwg.mxu0
  %v1516 = vadd.f32 %v1459, %v1503
  %v1517 = vadd.f32 %v1460, %v1505
  %v1518 = vadd.f32 %v1461, %v1508
  %v1519 = vadd.f32 %v1462, %v1510
  %v1520 = vadd.f32 %v1463, %v1513
  %v1521 = vld [vmem:[#allocation2 + $0x80] sm:$0xff]
  %v1522 = vld [vmem:[#allocation2 + $0x88] sm:$0xff]
  %v1523 = vld [vmem:[#allocation2 + $0x90] sm:$0xff]
  %v1524 = vld [vmem:[#allocation2 + $0x98] sm:$0xff]
  %v1525 = vld [vmem:[#allocation2 + $0xa0] sm:$0xff]
  %v1526 = vpack.c.bf16 %v1522, %v1521
  %v1527 = vpack.c.bf16 %v1524, %v1523
  %v1528 = vpack.c.bf16 %v1525, %v1525
  %v1533 = vunpack.c.l.b16 %v75
  %v1534 = vunpack.c.l.b16 %v76
  %v1535 = vunpack.c.l.b16 %v77
  %v1536 = vunpack.c.l.b16 %v78
  %v1537 = vpack.c.b16 %v1534, %v1533
  %v1538 = vpack.c.b16 %v1536, %v1535
  %v1542 = vsel %vm100, %v1526, 0
  %v1545 = vsel %vm100, %v1527, 0
  %v1548 = vsel %vm100, %v1528, 0
  %1550 = vmatpush.bf16.msra.mxu0 0
  %1551 = vmatpush.bf16.msra.mxu0 0
  %1552 = vmatpush.bf16.msra.mxu0 0
  %1553 = vmatpush.bf16.msra.mxu0 0
  %1554 = vmatpush.bf16.msra.mxu0 0
  %1555 = vmatpush.bf16.msra.mxu0 0
  %1556 = vmatpush.bf16.msra.mxu0 %v1538
  %1557 = vmatpush.bf16.msra.mxu0 %v1537
  %1558 = vmatmul.bf16.gmra.mxu0 %v1542
  %v1559 = vpop.f32.mrf.mxu0
  %v1560 = vadd.f32 0.0, %v1559
  %v1561 = vpop.f32.mrf.mxu0
  %v1562 = vadd.f32 0.0, %v1561
  %1563 = vmatmul.bf16.gmra.mxu0 %v1545
  %v1564 = vpop.f32.mrf.mxu0
  %v1565 = vadd.f32 0.0, %v1564
  %v1566 = vpop.f32.mrf.mxu0
  %v1567 = vadd.f32 0.0, %v1566
  %1568 = vmatmul.bf16.gmra.mxu0 %v1548
  %v1569 = vpop.f32.mrf.mxu0
  %v1570 = vadd.f32 0.0, %v1569
  %v1571 = vpop.f32.mrf.mxu0
  %1572 = vdwg.mxu0
  %v1573 = vadd.f32 %v1516, %v1560
  %v1574 = vadd.f32 %v1517, %v1562
  %v1575 = vadd.f32 %v1518, %v1565
  %v1576 = vadd.f32 %v1519, %v1567
  %v1577 = vadd.f32 %v1520, %v1570
  %v1578 = vperm.slane %v80, 0
  %v1579 = vadd.f32 %v1573, %v1578
  %v1580 = vadd.f32 %v1574, %v1578
  %v1581 = vadd.f32 %v1575, %v1578
  %v1582 = vadd.f32 %v1576, %v1578
  %v1583 = vadd.f32 %v1577, %v1578
  %v1584 = vmax.f32 %v1579, 0.0
  %v1585 = vmax.f32 %v1580, 0.0
  %v1586 = vmax.f32 %v1581, 0.0
  %v1587 = vmax.f32 %v1582, 0.0
  %v1588 = vmax.f32 %v1583, 0.0
  %s1589 = scalar_lea.vmem %s2, 160
  %v1590 = vld [vmem:[%s1589] sm:$0xf]
  %v1591 = vld [vmem:[%s1589 + $0x4] sm:$0xf]
  %v1592 = vld [vmem:[%s1589 + $0x8] sm:$0xf]
  %v1593 = vld [vmem:[%s1589 + $0xc] sm:$0xf]
  %v1594 = vpack.c.bf16 %v1584, %v1584
  %s1595 = scalar_lea.vmem %s2, 176
  %v1596 = vld [vmem:[%s1595] sm:$0xf]
  %v1597 = vld [vmem:[%s1595 + $0x4] sm:$0xf]
  %v1598 = vld [vmem:[%s1595 + $0x8] sm:$0xf]
  %v1599 = vld [vmem:[%s1595 + $0xc] sm:$0xf]
  %v1600 = vpack.c.bf16 %v1585, %v1585
  %v1605 = vunpack.c.l.b16 %v1596
  %v1606 = vunpack.c.l.b16 %v1597
  %v1607 = vunpack.c.l.b16 %v1598
  %v1608 = vunpack.c.l.b16 %v1599
  %v1609 = vpack.c.b16 %v1606, %v1605
  %v1610 = vpack.c.b16 %v1608, %v1607
  %v1614 = vsel %vm100, %v1600, 0
  %1616 = vmatpush.bf16.msra.mxu0 0
  %1617 = vmatpush.bf16.msra.mxu0 0
  %1618 = vmatpush.bf16.msra.mxu0 0
  %1619 = vmatpush.bf16.msra.mxu0 0
  %1620 = vmatpush.bf16.msra.mxu0 0
  %1621 = vmatpush.bf16.msra.mxu0 0
  %1622 = vmatpush.bf16.msra.mxu0 %v1610
  %1623 = vmatpush.bf16.msra.mxu0 %v1609
  %1624 = vmatmul.bf16.gmra.mxu0 %v1614
  %v1625 = vpop.f32.mrf.mxu0
  %v1626 = vadd.f32 0.0, %v1625
  %v1627 = vpop.f32.mrf.mxu0
  %1628 = vdwg.mxu0
  %v1633 = vunpack.c.l.b16 %v1590
  %v1634 = vunpack.c.l.b16 %v1591
  %v1635 = vunpack.c.l.b16 %v1592
  %v1636 = vunpack.c.l.b16 %v1593
  %v1637 = vpack.c.b16 %v1634, %v1633
  %v1638 = vpack.c.b16 %v1636, %v1635
  %v1642 = vsel %vm100, %v1594, 0
  %1644 = vmatpush.bf16.msra.mxu0 0
  %1645 = vmatpush.bf16.msra.mxu0 0
  %1646 = vmatpush.bf16.msra.mxu0 0
  %1647 = vmatpush.bf16.msra.mxu0 0
  %1648 = vmatpush.bf16.msra.mxu0 0
  %1649 = vmatpush.bf16.msra.mxu0 0
  %1650 = vmatpush.bf16.msra.mxu0 %v1638
  %1651 = vmatpush.bf16.msra.mxu0 %v1637
  %1652 = vmatmul.bf16.gmra.mxu0 %v1642
  %v1653 = vpop.f32.mrf.mxu0
  %v1654 = vadd.f32 %v1626, %v1653
  %v1655 = vpop.f32.mrf.mxu0
  %1656 = vdwg.mxu0
  %s1657 = scalar_lea.vmem %s2, 192
  %v1658 = vld [vmem:[%s1657] sm:$0xf]
  %v1659 = vld [vmem:[%s1657 + $0x4] sm:$0xf]
  %v1660 = vld [vmem:[%s1657 + $0x8] sm:$0xf]
  %v1661 = vld [vmem:[%s1657 + $0xc] sm:$0xf]
  %v1662 = vpack.c.bf16 %v1586, %v1586
  %v1667 = vunpack.c.l.b16 %v1658
  %v1668 = vunpack.c.l.b16 %v1659
  %v1669 = vunpack.c.l.b16 %v1660
  %v1670 = vunpack.c.l.b16 %v1661
  %v1671 = vpack.c.b16 %v1668, %v1667
  %v1672 = vpack.c.b16 %v1670, %v1669
  %v1676 = vsel %vm100, %v1662, 0
  %1678 = vmatpush.bf16.msra.mxu0 0
  %1679 = vmatpush.bf16.msra.mxu0 0
  %1680 = vmatpush.bf16.msra.mxu0 0
  %1681 = vmatpush.bf16.msra.mxu0 0
  %1682 = vmatpush.bf16.msra.mxu0 0
  %1683 = vmatpush.bf16.msra.mxu0 0
  %1684 = vmatpush.bf16.msra.mxu0 %v1672
  %1685 = vmatpush.bf16.msra.mxu0 %v1671
  %1686 = vmatmul.bf16.gmra.mxu0 %v1676
  %v1687 = vpop.f32.mrf.mxu0
  %v1688 = vadd.f32 0.0, %v1687
  %v1689 = vpop.f32.mrf.mxu0
  %1690 = vdwg.mxu0
  %v1691 = vadd.f32 %v1654, %v1688
  %s1692 = scalar_lea.vmem %s2, 208
  %v1693 = vld [vmem:[%s1692] sm:$0xf]
  %v1694 = vld [vmem:[%s1692 + $0x4] sm:$0xf]
  %v1695 = vld [vmem:[%s1692 + $0x8] sm:$0xf]
  %v1696 = vld [vmem:[%s1692 + $0xc] sm:$0xf]
  %v1697 = vpack.c.bf16 %v1587, %v1587
  %v1702 = vunpack.c.l.b16 %v1693
  %v1703 = vunpack.c.l.b16 %v1694
  %v1704 = vunpack.c.l.b16 %v1695
  %v1705 = vunpack.c.l.b16 %v1696
  %v1706 = vpack.c.b16 %v1703, %v1702
  %v1707 = vpack.c.b16 %v1705, %v1704
  %v1711 = vsel %vm100, %v1697, 0
  %1713 = vmatpush.bf16.msra.mxu0 0
  %1714 = vmatpush.bf16.msra.mxu0 0
  %1715 = vmatpush.bf16.msra.mxu0 0
  %1716 = vmatpush.bf16.msra.mxu0 0
  %1717 = vmatpush.bf16.msra.mxu0 0
  %1718 = vmatpush.bf16.msra.mxu0 0
  %1719 = vmatpush.bf16.msra.mxu0 %v1707
  %1720 = vmatpush.bf16.msra.mxu0 %v1706
  %1721 = vmatmul.bf16.gmra.mxu0 %v1711
  %v1722 = vpop.f32.mrf.mxu0
  %v1723 = vadd.f32 0.0, %v1722
  %v1724 = vpop.f32.mrf.mxu0
  %1725 = vdwg.mxu0
  %v1726 = vadd.f32 %v1691, %v1723
  %s1727 = scalar_lea.vmem %s2, 224
  %v1728 = vld [vmem:[%s1727] sm:$0xf]
  %v1729 = vld [vmem:[%s1727 + $0x4] sm:$0xf]
  %v1730 = vld [vmem:[%s1727 + $0x8] sm:$0xf]
  %v1731 = vld [vmem:[%s1727 + $0xc] sm:$0xf]
  %v1732 = vpack.c.bf16 %v1588, %v1588
  %v1737 = vunpack.c.l.b16 %v1728
  %v1738 = vunpack.c.l.b16 %v1729
  %v1739 = vunpack.c.l.b16 %v1730
  %v1740 = vunpack.c.l.b16 %v1731
  %v1741 = vpack.c.b16 %v1738, %v1737
  %v1742 = vpack.c.b16 %v1740, %v1739
  %v1746 = vsel %vm100, %v1732, 0
  %1748 = vmatpush.bf16.msra.mxu0 0
  %1749 = vmatpush.bf16.msra.mxu0 0
  %1750 = vmatpush.bf16.msra.mxu0 0
  %1751 = vmatpush.bf16.msra.mxu0 0
  %1752 = vmatpush.bf16.msra.mxu0 0
  %1753 = vmatpush.bf16.msra.mxu0 0
  %1754 = vmatpush.bf16.msra.mxu0 %v1742
  %1755 = vmatpush.bf16.msra.mxu0 %v1741
  %1756 = vmatmul.bf16.gmra.mxu0 %v1746
  %v1757 = vpop.f32.mrf.mxu0
  %v1758 = vadd.f32 0.0, %v1757
  %v1759 = vpop.f32.mrf.mxu0
  %1760 = vdwg.mxu0
  %v1761 = vadd.f32 %v1726, %v1758
  %1762 = vmatpush.bf16.msra.mxu0 0
  %1763 = vmatpush.bf16.msra.mxu0 0
  %1764 = vmatpush.bf16.msra.mxu0 0
  %1765 = vmatpush.bf16.msra.mxu0 0
  %1766 = vmatpush.bf16.msra.mxu0 0
  %1767 = vmatpush.bf16.msra.mxu0 0
  %1768 = vmatpush.bf16.msra.mxu0 %v1100
  %1769 = vmatpush.bf16.msra.mxu0 %v1099
  %1770 = vmatmul.bf16.gmra.mxu0 %v1314
  %v1771 = vpop.f32.mrf.mxu0
  %v1772 = vadd.f32 0.0, %v1771
  %v1773 = vpop.f32.mrf.mxu0
  %v1774 = vadd.f32 0.0, %v1773
  %1775 = vmatmul.bf16.gmra.mxu0 %v1317
  %v1776 = vpop.f32.mrf.mxu0
  %v1777 = vadd.f32 0.0, %v1776
  %v1778 = vpop.f32.mrf.mxu0
  %v1779 = vadd.f32 0.0, %v1778
  %1780 = vmatmul.bf16.gmra.mxu0 %v1320
  %v1781 = vpop.f32.mrf.mxu0
  %v1782 = vadd.f32 0.0, %v1781
  %v1783 = vpop.f32.mrf.mxu0
  %1784 = vdwg.mxu0
  %1785 = vmatpush.bf16.msra.mxu0 0
  %1786 = vmatpush.bf16.msra.mxu0 0
  %1787 = vmatpush.bf16.msra.mxu0 0
  %1788 = vmatpush.bf16.msra.mxu0 0
  %1789 = vmatpush.bf16.msra.mxu0 0
  %1790 = vmatpush.bf16.msra.mxu0 0
  %1791 = vmatpush.bf16.msra.mxu0 %v1144
  %1792 = vmatpush.bf16.msra.mxu0 %v1143
  %1793 = vmatmul.bf16.gmra.mxu0 %v1257
  %v1794 = vpop.f32.mrf.mxu0
  %v1795 = vadd.f32 %v1772, %v1794
  %v1796 = vpop.f32.mrf.mxu0
  %v1797 = vadd.f32 %v1774, %v1796
  %1798 = vmatmul.bf16.gmra.mxu0 %v1260
  %v1799 = vpop.f32.mrf.mxu0
  %v1800 = vadd.f32 %v1777, %v1799
  %v1801 = vpop.f32.mrf.mxu0
  %v1802 = vadd.f32 %v1779, %v1801
  %1803 = vmatmul.bf16.gmra.mxu0 %v1263
  %v1804 = vpop.f32.mrf.mxu0
  %v1805 = vadd.f32 %v1782, %v1804
  %v1806 = vpop.f32.mrf.mxu0
  %1807 = vdwg.mxu0
  %1808 = vmatpush.bf16.msra.mxu0 0
  %1809 = vmatpush.bf16.msra.mxu0 0
  %1810 = vmatpush.bf16.msra.mxu0 0
  %1811 = vmatpush.bf16.msra.mxu0 0
  %1812 = vmatpush.bf16.msra.mxu0 0
  %1813 = vmatpush.bf16.msra.mxu0 0
  %1814 = vmatpush.bf16.msra.mxu0 %v1196
  %1815 = vmatpush.bf16.msra.mxu0 %v1195
  %1816 = vmatmul.bf16.gmra.mxu0 %v1371
  %v1817 = vpop.f32.mrf.mxu0
  %v1818 = vadd.f32 0.0, %v1817
  %v1819 = vpop.f32.mrf.mxu0
  %v1820 = vadd.f32 0.0, %v1819
  %1821 = vmatmul.bf16.gmra.mxu0 %v1374
  %v1822 = vpop.f32.mrf.mxu0
  %v1823 = vadd.f32 0.0, %v1822
  %v1824 = vpop.f32.mrf.mxu0
  %v1825 = vadd.f32 0.0, %v1824
  %1826 = vmatmul.bf16.gmra.mxu0 %v1377
  %v1827 = vpop.f32.mrf.mxu0
  %v1828 = vadd.f32 0.0, %v1827
  %v1829 = vpop.f32.mrf.mxu0
  %1830 = vdwg.mxu0
  %v1831 = vadd.f32 %v1795, %v1818
  %v1832 = vadd.f32 %v1797, %v1820
  %v1833 = vadd.f32 %v1800, %v1823
  %v1834 = vadd.f32 %v1802, %v1825
  %v1835 = vadd.f32 %v1805, %v1828
  %1836 = vmatpush.bf16.msra.mxu0 0
  %1837 = vmatpush.bf16.msra.mxu0 0
  %1838 = vmatpush.bf16.msra.mxu0 0
  %1839 = vmatpush.bf16.msra.mxu0 0
  %1840 = vmatpush.bf16.msra.mxu0 0
  %1841 = vmatpush.bf16.msra.mxu0 0
  %1842 = vmatpush.bf16.msra.mxu0 %v1253
  %1843 = vmatpush.bf16.msra.mxu0 %v1252
  %1844 = vmatmul.bf16.gmra.mxu0 %v1428
  %v1845 = vpop.f32.mrf.mxu0
  %v1846 = vadd.f32 0.0, %v1845
  %v1847 = vpop.f32.mrf.mxu0
  %v1848 = vadd.f32 0.0, %v1847
  %1849 = vmatmul.bf16.gmra.mxu0 %v1431
  %v1850 = vpop.f32.mrf.mxu0
  %v1851 = vadd.f32 0.0, %v1850
  %v1852 = vpop.f32.mrf.mxu0
  %v1853 = vadd.f32 0.0, %v1852
  %1854 = vmatmul.bf16.gmra.mxu0 %v1434
  %v1855 = vpop.f32.mrf.mxu0
  %v1856 = vadd.f32 0.0, %v1855
  %v1857 = vpop.f32.mrf.mxu0
  %1858 = vdwg.mxu0
  %v1859 = vadd.f32 %v1831, %v1846
  %v1860 = vadd.f32 %v1832, %v1848
  %v1861 = vadd.f32 %v1833, %v1851
  %v1862 = vadd.f32 %v1834, %v1853
  %v1863 = vadd.f32 %v1835, %v1856
  %1864 = vmatpush.bf16.msra.mxu0 0
  %1865 = vmatpush.bf16.msra.mxu0 0
  %1866 = vmatpush.bf16.msra.mxu0 0
  %1867 = vmatpush.bf16.msra.mxu0 0
  %1868 = vmatpush.bf16.msra.mxu0 0
  %1869 = vmatpush.bf16.msra.mxu0 0
  %1870 = vmatpush.bf16.msra.mxu0 %v1310
  %1871 = vmatpush.bf16.msra.mxu0 %v1309
  %1872 = vmatmul.bf16.gmra.mxu0 %v1485
  %v1873 = vpop.f32.mrf.mxu0
  %v1874 = vadd.f32 0.0, %v1873
  %v1875 = vpop.f32.mrf.mxu0
  %v1876 = vadd.f32 0.0, %v1875
  %1877 = vmatmul.bf16.gmra.mxu0 %v1488
  %v1878 = vpop.f32.mrf.mxu0
  %v1879 = vadd.f32 0.0, %v1878
  %v1880 = vpop.f32.mrf.mxu0
  %v1881 = vadd.f32 0.0, %v1880
  %1882 = vmatmul.bf16.gmra.mxu0 %v1491
  %v1883 = vpop.f32.mrf.mxu0
  %v1884 = vadd.f32 0.0, %v1883
  %v1885 = vpop.f32.mrf.mxu0
  %1886 = vdwg.mxu0
  %v1887 = vadd.f32 %v1859, %v1874
  %v1888 = vadd.f32 %v1860, %v1876
  %v1889 = vadd.f32 %v1861, %v1879
  %v1890 = vadd.f32 %v1862, %v1881
  %v1891 = vadd.f32 %v1863, %v1884
  %1892 = vmatpush.bf16.msra.mxu0 0
  %1893 = vmatpush.bf16.msra.mxu0 0
  %1894 = vmatpush.bf16.msra.mxu0 0
  %1895 = vmatpush.bf16.msra.mxu0 0
  %1896 = vmatpush.bf16.msra.mxu0 0
  %1897 = vmatpush.bf16.msra.mxu0 0
  %1898 = vmatpush.bf16.msra.mxu0 %v1367
  %1899 = vmatpush.bf16.msra.mxu0 %v1366
  %1900 = vmatmul.bf16.gmra.mxu0 %v1542
  %v1901 = vpop.f32.mrf.mxu0
  %v1902 = vadd.f32 0.0, %v1901
  %v1903 = vpop.f32.mrf.mxu0
  %v1904 = vadd.f32 0.0, %v1903
  %1905 = vmatmul.bf16.gmra.mxu0 %v1545
  %v1906 = vpop.f32.mrf.mxu0
  %v1907 = vadd.f32 0.0, %v1906
  %v1908 = vpop.f32.mrf.mxu0
  %v1909 = vadd.f32 0.0, %v1908
  %1910 = vmatmul.bf16.gmra.mxu0 %v1548
  %v1911 = vpop.f32.mrf.mxu0
  %v1912 = vadd.f32 0.0, %v1911
  %v1913 = vpop.f32.mrf.mxu0
  %1914 = vdwg.mxu0
  %v1915 = vadd.f32 %v1887, %v1902
  %v1916 = vadd.f32 %v1888, %v1904
  %v1917 = vadd.f32 %v1889, %v1907
  %v1918 = vadd.f32 %v1890, %v1909
  %v1919 = vadd.f32 %v1891, %v1912
  %v1920 = vld [vmem:[#allocation2 + $0xa8] sm:$0xff]
  %v1921 = vld [vmem:[#allocation2 + $0xb0] sm:$0xff]
  %v1922 = vld [vmem:[#allocation2 + $0xb8] sm:$0xff]
  %v1923 = vld [vmem:[#allocation2 + $0xc0] sm:$0xff]
  %v1924 = vld [vmem:[#allocation2 + $0xc8] sm:$0xff]
  %v1925 = vpack.c.bf16 %v1921, %v1920
  %v1926 = vpack.c.bf16 %v1923, %v1922
  %v1927 = vpack.c.bf16 %v1924, %v1924
  %v1929 = vsel %vm100, %v1925, 0
  %v1932 = vsel %vm100, %v1926, 0
  %v1935 = vsel %vm100, %v1927, 0
  %1937 = vmatpush.bf16.msra.mxu0 0
  %1938 = vmatpush.bf16.msra.mxu0 0
  %1939 = vmatpush.bf16.msra.mxu0 0
  %1940 = vmatpush.bf16.msra.mxu0 0
  %1941 = vmatpush.bf16.msra.mxu0 0
  %1942 = vmatpush.bf16.msra.mxu0 0
  %1943 = vmatpush.bf16.msra.mxu0 %v1424
  %1944 = vmatpush.bf16.msra.mxu0 %v1423
  %1945 = vmatmul.bf16.gmra.mxu0 %v1929
  %v1946 = vpop.f32.mrf.mxu0
  %v1947 = vadd.f32 0.0, %v1946
  %v1948 = vpop.f32.mrf.mxu0
  %v1949 = vadd.f32 0.0, %v1948
  %1950 = vmatmul.bf16.gmra.mxu0 %v1932
  %v1951 = vpop.f32.mrf.mxu0
  %v1952 = vadd.f32 0.0, %v1951
  %v1953 = vpop.f32.mrf.mxu0
  %v1954 = vadd.f32 0.0, %v1953
  %1955 = vmatmul.bf16.gmra.mxu0 %v1935
  %v1956 = vpop.f32.mrf.mxu0
  %v1957 = vadd.f32 0.0, %v1956
  %v1958 = vpop.f32.mrf.mxu0
  %1959 = vdwg.mxu0
  %v1960 = vadd.f32 %v1915, %v1947
  %v1961 = vadd.f32 %v1916, %v1949
  %v1962 = vadd.f32 %v1917, %v1952
  %v1963 = vadd.f32 %v1918, %v1954
  %v1964 = vadd.f32 %v1919, %v1957
  %v1965 = vld [vmem:[#allocation2 + $0xb0] sm:$0xff]
  %v1966 = vld [vmem:[#allocation2 + $0xb8] sm:$0xff]
  %v1967 = vld [vmem:[#allocation2 + $0xc0] sm:$0xff]
  %v1968 = vld [vmem:[#allocation2 + $0xc8] sm:$0xff]
  %v1969 = vld [vmem:[#allocation2 + $0xd0] sm:$0xff]
  %v1970 = vpack.c.bf16 %v1966, %v1965
  %v1971 = vpack.c.bf16 %v1968, %v1967
  %v1972 = vpack.c.bf16 %v1969, %v1969
  %v1974 = vsel %vm100, %v1970, 0
  %v1977 = vsel %vm100, %v1971, 0
  %v1980 = vsel %vm100, %v1972, 0
  %1982 = vmatpush.bf16.msra.mxu0 0
  %1983 = vmatpush.bf16.msra.mxu0 0
  %1984 = vmatpush.bf16.msra.mxu0 0
  %1985 = vmatpush.bf16.msra.mxu0 0
  %1986 = vmatpush.bf16.msra.mxu0 0
  %1987 = vmatpush.bf16.msra.mxu0 0
  %1988 = vmatpush.bf16.msra.mxu0 %v1481
  %1989 = vmatpush.bf16.msra.mxu0 %v1480
  %1990 = vmatmul.bf16.gmra.mxu0 %v1974
  %v1991 = vpop.f32.mrf.mxu0
  %v1992 = vadd.f32 0.0, %v1991
  %v1993 = vpop.f32.mrf.mxu0
  %v1994 = vadd.f32 0.0, %v1993
  %1995 = vmatmul.bf16.gmra.mxu0 %v1977
  %v1996 = vpop.f32.mrf.mxu0
  %v1997 = vadd.f32 0.0, %v1996
  %v1998 = vpop.f32.mrf.mxu0
  %v1999 = vadd.f32 0.0, %v1998
  %2000 = vmatmul.bf16.gmra.mxu0 %v1980
  %v2001 = vpop.f32.mrf.mxu0
  %v2002 = vadd.f32 0.0, %v2001
  %v2003 = vpop.f32.mrf.mxu0
  %2004 = vdwg.mxu0
  %v2005 = vadd.f32 %v1960, %v1992
  %v2006 = vadd.f32 %v1961, %v1994
  %v2007 = vadd.f32 %v1962, %v1997
  %v2008 = vadd.f32 %v1963, %v1999
  %v2009 = vadd.f32 %v1964, %v2002
  %v2010 = vld [vmem:[#allocation2 + $0xb8] sm:$0xff]
  %v2011 = vld [vmem:[#allocation2 + $0xc0] sm:$0xff]
  %v2012 = vld [vmem:[#allocation2 + $0xc8] sm:$0xff]
  %v2013 = vld [vmem:[#allocation2 + $0xd0] sm:$0xff]
  %v2014 = vld [vmem:[#allocation2 + $0xd8] sm:$0xff]
  %v2015 = vpack.c.bf16 %v2011, %v2010
  %v2016 = vpack.c.bf16 %v2013, %v2012
  %v2017 = vpack.c.bf16 %v2014, %v2014
  %v2019 = vsel %vm100, %v2015, 0
  %v2022 = vsel %vm100, %v2016, 0
  %v2025 = vsel %vm100, %v2017, 0
  %2027 = vmatpush.bf16.msra.mxu0 0
  %2028 = vmatpush.bf16.msra.mxu0 0
  %2029 = vmatpush.bf16.msra.mxu0 0
  %2030 = vmatpush.bf16.msra.mxu0 0
  %2031 = vmatpush.bf16.msra.mxu0 0
  %2032 = vmatpush.bf16.msra.mxu0 0
  %2033 = vmatpush.bf16.msra.mxu0 %v1538
  %2034 = vmatpush.bf16.msra.mxu0 %v1537
  %2035 = vmatmul.bf16.gmra.mxu0 %v2019
  %v2036 = vpop.f32.mrf.mxu0
  %v2037 = vadd.f32 0.0, %v2036
  %v2038 = vpop.f32.mrf.mxu0
  %v2039 = vadd.f32 0.0, %v2038
  %2040 = vmatmul.bf16.gmra.mxu0 %v2022
  %v2041 = vpop.f32.mrf.mxu0
  %v2042 = vadd.f32 0.0, %v2041
  %v2043 = vpop.f32.mrf.mxu0
  %v2044 = vadd.f32 0.0, %v2043
  %2045 = vmatmul.bf16.gmra.mxu0 %v2025
  %v2046 = vpop.f32.mrf.mxu0
  %v2047 = vadd.f32 0.0, %v2046
  %v2048 = vpop.f32.mrf.mxu0
  %2049 = vdwg.mxu0
  %v2050 = vadd.f32 %v2005, %v2037
  %v2051 = vadd.f32 %v2006, %v2039
  %v2052 = vadd.f32 %v2007, %v2042
  %v2053 = vadd.f32 %v2008, %v2044
  %v2054 = vadd.f32 %v2009, %v2047
  %v2055 = vadd.f32 %v2050, %v1578
  %v2056 = vadd.f32 %v2051, %v1578
  %v2057 = vadd.f32 %v2052, %v1578
  %v2058 = vadd.f32 %v2053, %v1578
  %v2059 = vadd.f32 %v2054, %v1578
  %v2060 = vmax.f32 %v2055, 0.0
  %v2061 = vmax.f32 %v2056, 0.0
  %v2062 = vmax.f32 %v2057, 0.0
  %v2063 = vmax.f32 %v2058, 0.0
  %v2064 = vmax.f32 %v2059, 0.0
  %s2065 = scalar_lea.vmem %s2, 240
  %v2066 = vld [vmem:[%s2065] sm:$0xf]
  %v2067 = vld [vmem:[%s2065 + $0x4] sm:$0xf]
  %v2068 = vld [vmem:[%s2065 + $0x8] sm:$0xf]
  %v2069 = vld [vmem:[%s2065 + $0xc] sm:$0xf]
  %v2070 = vpack.c.bf16 %v2060, %v2060
  %v2075 = vunpack.c.l.b16 %v2066
  %v2076 = vunpack.c.l.b16 %v2067
  %v2077 = vunpack.c.l.b16 %v2068
  %v2078 = vunpack.c.l.b16 %v2069
  %v2079 = vpack.c.b16 %v2076, %v2075
  %v2080 = vpack.c.b16 %v2078, %v2077
  %v2084 = vsel %vm100, %v2070, 0
  %2086 = vmatpush.bf16.msra.mxu0 0
  %2087 = vmatpush.bf16.msra.mxu0 0
  %2088 = vmatpush.bf16.msra.mxu0 0
  %2089 = vmatpush.bf16.msra.mxu0 0
  %2090 = vmatpush.bf16.msra.mxu0 0
  %2091 = vmatpush.bf16.msra.mxu0 0
  %2092 = vmatpush.bf16.msra.mxu0 %v2080
  %2093 = vmatpush.bf16.msra.mxu0 %v2079
  %2094 = vmatmul.bf16.gmra.mxu0 %v2084
  %v2095 = vpop.f32.mrf.mxu0
  %v2096 = vadd.f32 0.0, %v2095
  %v2097 = vpop.f32.mrf.mxu0
  %2098 = vdwg.mxu0
  %v2099 = vadd.f32 %v1761, %v2096
  %s2100 = scalar_lea.vmem %s2, 256
  %v2101 = vld [vmem:[%s2100] sm:$0xf]
  %v2102 = vld [vmem:[%s2100 + $0x4] sm:$0xf]
  %v2103 = vld [vmem:[%s2100 + $0x8] sm:$0xf]
  %v2104 = vld [vmem:[%s2100 + $0xc] sm:$0xf]
  %v2105 = vpack.c.bf16 %v2061, %v2061
  %v2110 = vunpack.c.l.b16 %v2101
  %v2111 = vunpack.c.l.b16 %v2102
  %v2112 = vunpack.c.l.b16 %v2103
  %v2113 = vunpack.c.l.b16 %v2104
  %v2114 = vpack.c.b16 %v2111, %v2110
  %v2115 = vpack.c.b16 %v2113, %v2112
  %v2119 = vsel %vm100, %v2105, 0
  %2121 = vmatpush.bf16.msra.mxu0 0
  %2122 = vmatpush.bf16.msra.mxu0 0
  %2123 = vmatpush.bf16.msra.mxu0 0
  %2124 = vmatpush.bf16.msra.mxu0 0
  %2125 = vmatpush.bf16.msra.mxu0 0
  %2126 = vmatpush.bf16.msra.mxu0 0
  %2127 = vmatpush.bf16.msra.mxu0 %v2115
  %2128 = vmatpush.bf16.msra.mxu0 %v2114
  %2129 = vmatmul.bf16.gmra.mxu0 %v2119
  %v2130 = vpop.f32.mrf.mxu0
  %v2131 = vadd.f32 0.0, %v2130
  %v2132 = vpop.f32.mrf.mxu0
  %2133 = vdwg.mxu0
  %v2134 = vadd.f32 %v2099, %v2131
  %s2135 = scalar_lea.vmem %s2, 272
  %v2136 = vld [vmem:[%s2135] sm:$0xf]
  %v2137 = vld [vmem:[%s2135 + $0x4] sm:$0xf]
  %v2138 = vld [vmem:[%s2135 + $0x8] sm:$0xf]
  %v2139 = vld [vmem:[%s2135 + $0xc] sm:$0xf]
  %v2140 = vpack.c.bf16 %v2062, %v2062
  %v2145 = vunpack.c.l.b16 %v2136
  %v2146 = vunpack.c.l.b16 %v2137
  %v2147 = vunpack.c.l.b16 %v2138
  %v2148 = vunpack.c.l.b16 %v2139
  %v2149 = vpack.c.b16 %v2146, %v2145
  %v2150 = vpack.c.b16 %v2148, %v2147
  %v2154 = vsel %vm100, %v2140, 0
  %2156 = vmatpush.bf16.msra.mxu0 0
  %2157 = vmatpush.bf16.msra.mxu0 0
  %2158 = vmatpush.bf16.msra.mxu0 0
  %2159 = vmatpush.bf16.msra.mxu0 0
  %2160 = vmatpush.bf16.msra.mxu0 0
  %2161 = vmatpush.bf16.msra.mxu0 0
  %2162 = vmatpush.bf16.msra.mxu0 %v2150
  %2163 = vmatpush.bf16.msra.mxu0 %v2149
  %2164 = vmatmul.bf16.gmra.mxu0 %v2154
  %v2165 = vpop.f32.mrf.mxu0
  %v2166 = vadd.f32 0.0, %v2165
  %v2167 = vpop.f32.mrf.mxu0
  %2168 = vdwg.mxu0
  %v2169 = vadd.f32 %v2134, %v2166
  %s2170 = scalar_lea.vmem %s2, 288
  %v2171 = vld [vmem:[%s2170] sm:$0xf]
  %v2172 = vld [vmem:[%s2170 + $0x4] sm:$0xf]
  %v2173 = vld [vmem:[%s2170 + $0x8] sm:$0xf]
  %v2174 = vld [vmem:[%s2170 + $0xc] sm:$0xf]
  %v2175 = vpack.c.bf16 %v2063, %v2063
  %v2180 = vunpack.c.l.b16 %v2171
  %v2181 = vunpack.c.l.b16 %v2172
  %v2182 = vunpack.c.l.b16 %v2173
  %v2183 = vunpack.c.l.b16 %v2174
  %v2184 = vpack.c.b16 %v2181, %v2180
  %v2185 = vpack.c.b16 %v2183, %v2182
  %v2189 = vsel %vm100, %v2175, 0
  %2191 = vmatpush.bf16.msra.mxu0 0
  %2192 = vmatpush.bf16.msra.mxu0 0
  %2193 = vmatpush.bf16.msra.mxu0 0
  %2194 = vmatpush.bf16.msra.mxu0 0
  %2195 = vmatpush.bf16.msra.mxu0 0
  %2196 = vmatpush.bf16.msra.mxu0 0
  %2197 = vmatpush.bf16.msra.mxu0 %v2185
  %2198 = vmatpush.bf16.msra.mxu0 %v2184
  %2199 = vmatmul.bf16.gmra.mxu0 %v2189
  %v2200 = vpop.f32.mrf.mxu0
  %v2201 = vadd.f32 0.0, %v2200
  %v2202 = vpop.f32.mrf.mxu0
  %2203 = vdwg.mxu0
  %v2204 = vadd.f32 %v2169, %v2201
  %s2205 = scalar_lea.vmem %s2, 304
  %v2206 = vld [vmem:[%s2205] sm:$0xf]
  %v2207 = vld [vmem:[%s2205 + $0x4] sm:$0xf]
  %v2208 = vld [vmem:[%s2205 + $0x8] sm:$0xf]
  %v2209 = vld [vmem:[%s2205 + $0xc] sm:$0xf]
  %v2210 = vpack.c.bf16 %v2064, %v2064
  %v2215 = vunpack.c.l.b16 %v2206
  %v2216 = vunpack.c.l.b16 %v2207
  %v2217 = vunpack.c.l.b16 %v2208
  %v2218 = vunpack.c.l.b16 %v2209
  %v2219 = vpack.c.b16 %v2216, %v2215
  %v2220 = vpack.c.b16 %v2218, %v2217
  %v2224 = vsel %vm100, %v2210, 0
  %2226 = vmatpush.bf16.msra.mxu0 0
  %2227 = vmatpush.bf16.msra.mxu0 0
  %2228 = vmatpush.bf16.msra.mxu0 0
  %2229 = vmatpush.bf16.msra.mxu0 0
  %2230 = vmatpush.bf16.msra.mxu0 0
  %2231 = vmatpush.bf16.msra.mxu0 0
  %2232 = vmatpush.bf16.msra.mxu0 %v2220
  %2233 = vmatpush.bf16.msra.mxu0 %v2219
  %2234 = vmatmul.bf16.gmra.mxu0 %v2224
  %v2235 = vpop.f32.mrf.mxu0
  %v2236 = vadd.f32 0.0, %v2235
  %v2237 = vpop.f32.mrf.mxu0
  %2238 = vdwg.mxu0
  %v2239 = vadd.f32 %v2204, %v2236
  %2240 = vmatpush.bf16.msra.mxu0 0
  %2241 = vmatpush.bf16.msra.mxu0 0
  %2242 = vmatpush.bf16.msra.mxu0 0
  %2243 = vmatpush.bf16.msra.mxu0 0
  %2244 = vmatpush.bf16.msra.mxu0 0
  %2245 = vmatpush.bf16.msra.mxu0 0
  %2246 = vmatpush.bf16.msra.mxu0 %v1100
  %2247 = vmatpush.bf16.msra.mxu0 %v1099
  %2248 = vmatmul.bf16.gmra.mxu0 %v1485
  %v2249 = vpop.f32.mrf.mxu0
  %v2250 = vadd.f32 0.0, %v2249
  %v2251 = vpop.f32.mrf.mxu0
  %v2252 = vadd.f32 0.0, %v2251
  %2253 = vmatmul.bf16.gmra.mxu0 %v1488
  %v2254 = vpop.f32.mrf.mxu0
  %v2255 = vadd.f32 0.0, %v2254
  %v2256 = vpop.f32.mrf.mxu0
  %v2257 = vadd.f32 0.0, %v2256
  %2258 = vmatmul.bf16.gmra.mxu0 %v1491
  %v2259 = vpop.f32.mrf.mxu0
  %v2260 = vadd.f32 0.0, %v2259
  %v2261 = vpop.f32.mrf.mxu0
  %2262 = vdwg.mxu0
  %2263 = vmatpush.bf16.msra.mxu0 0
  %2264 = vmatpush.bf16.msra.mxu0 0
  %2265 = vmatpush.bf16.msra.mxu0 0
  %2266 = vmatpush.bf16.msra.mxu0 0
  %2267 = vmatpush.bf16.msra.mxu0 0
  %2268 = vmatpush.bf16.msra.mxu0 0
  %2269 = vmatpush.bf16.msra.mxu0 %v1144
  %2270 = vmatpush.bf16.msra.mxu0 %v1143
  %2271 = vmatmul.bf16.gmra.mxu0 %v1428
  %v2272 = vpop.f32.mrf.mxu0
  %v2273 = vadd.f32 %v2250, %v2272
  %v2274 = vpop.f32.mrf.mxu0
  %v2275 = vadd.f32 %v2252, %v2274
  %2276 = vmatmul.bf16.gmra.mxu0 %v1431
  %v2277 = vpop.f32.mrf.mxu0
  %v2278 = vadd.f32 %v2255, %v2277
  %v2279 = vpop.f32.mrf.mxu0
  %v2280 = vadd.f32 %v2257, %v2279
  %2281 = vmatmul.bf16.gmra.mxu0 %v1434
  %v2282 = vpop.f32.mrf.mxu0
  %v2283 = vadd.f32 %v2260, %v2282
  %v2284 = vpop.f32.mrf.mxu0
  %2285 = vdwg.mxu0
  %2286 = vmatpush.bf16.msra.mxu0 0
  %2287 = vmatpush.bf16.msra.mxu0 0
  %2288 = vmatpush.bf16.msra.mxu0 0
  %2289 = vmatpush.bf16.msra.mxu0 0
  %2290 = vmatpush.bf16.msra.mxu0 0
  %2291 = vmatpush.bf16.msra.mxu0 0
  %2292 = vmatpush.bf16.msra.mxu0 %v1196
  %2293 = vmatpush.bf16.msra.mxu0 %v1195
  %2294 = vmatmul.bf16.gmra.mxu0 %v1542
  %v2295 = vpop.f32.mrf.mxu0
  %v2296 = vadd.f32 0.0, %v2295
  %v2297 = vpop.f32.mrf.mxu0
  %v2298 = vadd.f32 0.0, %v2297
  %2299 = vmatmul.bf16.gmra.mxu0 %v1545
  %v2300 = vpop.f32.mrf.mxu0
  %v2301 = vadd.f32 0.0, %v2300
  %v2302 = vpop.f32.mrf.mxu0
  %v2303 = vadd.f32 0.0, %v2302
  %2304 = vmatmul.bf16.gmra.mxu0 %v1548
  %v2305 = vpop.f32.mrf.mxu0
  %v2306 = vadd.f32 0.0, %v2305
  %v2307 = vpop.f32.mrf.mxu0
  %2308 = vdwg.mxu0
  %v2309 = vadd.f32 %v2273, %v2296
  %v2310 = vadd.f32 %v2275, %v2298
  %v2311 = vadd.f32 %v2278, %v2301
  %v2312 = vadd.f32 %v2280, %v2303
  %v2313 = vadd.f32 %v2283, %v2306
  %2314 = vmatpush.bf16.msra.mxu0 0
  %2315 = vmatpush.bf16.msra.mxu0 0
  %2316 = vmatpush.bf16.msra.mxu0 0
  %2317 = vmatpush.bf16.msra.mxu0 0
  %2318 = vmatpush.bf16.msra.mxu0 0
  %2319 = vmatpush.bf16.msra.mxu0 0
  %2320 = vmatpush.bf16.msra.mxu0 %v1253
  %2321 = vmatpush.bf16.msra.mxu0 %v1252
  %2322 = vmatmul.bf16.gmra.mxu0 %v1929
  %v2323 = vpop.f32.mrf.mxu0
  %v2324 = vadd.f32 0.0, %v2323
  %v2325 = vpop.f32.mrf.mxu0
  %v2326 = vadd.f32 0.0, %v2325
  %2327 = vmatmul.bf16.gmra.mxu0 %v1932
  %v2328 = vpop.f32.mrf.mxu0
  %v2329 = vadd.f32 0.0, %v2328
  %v2330 = vpop.f32.mrf.mxu0
  %v2331 = vadd.f32 0.0, %v2330
  %2332 = vmatmul.bf16.gmra.mxu0 %v1935
  %v2333 = vpop.f32.mrf.mxu0
  %v2334 = vadd.f32 0.0, %v2333
  %v2335 = vpop.f32.mrf.mxu0
  %2336 = vdwg.mxu0
  %v2337 = vadd.f32 %v2309, %v2324
  %v2338 = vadd.f32 %v2310, %v2326
  %v2339 = vadd.f32 %v2311, %v2329
  %v2340 = vadd.f32 %v2312, %v2331
  %v2341 = vadd.f32 %v2313, %v2334
  %2342 = vmatpush.bf16.msra.mxu0 0
  %2343 = vmatpush.bf16.msra.mxu0 0
  %2344 = vmatpush.bf16.msra.mxu0 0
  %2345 = vmatpush.bf16.msra.mxu0 0
  %2346 = vmatpush.bf16.msra.mxu0 0
  %2347 = vmatpush.bf16.msra.mxu0 0
  %2348 = vmatpush.bf16.msra.mxu0 %v1310
  %2349 = vmatpush.bf16.msra.mxu0 %v1309
  %2350 = vmatmul.bf16.gmra.mxu0 %v1974
  %v2351 = vpop.f32.mrf.mxu0
  %v2352 = vadd.f32 0.0, %v2351
  %v2353 = vpop.f32.mrf.mxu0
  %v2354 = vadd.f32 0.0, %v2353
  %2355 = vmatmul.bf16.gmra.mxu0 %v1977
  %v2356 = vpop.f32.mrf.mxu0
  %v2357 = vadd.f32 0.0, %v2356
  %v2358 = vpop.f32.mrf.mxu0
  %v2359 = vadd.f32 0.0, %v2358
  %2360 = vmatmul.bf16.gmra.mxu0 %v1980
  %v2361 = vpop.f32.mrf.mxu0
  %v2362 = vadd.f32 0.0, %v2361
  %v2363 = vpop.f32.mrf.mxu0
  %2364 = vdwg.mxu0
  %v2365 = vadd.f32 %v2337, %v2352
  %v2366 = vadd.f32 %v2338, %v2354
  %v2367 = vadd.f32 %v2339, %v2357
  %v2368 = vadd.f32 %v2340, %v2359
  %v2369 = vadd.f32 %v2341, %v2362
  %2370 = vmatpush.bf16.msra.mxu0 0
  %2371 = vmatpush.bf16.msra.mxu0 0
  %2372 = vmatpush.bf16.msra.mxu0 0
  %2373 = vmatpush.bf16.msra.mxu0 0
  %2374 = vmatpush.bf16.msra.mxu0 0
  %2375 = vmatpush.bf16.msra.mxu0 0
  %2376 = vmatpush.bf16.msra.mxu0 %v1367
  %2377 = vmatpush.bf16.msra.mxu0 %v1366
  %2378 = vmatmul.bf16.gmra.mxu0 %v2019
  %v2379 = vpop.f32.mrf.mxu0
  %v2380 = vadd.f32 0.0, %v2379
  %v2381 = vpop.f32.mrf.mxu0
  %v2382 = vadd.f32 0.0, %v2381
  %2383 = vmatmul.bf16.gmra.mxu0 %v2022
  %v2384 = vpop.f32.mrf.mxu0
  %v2385 = vadd.f32 0.0, %v2384
  %v2386 = vpop.f32.mrf.mxu0
  %v2387 = vadd.f32 0.0, %v2386
  %2388 = vmatmul.bf16.gmra.mxu0 %v2025
  %v2389 = vpop.f32.mrf.mxu0
  %v2390 = vadd.f32 0.0, %v2389
  %v2391 = vpop.f32.mrf.mxu0
  %2392 = vdwg.mxu0
  %v2393 = vadd.f32 %v2365, %v2380
  %v2394 = vadd.f32 %v2366, %v2382
  %v2395 = vadd.f32 %v2367, %v2385
  %v2396 = vadd.f32 %v2368, %v2387
  %v2397 = vadd.f32 %v2369, %v2390
  %v2398 = vld [vmem:[#allocation2 + $0xe0] sm:$0xff]
  %v2399 = vld [vmem:[#allocation2 + $0xe8] sm:$0xff]
  %v2400 = vld [vmem:[#allocation2 + $0xf0] sm:$0xff]
  %v2401 = vld [vmem:[#allocation2 + $0xf8] sm:$0xff]
  %v2402 = vld [vmem:[#allocation2 + $0x100] sm:$0xff]
  %v2403 = vpack.c.bf16 %v2399, %v2398
  %v2404 = vpack.c.bf16 %v2401, %v2400
  %v2405 = vpack.c.bf16 %v2402, %v2402
  %v2407 = vsel %vm100, %v2403, 0
  %v2410 = vsel %vm100, %v2404, 0
  %v2413 = vsel %vm100, %v2405, 0
  %2415 = vmatpush.bf16.msra.mxu0 0
  %2416 = vmatpush.bf16.msra.mxu0 0
  %2417 = vmatpush.bf16.msra.mxu0 0
  %2418 = vmatpush.bf16.msra.mxu0 0
  %2419 = vmatpush.bf16.msra.mxu0 0
  %2420 = vmatpush.bf16.msra.mxu0 0
  %2421 = vmatpush.bf16.msra.mxu0 %v1424
  %2422 = vmatpush.bf16.msra.mxu0 %v1423
  %2423 = vmatmul.bf16.gmra.mxu0 %v2407
  %v2424 = vpop.f32.mrf.mxu0
  %v2425 = vadd.f32 0.0, %v2424
  %v2426 = vpop.f32.mrf.mxu0
  %v2427 = vadd.f32 0.0, %v2426
  %2428 = vmatmul.bf16.gmra.mxu0 %v2410
  %v2429 = vpop.f32.mrf.mxu0
  %v2430 = vadd.f32 0.0, %v2429
  %v2431 = vpop.f32.mrf.mxu0
  %v2432 = vadd.f32 0.0, %v2431
  %2433 = vmatmul.bf16.gmra.mxu0 %v2413
  %v2434 = vpop.f32.mrf.mxu0
  %v2435 = vadd.f32 0.0, %v2434
  %v2436 = vpop.f32.mrf.mxu0
  %2437 = vdwg.mxu0
  %v2438 = vadd.f32 %v2393, %v2425
  %v2439 = vadd.f32 %v2394, %v2427
  %v2440 = vadd.f32 %v2395, %v2430
  %v2441 = vadd.f32 %v2396, %v2432
  %v2442 = vadd.f32 %v2397, %v2435
  %v2443 = vld [vmem:[#allocation2 + $0xe8] sm:$0xff]
  %v2444 = vld [vmem:[#allocation2 + $0xf0] sm:$0xff]
  %v2445 = vld [vmem:[#allocation2 + $0xf8] sm:$0xff]
  %v2446 = vld [vmem:[#allocation2 + $0x100] sm:$0xff]
  %v2447 = vld [vmem:[#allocation2 + $0x108] sm:$0xff]
  %v2448 = vpack.c.bf16 %v2444, %v2443
  %v2449 = vpack.c.bf16 %v2446, %v2445
  %v2450 = vpack.c.bf16 %v2447, %v2447
  %v2452 = vsel %vm100, %v2448, 0
  %v2455 = vsel %vm100, %v2449, 0
  %v2458 = vsel %vm100, %v2450, 0
  %2460 = vmatpush.bf16.msra.mxu0 0
  %2461 = vmatpush.bf16.msra.mxu0 0
  %2462 = vmatpush.bf16.msra.mxu0 0
  %2463 = vmatpush.bf16.msra.mxu0 0
  %2464 = vmatpush.bf16.msra.mxu0 0
  %2465 = vmatpush.bf16.msra.mxu0 0
  %2466 = vmatpush.bf16.msra.mxu0 %v1481
  %2467 = vmatpush.bf16.msra.mxu0 %v1480
  %2468 = vmatmul.bf16.gmra.mxu0 %v2452
  %v2469 = vpop.f32.mrf.mxu0
  %v2470 = vadd.f32 0.0, %v2469
  %v2471 = vpop.f32.mrf.mxu0
  %v2472 = vadd.f32 0.0, %v2471
  %2473 = vmatmul.bf16.gmra.mxu0 %v2455
  %v2474 = vpop.f32.mrf.mxu0
  %v2475 = vadd.f32 0.0, %v2474
  %v2476 = vpop.f32.mrf.mxu0
  %v2477 = vadd.f32 0.0, %v2476
  %2478 = vmatmul.bf16.gmra.mxu0 %v2458
  %v2479 = vpop.f32.mrf.mxu0
  %v2480 = vadd.f32 0.0, %v2479
  %v2481 = vpop.f32.mrf.mxu0
  %2482 = vdwg.mxu0
  %v2483 = vadd.f32 %v2438, %v2470
  %v2484 = vadd.f32 %v2439, %v2472
  %v2485 = vadd.f32 %v2440, %v2475
  %v2486 = vadd.f32 %v2441, %v2477
  %v2487 = vadd.f32 %v2442, %v2480
  %v2488 = vld [vmem:[#allocation2 + $0xf0] sm:$0xff]
  %v2489 = vld [vmem:[#allocation2 + $0xf8] sm:$0xff]
  %v2490 = vld [vmem:[#allocation2 + $0x100] sm:$0xff]
  %v2491 = vld [vmem:[#allocation2 + $0x108] sm:$0xff]
  %v2492 = vld [vmem:[#allocation2 + $0x110] sm:$0xff]
  %v2493 = vpack.c.bf16 %v2489, %v2488
  %v2494 = vpack.c.bf16 %v2491, %v2490
  %v2495 = vpack.c.bf16 %v2492, %v2492
  %v2497 = vsel %vm100, %v2493, 0
  %v2500 = vsel %vm100, %v2494, 0
  %v2503 = vsel %vm100, %v2495, 0
  %2505 = vmatpush.bf16.msra.mxu0 0
  %2506 = vmatpush.bf16.msra.mxu0 0
  %2507 = vmatpush.bf16.msra.mxu0 0
  %2508 = vmatpush.bf16.msra.mxu0 0
  %2509 = vmatpush.bf16.msra.mxu0 0
  %2510 = vmatpush.bf16.msra.mxu0 0
  %2511 = vmatpush.bf16.msra.mxu0 %v1538
  %2512 = vmatpush.bf16.msra.mxu0 %v1537
  %2513 = vmatmul.bf16.gmra.mxu0 %v2497
  %v2514 = vpop.f32.mrf.mxu0
  %v2515 = vadd.f32 0.0, %v2514
  %v2516 = vpop.f32.mrf.mxu0
  %v2517 = vadd.f32 0.0, %v2516
  %2518 = vmatmul.bf16.gmra.mxu0 %v2500
  %v2519 = vpop.f32.mrf.mxu0
  %v2520 = vadd.f32 0.0, %v2519
  %v2521 = vpop.f32.mrf.mxu0
  %v2522 = vadd.f32 0.0, %v2521
  %2523 = vmatmul.bf16.gmra.mxu0 %v2503
  %v2524 = vpop.f32.mrf.mxu0
  %v2525 = vadd.f32 0.0, %v2524
  %v2526 = vpop.f32.mrf.mxu0
  %2527 = vdwg.mxu0
  %v2528 = vadd.f32 %v2483, %v2515
  %v2529 = vadd.f32 %v2484, %v2517
  %v2530 = vadd.f32 %v2485, %v2520
  %v2531 = vadd.f32 %v2486, %v2522
  %v2532 = vadd.f32 %v2487, %v2525
  %v2533 = vadd.f32 %v2528, %v1578
  %v2534 = vadd.f32 %v2529, %v1578
  %v2535 = vadd.f32 %v2530, %v1578
  %v2536 = vadd.f32 %v2531, %v1578
  %v2537 = vadd.f32 %v2532, %v1578
  %v2538 = vmax.f32 %v2533, 0.0
  %v2539 = vmax.f32 %v2534, 0.0
  %v2540 = vmax.f32 %v2535, 0.0
  %v2541 = vmax.f32 %v2536, 0.0
  %v2542 = vmax.f32 %v2537, 0.0
  %s2543 = scalar_lea.vmem %s2, 320
  %v2544 = vld [vmem:[%s2543] sm:$0xf]
  %v2545 = vld [vmem:[%s2543 + $0x4] sm:$0xf]
  %v2546 = vld [vmem:[%s2543 + $0x8] sm:$0xf]
  %v2547 = vld [vmem:[%s2543 + $0xc] sm:$0xf]
  %v2548 = vpack.c.bf16 %v2538, %v2538
  %v2553 = vunpack.c.l.b16 %v2544
  %v2554 = vunpack.c.l.b16 %v2545
  %v2555 = vunpack.c.l.b16 %v2546
  %v2556 = vunpack.c.l.b16 %v2547
  %v2557 = vpack.c.b16 %v2554, %v2553
  %v2558 = vpack.c.b16 %v2556, %v2555
  %v2562 = vsel %vm100, %v2548, 0
  %2564 = vmatpush.bf16.msra.mxu0 0
  %2565 = vmatpush.bf16.msra.mxu0 0
  %2566 = vmatpush.bf16.msra.mxu0 0
  %2567 = vmatpush.bf16.msra.mxu0 0
  %2568 = vmatpush.bf16.msra.mxu0 0
  %2569 = vmatpush.bf16.msra.mxu0 0
  %2570 = vmatpush.bf16.msra.mxu0 %v2558
  %2571 = vmatpush.bf16.msra.mxu0 %v2557
  %2572 = vmatmul.bf16.gmra.mxu0 %v2562
  %v2573 = vpop.f32.mrf.mxu0
  %v2574 = vadd.f32 0.0, %v2573
  %v2575 = vpop.f32.mrf.mxu0
  %2576 = vdwg.mxu0
  %v2577 = vadd.f32 %v2239, %v2574
  %s2578 = scalar_lea.vmem %s2, 336
  %v2579 = vld [vmem:[%s2578] sm:$0xf]
  %v2580 = vld [vmem:[%s2578 + $0x4] sm:$0xf]
  %v2581 = vld [vmem:[%s2578 + $0x8] sm:$0xf]
  %v2582 = vld [vmem:[%s2578 + $0xc] sm:$0xf]
  %v2583 = vpack.c.bf16 %v2539, %v2539
  %v2588 = vunpack.c.l.b16 %v2579
  %v2589 = vunpack.c.l.b16 %v2580
  %v2590 = vunpack.c.l.b16 %v2581
  %v2591 = vunpack.c.l.b16 %v2582
  %v2592 = vpack.c.b16 %v2589, %v2588
  %v2593 = vpack.c.b16 %v2591, %v2590
  %v2597 = vsel %vm100, %v2583, 0
  %2599 = vmatpush.bf16.msra.mxu0 0
  %2600 = vmatpush.bf16.msra.mxu0 0
  %2601 = vmatpush.bf16.msra.mxu0 0
  %2602 = vmatpush.bf16.msra.mxu0 0
  %2603 = vmatpush.bf16.msra.mxu0 0
  %2604 = vmatpush.bf16.msra.mxu0 0
  %2605 = vmatpush.bf16.msra.mxu0 %v2593
  %2606 = vmatpush.bf16.msra.mxu0 %v2592
  %2607 = vmatmul.bf16.gmra.mxu0 %v2597
  %v2608 = vpop.f32.mrf.mxu0
  %v2609 = vadd.f32 0.0, %v2608
  %v2610 = vpop.f32.mrf.mxu0
  %2611 = vdwg.mxu0
  %v2612 = vadd.f32 %v2577, %v2609
  %s2613 = scalar_lea.vmem %s2, 352
  %v2614 = vld [vmem:[%s2613] sm:$0xf]
  %v2615 = vld [vmem:[%s2613 + $0x4] sm:$0xf]
  %v2616 = vld [vmem:[%s2613 + $0x8] sm:$0xf]
  %v2617 = vld [vmem:[%s2613 + $0xc] sm:$0xf]
  %v2618 = vpack.c.bf16 %v2540, %v2540
  %v2623 = vunpack.c.l.b16 %v2614
  %v2624 = vunpack.c.l.b16 %v2615
  %v2625 = vunpack.c.l.b16 %v2616
  %v2626 = vunpack.c.l.b16 %v2617
  %v2627 = vpack.c.b16 %v2624, %v2623
  %v2628 = vpack.c.b16 %v2626, %v2625
  %v2632 = vsel %vm100, %v2618, 0
  %2634 = vmatpush.bf16.msra.mxu0 0
  %2635 = vmatpush.bf16.msra.mxu0 0
  %2636 = vmatpush.bf16.msra.mxu0 0
  %2637 = vmatpush.bf16.msra.mxu0 0
  %2638 = vmatpush.bf16.msra.mxu0 0
  %2639 = vmatpush.bf16.msra.mxu0 0
  %2640 = vmatpush.bf16.msra.mxu0 %v2628
  %2641 = vmatpush.bf16.msra.mxu0 %v2627
  %2642 = vmatmul.bf16.gmra.mxu0 %v2632
  %v2643 = vpop.f32.mrf.mxu0
  %v2644 = vadd.f32 0.0, %v2643
  %v2645 = vpop.f32.mrf.mxu0
  %2646 = vdwg.mxu0
  %v2647 = vadd.f32 %v2612, %v2644
  %s2648 = scalar_lea.vmem %s2, 368
  %v2649 = vld [vmem:[%s2648] sm:$0xf]
  %v2650 = vld [vmem:[%s2648 + $0x4] sm:$0xf]
  %v2651 = vld [vmem:[%s2648 + $0x8] sm:$0xf]
  %v2652 = vld [vmem:[%s2648 + $0xc] sm:$0xf]
  %v2653 = vpack.c.bf16 %v2541, %v2541
  %v2658 = vunpack.c.l.b16 %v2649
  %v2659 = vunpack.c.l.b16 %v2650
  %v2660 = vunpack.c.l.b16 %v2651
  %v2661 = vunpack.c.l.b16 %v2652
  %v2662 = vpack.c.b16 %v2659, %v2658
  %v2663 = vpack.c.b16 %v2661, %v2660
  %v2667 = vsel %vm100, %v2653, 0
  %2669 = vmatpush.bf16.msra.mxu0 0
  %2670 = vmatpush.bf16.msra.mxu0 0
  %2671 = vmatpush.bf16.msra.mxu0 0
  %2672 = vmatpush.bf16.msra.mxu0 0
  %2673 = vmatpush.bf16.msra.mxu0 0
  %2674 = vmatpush.bf16.msra.mxu0 0
  %2675 = vmatpush.bf16.msra.mxu0 %v2663
  %2676 = vmatpush.bf16.msra.mxu0 %v2662
  %2677 = vmatmul.bf16.gmra.mxu0 %v2667
  %v2678 = vpop.f32.mrf.mxu0
  %v2679 = vadd.f32 0.0, %v2678
  %v2680 = vpop.f32.mrf.mxu0
  %2681 = vdwg.mxu0
  %v2682 = vadd.f32 %v2647, %v2679
  %s2683 = scalar_lea.vmem %s2, 384
  %v2684 = vld [vmem:[%s2683] sm:$0xf]
  %v2685 = vld [vmem:[%s2683 + $0x4] sm:$0xf]
  %v2686 = vld [vmem:[%s2683 + $0x8] sm:$0xf]
  %v2687 = vld [vmem:[%s2683 + $0xc] sm:$0xf]
  %v2688 = vpack.c.bf16 %v2542, %v2542
  %v2693 = vunpack.c.l.b16 %v2684
  %v2694 = vunpack.c.l.b16 %v2685
  %v2695 = vunpack.c.l.b16 %v2686
  %v2696 = vunpack.c.l.b16 %v2687
  %v2697 = vpack.c.b16 %v2694, %v2693
  %v2698 = vpack.c.b16 %v2696, %v2695
  %v2702 = vsel %vm100, %v2688, 0
  %2704 = vmatpush.bf16.msra.mxu0 0
  %2705 = vmatpush.bf16.msra.mxu0 0
  %2706 = vmatpush.bf16.msra.mxu0 0
  %2707 = vmatpush.bf16.msra.mxu0 0
  %2708 = vmatpush.bf16.msra.mxu0 0
  %2709 = vmatpush.bf16.msra.mxu0 0
  %2710 = vmatpush.bf16.msra.mxu0 %v2698
  %2711 = vmatpush.bf16.msra.mxu0 %v2697
  %2712 = vmatmul.bf16.gmra.mxu0 %v2702
  %v2713 = vpop.f32.mrf.mxu0
  %v2714 = vadd.f32 0.0, %v2713
  %v2715 = vpop.f32.mrf.mxu0
  %2716 = vdwg.mxu0
  %v2717 = vadd.f32 %v2682, %v2714
  %2718 = vmatpush.bf16.msra.mxu0 0
  %2719 = vmatpush.bf16.msra.mxu0 0
  %2720 = vmatpush.bf16.msra.mxu0 0
  %2721 = vmatpush.bf16.msra.mxu0 0
  %2722 = vmatpush.bf16.msra.mxu0 0
  %2723 = vmatpush.bf16.msra.mxu0 0
  %2724 = vmatpush.bf16.msra.mxu0 %v1100
  %2725 = vmatpush.bf16.msra.mxu0 %v1099
  %2726 = vmatmul.bf16.gmra.mxu0 %v1974
  %v2727 = vpop.f32.mrf.mxu0
  %v2728 = vadd.f32 0.0, %v2727
  %v2729 = vpop.f32.mrf.mxu0
  %v2730 = vadd.f32 0.0, %v2729
  %2731 = vmatmul.bf16.gmra.mxu0 %v1977
  %v2732 = vpop.f32.mrf.mxu0
  %v2733 = vadd.f32 0.0, %v2732
  %v2734 = vpop.f32.mrf.mxu0
  %v2735 = vadd.f32 0.0, %v2734
  %2736 = vmatmul.bf16.gmra.mxu0 %v1980
  %v2737 = vpop.f32.mrf.mxu0
  %v2738 = vadd.f32 0.0, %v2737
  %v2739 = vpop.f32.mrf.mxu0
  %2740 = vdwg.mxu0
  %2741 = vmatpush.bf16.msra.mxu0 0
  %2742 = vmatpush.bf16.msra.mxu0 0
  %2743 = vmatpush.bf16.msra.mxu0 0
  %2744 = vmatpush.bf16.msra.mxu0 0
  %2745 = vmatpush.bf16.msra.mxu0 0
  %2746 = vmatpush.bf16.msra.mxu0 0
  %2747 = vmatpush.bf16.msra.mxu0 %v1144
  %2748 = vmatpush.bf16.msra.mxu0 %v1143
  %2749 = vmatmul.bf16.gmra.mxu0 %v1929
  %v2750 = vpop.f32.mrf.mxu0
  %v2751 = vadd.f32 %v2728, %v2750
  %v2752 = vpop.f32.mrf.mxu0
  %v2753 = vadd.f32 %v2730, %v2752
  %2754 = vmatmul.bf16.gmra.mxu0 %v1932
  %v2755 = vpop.f32.mrf.mxu0
  %v2756 = vadd.f32 %v2733, %v2755
  %v2757 = vpop.f32.mrf.mxu0
  %v2758 = vadd.f32 %v2735, %v2757
  %2759 = vmatmul.bf16.gmra.mxu0 %v1935
  %v2760 = vpop.f32.mrf.mxu0
  %v2761 = vadd.f32 %v2738, %v2760
  %v2762 = vpop.f32.mrf.mxu0
  %2763 = vdwg.mxu0
  %2764 = vmatpush.bf16.msra.mxu0 0
  %2765 = vmatpush.bf16.msra.mxu0 0
  %2766 = vmatpush.bf16.msra.mxu0 0
  %2767 = vmatpush.bf16.msra.mxu0 0
  %2768 = vmatpush.bf16.msra.mxu0 0
  %2769 = vmatpush.bf16.msra.mxu0 0
  %2770 = vmatpush.bf16.msra.mxu0 %v1196
  %2771 = vmatpush.bf16.msra.mxu0 %v1195
  %2772 = vmatmul.bf16.gmra.mxu0 %v2019
  %v2773 = vpop.f32.mrf.mxu0
  %v2774 = vadd.f32 0.0, %v2773
  %v2775 = vpop.f32.mrf.mxu0
  %v2776 = vadd.f32 0.0, %v2775
  %2777 = vmatmul.bf16.gmra.mxu0 %v2022
  %v2778 = vpop.f32.mrf.mxu0
  %v2779 = vadd.f32 0.0, %v2778
  %v2780 = vpop.f32.mrf.mxu0
  %v2781 = vadd.f32 0.0, %v2780
  %2782 = vmatmul.bf16.gmra.mxu0 %v2025
  %v2783 = vpop.f32.mrf.mxu0
  %v2784 = vadd.f32 0.0, %v2783
  %v2785 = vpop.f32.mrf.mxu0
  %2786 = vdwg.mxu0
  %v2787 = vadd.f32 %v2751, %v2774
  %v2788 = vadd.f32 %v2753, %v2776
  %v2789 = vadd.f32 %v2756, %v2779
  %v2790 = vadd.f32 %v2758, %v2781
  %v2791 = vadd.f32 %v2761, %v2784
  %2792 = vmatpush.bf16.msra.mxu0 0
  %2793 = vmatpush.bf16.msra.mxu0 0
  %2794 = vmatpush.bf16.msra.mxu0 0
  %2795 = vmatpush.bf16.msra.mxu0 0
  %2796 = vmatpush.bf16.msra.mxu0 0
  %2797 = vmatpush.bf16.msra.mxu0 0
  %2798 = vmatpush.bf16.msra.mxu0 %v1253
  %2799 = vmatpush.bf16.msra.mxu0 %v1252
  %2800 = vmatmul.bf16.gmra.mxu0 %v2407
  %v2801 = vpop.f32.mrf.mxu0
  %v2802 = vadd.f32 0.0, %v2801
  %v2803 = vpop.f32.mrf.mxu0
  %v2804 = vadd.f32 0.0, %v2803
  %2805 = vmatmul.bf16.gmra.mxu0 %v2410
  %v2806 = vpop.f32.mrf.mxu0
  %v2807 = vadd.f32 0.0, %v2806
  %v2808 = vpop.f32.mrf.mxu0
  %v2809 = vadd.f32 0.0, %v2808
  %2810 = vmatmul.bf16.gmra.mxu0 %v2413
  %v2811 = vpop.f32.mrf.mxu0
  %v2812 = vadd.f32 0.0, %v2811
  %v2813 = vpop.f32.mrf.mxu0
  %2814 = vdwg.mxu0
  %v2815 = vadd.f32 %v2787, %v2802
  %v2816 = vadd.f32 %v2788, %v2804
  %v2817 = vadd.f32 %v2789, %v2807
  %v2818 = vadd.f32 %v2790, %v2809
  %v2819 = vadd.f32 %v2791, %v2812
  %2820 = vmatpush.bf16.msra.mxu0 0
  %2821 = vmatpush.bf16.msra.mxu0 0
  %2822 = vmatpush.bf16.msra.mxu0 0
  %2823 = vmatpush.bf16.msra.mxu0 0
  %2824 = vmatpush.bf16.msra.mxu0 0
  %2825 = vmatpush.bf16.msra.mxu0 0
  %2826 = vmatpush.bf16.msra.mxu0 %v1310
  %2827 = vmatpush.bf16.msra.mxu0 %v1309
  %2828 = vmatmul.bf16.gmra.mxu0 %v2452
  %v2829 = vpop.f32.mrf.mxu0
  %v2830 = vadd.f32 0.0, %v2829
  %v2831 = vpop.f32.mrf.mxu0
  %v2832 = vadd.f32 0.0, %v2831
  %2833 = vmatmul.bf16.gmra.mxu0 %v2455
  %v2834 = vpop.f32.mrf.mxu0
  %v2835 = vadd.f32 0.0, %v2834
  %v2836 = vpop.f32.mrf.mxu0
  %v2837 = vadd.f32 0.0, %v2836
  %2838 = vmatmul.bf16.gmra.mxu0 %v2458
  %v2839 = vpop.f32.mrf.mxu0
  %v2840 = vadd.f32 0.0, %v2839
  %v2841 = vpop.f32.mrf.mxu0
  %2842 = vdwg.mxu0
  %v2843 = vadd.f32 %v2815, %v2830
  %v2844 = vadd.f32 %v2816, %v2832
  %v2845 = vadd.f32 %v2817, %v2835
  %v2846 = vadd.f32 %v2818, %v2837
  %v2847 = vadd.f32 %v2819, %v2840
  %2848 = vmatpush.bf16.msra.mxu0 0
  %2849 = vmatpush.bf16.msra.mxu0 0
  %2850 = vmatpush.bf16.msra.mxu0 0
  %2851 = vmatpush.bf16.msra.mxu0 0
  %2852 = vmatpush.bf16.msra.mxu0 0
  %2853 = vmatpush.bf16.msra.mxu0 0
  %2854 = vmatpush.bf16.msra.mxu0 %v1367
  %2855 = vmatpush.bf16.msra.mxu0 %v1366
  %2856 = vmatmul.bf16.gmra.mxu0 %v2497
  %v2857 = vpop.f32.mrf.mxu0
  %v2858 = vadd.f32 0.0, %v2857
  %v2859 = vpop.f32.mrf.mxu0
  %v2860 = vadd.f32 0.0, %v2859
  %2861 = vmatmul.bf16.gmra.mxu0 %v2500
  %v2862 = vpop.f32.mrf.mxu0
  %v2863 = vadd.f32 0.0, %v2862
  %v2864 = vpop.f32.mrf.mxu0
  %v2865 = vadd.f32 0.0, %v2864
  %2866 = vmatmul.bf16.gmra.mxu0 %v2503
  %v2867 = vpop.f32.mrf.mxu0
  %v2868 = vadd.f32 0.0, %v2867
  %v2869 = vpop.f32.mrf.mxu0
  %2870 = vdwg.mxu0
  %v2871 = vadd.f32 %v2843, %v2858
  %v2872 = vadd.f32 %v2844, %v2860
  %v2873 = vadd.f32 %v2845, %v2863
  %v2874 = vadd.f32 %v2846, %v2865
  %v2875 = vadd.f32 %v2847, %v2868
  %v2876 = vld [vmem:[#allocation2 + $0x118] sm:$0xff]
  %v2877 = vld [vmem:[#allocation2 + $0x120] sm:$0xff]
  %v2878 = vld [vmem:[#allocation2 + $0x128] sm:$0xff]
  %v2879 = vld [vmem:[#allocation2 + $0x130] sm:$0xff]
  %v2880 = vld [vmem:[#allocation2 + $0x138] sm:$0xff]
  %v2881 = vpack.c.bf16 %v2877, %v2876
  %v2882 = vpack.c.bf16 %v2879, %v2878
  %v2883 = vpack.c.bf16 %v2880, %v2880
  %v2885 = vsel %vm100, %v2881, 0
  %v2888 = vsel %vm100, %v2882, 0
  %v2891 = vsel %vm100, %v2883, 0
  %2893 = vmatpush.bf16.msra.mxu0 0
  %2894 = vmatpush.bf16.msra.mxu0 0
  %2895 = vmatpush.bf16.msra.mxu0 0
  %2896 = vmatpush.bf16.msra.mxu0 0
  %2897 = vmatpush.bf16.msra.mxu0 0
  %2898 = vmatpush.bf16.msra.mxu0 0
  %2899 = vmatpush.bf16.msra.mxu0 %v1424
  %2900 = vmatpush.bf16.msra.mxu0 %v1423
  %2901 = vmatmul.bf16.gmra.mxu0 %v2885
  %v2902 = vpop.f32.mrf.mxu0
  %v2903 = vadd.f32 0.0, %v2902
  %v2904 = vpop.f32.mrf.mxu0
  %v2905 = vadd.f32 0.0, %v2904
  %2906 = vmatmul.bf16.gmra.mxu0 %v2888
  %v2907 = vpop.f32.mrf.mxu0
  %v2908 = vadd.f32 0.0, %v2907
  %v2909 = vpop.f32.mrf.mxu0
  %v2910 = vadd.f32 0.0, %v2909
  %2911 = vmatmul.bf16.gmra.mxu0 %v2891
  %v2912 = vpop.f32.mrf.mxu0
  %v2913 = vadd.f32 0.0, %v2912
  %v2914 = vpop.f32.mrf.mxu0
  %2915 = vdwg.mxu0
  %v2916 = vadd.f32 %v2871, %v2903
  %v2917 = vadd.f32 %v2872, %v2905
  %v2918 = vadd.f32 %v2873, %v2908
  %v2919 = vadd.f32 %v2874, %v2910
  %v2920 = vadd.f32 %v2875, %v2913
  %v2921 = vld [vmem:[#allocation2 + $0x120] sm:$0xff]
  %v2922 = vld [vmem:[#allocation2 + $0x128] sm:$0xff]
  %v2923 = vld [vmem:[#allocation2 + $0x130] sm:$0xff]
  %v2924 = vld [vmem:[#allocation2 + $0x138] sm:$0xff]
  %v2925 = vld [vmem:[#allocation2 + $0x140] sm:$0xff]
  %v2926 = vpack.c.bf16 %v2922, %v2921
  %v2927 = vpack.c.bf16 %v2924, %v2923
  %v2928 = vpack.c.bf16 %v2925, %v2925
  %v2930 = vsel %vm100, %v2926, 0
  %v2933 = vsel %vm100, %v2927, 0
  %v2936 = vsel %vm100, %v2928, 0
  %2938 = vmatpush.bf16.msra.mxu0 0
  %2939 = vmatpush.bf16.msra.mxu0 0
  %2940 = vmatpush.bf16.msra.mxu0 0
  %2941 = vmatpush.bf16.msra.mxu0 0
  %2942 = vmatpush.bf16.msra.mxu0 0
  %2943 = vmatpush.bf16.msra.mxu0 0
  %2944 = vmatpush.bf16.msra.mxu0 %v1481
  %2945 = vmatpush.bf16.msra.mxu0 %v1480
  %2946 = vmatmul.bf16.gmra.mxu0 %v2930
  %v2947 = vpop.f32.mrf.mxu0
  %v2948 = vadd.f32 0.0, %v2947
  %v2949 = vpop.f32.mrf.mxu0
  %v2950 = vadd.f32 0.0, %v2949
  %2951 = vmatmul.bf16.gmra.mxu0 %v2933
  %v2952 = vpop.f32.mrf.mxu0
  %v2953 = vadd.f32 0.0, %v2952
  %v2954 = vpop.f32.mrf.mxu0
  %v2955 = vadd.f32 0.0, %v2954
  %2956 = vmatmul.bf16.gmra.mxu0 %v2936
  %v2957 = vpop.f32.mrf.mxu0
  %v2958 = vadd.f32 0.0, %v2957
  %v2959 = vpop.f32.mrf.mxu0
  %2960 = vdwg.mxu0
  %v2961 = vadd.f32 %v2916, %v2948
  %v2962 = vadd.f32 %v2917, %v2950
  %v2963 = vadd.f32 %v2918, %v2953
  %v2964 = vadd.f32 %v2919, %v2955
  %v2965 = vadd.f32 %v2920, %v2958
  %v2966 = vld [vmem:[#allocation2 + $0x128] sm:$0xff]
  %v2967 = vld [vmem:[#allocation2 + $0x130] sm:$0xff]
  %v2968 = vld [vmem:[#allocation2 + $0x138] sm:$0xff]
  %v2969 = vld [vmem:[#allocation2 + $0x140] sm:$0xff]
  %v2970 = vld [vmem:[#allocation2 + $0x148] sm:$0xff]
  %v2971 = vpack.c.bf16 %v2967, %v2966
  %v2972 = vpack.c.bf16 %v2969, %v2968
  %v2973 = vpack.c.bf16 %v2970, %v2970
  %v2975 = vsel %vm100, %v2971, 0
  %v2978 = vsel %vm100, %v2972, 0
  %v2981 = vsel %vm100, %v2973, 0
  %2983 = vmatpush.bf16.msra.mxu0 0
  %2984 = vmatpush.bf16.msra.mxu0 0
  %2985 = vmatpush.bf16.msra.mxu0 0
  %2986 = vmatpush.bf16.msra.mxu0 0
  %2987 = vmatpush.bf16.msra.mxu0 0
  %2988 = vmatpush.bf16.msra.mxu0 0
  %2989 = vmatpush.bf16.msra.mxu0 %v1538
  %2990 = vmatpush.bf16.msra.mxu0 %v1537
  %2991 = vmatmul.bf16.gmra.mxu0 %v2975
  %v2992 = vpop.f32.mrf.mxu0
  %v2993 = vadd.f32 0.0, %v2992
  %v2994 = vpop.f32.mrf.mxu0
  %v2995 = vadd.f32 0.0, %v2994
  %2996 = vmatmul.bf16.gmra.mxu0 %v2978
  %v2997 = vpop.f32.mrf.mxu0
  %v2998 = vadd.f32 0.0, %v2997
  %v2999 = vpop.f32.mrf.mxu0
  %v3000 = vadd.f32 0.0, %v2999
  %3001 = vmatmul.bf16.gmra.mxu0 %v2981
  %v3002 = vpop.f32.mrf.mxu0
  %v3003 = vadd.f32 0.0, %v3002
  %v3004 = vpop.f32.mrf.mxu0
  %3005 = vdwg.mxu0
  %v3006 = vadd.f32 %v2961, %v2993
  %v3007 = vadd.f32 %v2962, %v2995
  %v3008 = vadd.f32 %v2963, %v2998
  %v3009 = vadd.f32 %v2964, %v3000
  %v3010 = vadd.f32 %v2965, %v3003
  %v3011 = vadd.f32 %v3006, %v1578
  %v3012 = vadd.f32 %v3007, %v1578
  %v3013 = vadd.f32 %v3008, %v1578
  %v3014 = vadd.f32 %v3009, %v1578
  %v3015 = vadd.f32 %v3010, %v1578
  %v3016 = vmax.f32 %v3011, 0.0
  %v3017 = vmax.f32 %v3012, 0.0
  %v3018 = vmax.f32 %v3013, 0.0
  %v3019 = vmax.f32 %v3014, 0.0
  %v3020 = vmax.f32 %v3015, 0.0
  %s3021 = scalar_lea.vmem %s2, 400
  %v3022 = vld [vmem:[%s3021] sm:$0xf]
  %v3023 = vld [vmem:[%s3021 + $0x4] sm:$0xf]
  %v3024 = vld [vmem:[%s3021 + $0x8] sm:$0xf]
  %v3025 = vld [vmem:[%s3021 + $0xc] sm:$0xf]
  %v3026 = vpack.c.bf16 %v3016, %v3016
  %v3031 = vunpack.c.l.b16 %v3022
  %v3032 = vunpack.c.l.b16 %v3023
  %v3033 = vunpack.c.l.b16 %v3024
  %v3034 = vunpack.c.l.b16 %v3025
  %v3035 = vpack.c.b16 %v3032, %v3031
  %v3036 = vpack.c.b16 %v3034, %v3033
  %v3040 = vsel %vm100, %v3026, 0
  %3042 = vmatpush.bf16.msra.mxu0 0
  %3043 = vmatpush.bf16.msra.mxu0 0
  %3044 = vmatpush.bf16.msra.mxu0 0
  %3045 = vmatpush.bf16.msra.mxu0 0
  %3046 = vmatpush.bf16.msra.mxu0 0
  %3047 = vmatpush.bf16.msra.mxu0 0
  %3048 = vmatpush.bf16.msra.mxu0 %v3036
  %3049 = vmatpush.bf16.msra.mxu0 %v3035
  %3050 = vmatmul.bf16.gmra.mxu0 %v3040
  %v3051 = vpop.f32.mrf.mxu0
  %v3052 = vadd.f32 0.0, %v3051
  %v3053 = vpop.f32.mrf.mxu0
  %3054 = vdwg.mxu0
  %v3055 = vadd.f32 %v2717, %v3052
  %s3056 = scalar_lea.vmem %s2, 416
  %v3057 = vld [vmem:[%s3056] sm:$0xf]
  %v3058 = vld [vmem:[%s3056 + $0x4] sm:$0xf]
  %v3059 = vld [vmem:[%s3056 + $0x8] sm:$0xf]
  %v3060 = vld [vmem:[%s3056 + $0xc] sm:$0xf]
  %v3061 = vpack.c.bf16 %v3017, %v3017
  %v3066 = vunpack.c.l.b16 %v3057
  %v3067 = vunpack.c.l.b16 %v3058
  %v3068 = vunpack.c.l.b16 %v3059
  %v3069 = vunpack.c.l.b16 %v3060
  %v3070 = vpack.c.b16 %v3067, %v3066
  %v3071 = vpack.c.b16 %v3069, %v3068
  %v3075 = vsel %vm100, %v3061, 0
  %3077 = vmatpush.bf16.msra.mxu0 0
  %3078 = vmatpush.bf16.msra.mxu0 0
  %3079 = vmatpush.bf16.msra.mxu0 0
  %3080 = vmatpush.bf16.msra.mxu0 0
  %3081 = vmatpush.bf16.msra.mxu0 0
  %3082 = vmatpush.bf16.msra.mxu0 0
  %3083 = vmatpush.bf16.msra.mxu0 %v3071
  %3084 = vmatpush.bf16.msra.mxu0 %v3070
  %3085 = vmatmul.bf16.gmra.mxu0 %v3075
  %v3086 = vpop.f32.mrf.mxu0
  %v3087 = vadd.f32 0.0, %v3086
  %v3088 = vpop.f32.mrf.mxu0
  %3089 = vdwg.mxu0
  %v3090 = vadd.f32 %v3055, %v3087
  %s3091 = scalar_lea.vmem %s2, 432
  %v3092 = vld [vmem:[%s3091] sm:$0xf]
  %v3093 = vld [vmem:[%s3091 + $0x4] sm:$0xf]
  %v3094 = vld [vmem:[%s3091 + $0x8] sm:$0xf]
  %v3095 = vld [vmem:[%s3091 + $0xc] sm:$0xf]
  %v3096 = vpack.c.bf16 %v3018, %v3018
  %v3101 = vunpack.c.l.b16 %v3092
  %v3102 = vunpack.c.l.b16 %v3093
  %v3103 = vunpack.c.l.b16 %v3094
  %v3104 = vunpack.c.l.b16 %v3095
  %v3105 = vpack.c.b16 %v3102, %v3101
  %v3106 = vpack.c.b16 %v3104, %v3103
  %v3110 = vsel %vm100, %v3096, 0
  %3112 = vmatpush.bf16.msra.mxu0 0
  %3113 = vmatpush.bf16.msra.mxu0 0
  %3114 = vmatpush.bf16.msra.mxu0 0
  %3115 = vmatpush.bf16.msra.mxu0 0
  %3116 = vmatpush.bf16.msra.mxu0 0
  %3117 = vmatpush.bf16.msra.mxu0 0
  %3118 = vmatpush.bf16.msra.mxu0 %v3106
  %3119 = vmatpush.bf16.msra.mxu0 %v3105
  %3120 = vmatmul.bf16.gmra.mxu0 %v3110
  %v3121 = vpop.f32.mrf.mxu0
  %v3122 = vadd.f32 0.0, %v3121
  %v3123 = vpop.f32.mrf.mxu0
  %3124 = vdwg.mxu0
  %v3125 = vadd.f32 %v3090, %v3122
  %s3126 = scalar_lea.vmem %s2, 448
  %v3127 = vld [vmem:[%s3126] sm:$0xf]
  %v3128 = vld [vmem:[%s3126 + $0x4] sm:$0xf]
  %v3129 = vld [vmem:[%s3126 + $0x8] sm:$0xf]
  %v3130 = vld [vmem:[%s3126 + $0xc] sm:$0xf]
  %v3131 = vpack.c.bf16 %v3019, %v3019
  %v3136 = vunpack.c.l.b16 %v3127
  %v3137 = vunpack.c.l.b16 %v3128
  %v3138 = vunpack.c.l.b16 %v3129
  %v3139 = vunpack.c.l.b16 %v3130
  %v3140 = vpack.c.b16 %v3137, %v3136
  %v3141 = vpack.c.b16 %v3139, %v3138
  %v3145 = vsel %vm100, %v3131, 0
  %3147 = vmatpush.bf16.msra.mxu0 0
  %3148 = vmatpush.bf16.msra.mxu0 0
  %3149 = vmatpush.bf16.msra.mxu0 0
  %3150 = vmatpush.bf16.msra.mxu0 0
  %3151 = vmatpush.bf16.msra.mxu0 0
  %3152 = vmatpush.bf16.msra.mxu0 0
  %3153 = vmatpush.bf16.msra.mxu0 %v3141
  %3154 = vmatpush.bf16.msra.mxu0 %v3140
  %3155 = vmatmul.bf16.gmra.mxu0 %v3145
  %v3156 = vpop.f32.mrf.mxu0
  %v3157 = vadd.f32 0.0, %v3156
  %v3158 = vpop.f32.mrf.mxu0
  %3159 = vdwg.mxu0
  %v3160 = vadd.f32 %v3125, %v3157
  %s3161 = scalar_lea.vmem %s2, 464
  %v3162 = vld [vmem:[%s3161] sm:$0xf]
  %v3163 = vld [vmem:[%s3161 + $0x4] sm:$0xf]
  %v3164 = vld [vmem:[%s3161 + $0x8] sm:$0xf]
  %v3165 = vld [vmem:[%s3161 + $0xc] sm:$0xf]
  %v3166 = vpack.c.bf16 %v3020, %v3020
  %v3171 = vunpack.c.l.b16 %v3162
  %v3172 = vunpack.c.l.b16 %v3163
  %v3173 = vunpack.c.l.b16 %v3164
  %v3174 = vunpack.c.l.b16 %v3165
  %v3175 = vpack.c.b16 %v3172, %v3171
  %v3176 = vpack.c.b16 %v3174, %v3173
  %v3180 = vsel %vm100, %v3166, 0
  %3182 = vmatpush.bf16.msra.mxu0 0
  %3183 = vmatpush.bf16.msra.mxu0 0
  %3184 = vmatpush.bf16.msra.mxu0 0
  %3185 = vmatpush.bf16.msra.mxu0 0
  %3186 = vmatpush.bf16.msra.mxu0 0
  %3187 = vmatpush.bf16.msra.mxu0 0
  %3188 = vmatpush.bf16.msra.mxu0 %v3176
  %3189 = vmatpush.bf16.msra.mxu0 %v3175
  %3190 = vmatmul.bf16.gmra.mxu0 %v3180
  %v3191 = vpop.f32.mrf.mxu0
  %v3192 = vadd.f32 0.0, %v3191
  %v3193 = vpop.f32.mrf.mxu0
  %3194 = vdwg.mxu0
  %v3195 = vadd.f32 %v3160, %v3192
  %3196 = vmatpush.bf16.msra.mxu0 0
  %3197 = vmatpush.bf16.msra.mxu0 0
  %3198 = vmatpush.bf16.msra.mxu0 0
  %3199 = vmatpush.bf16.msra.mxu0 0
  %3200 = vmatpush.bf16.msra.mxu0 0
  %3201 = vmatpush.bf16.msra.mxu0 0
  %3202 = vmatpush.bf16.msra.mxu0 %v1100
  %3203 = vmatpush.bf16.msra.mxu0 %v1099
  %3204 = vmatmul.bf16.gmra.mxu0 %v2452
  %v3205 = vpop.f32.mrf.mxu0
  %v3206 = vadd.f32 0.0, %v3205
  %v3207 = vpop.f32.mrf.mxu0
  %v3208 = vadd.f32 0.0, %v3207
  %3209 = vmatmul.bf16.gmra.mxu0 %v2455
  %v3210 = vpop.f32.mrf.mxu0
  %v3211 = vadd.f32 0.0, %v3210
  %v3212 = vpop.f32.mrf.mxu0
  %v3213 = vadd.f32 0.0, %v3212
  %3214 = vmatmul.bf16.gmra.mxu0 %v2458
  %v3215 = vpop.f32.mrf.mxu0
  %v3216 = vadd.f32 0.0, %v3215
  %v3217 = vpop.f32.mrf.mxu0
  %3218 = vdwg.mxu0
  %3219 = vmatpush.bf16.msra.mxu0 0
  %3220 = vmatpush.bf16.msra.mxu0 0
  %3221 = vmatpush.bf16.msra.mxu0 0
  %3222 = vmatpush.bf16.msra.mxu0 0
  %3223 = vmatpush.bf16.msra.mxu0 0
  %3224 = vmatpush.bf16.msra.mxu0 0
  %3225 = vmatpush.bf16.msra.mxu0 %v1144
  %3226 = vmatpush.bf16.msra.mxu0 %v1143
  %3227 = vmatmul.bf16.gmra.mxu0 %v2407
  %v3228 = vpop.f32.mrf.mxu0
  %v3229 = vadd.f32 %v3206, %v3228
  %v3230 = vpop.f32.mrf.mxu0
  %v3231 = vadd.f32 %v3208, %v3230
  %3232 = vmatmul.bf16.gmra.mxu0 %v2410
  %v3233 = vpop.f32.mrf.mxu0
  %v3234 = vadd.f32 %v3211, %v3233
  %v3235 = vpop.f32.mrf.mxu0
  %v3236 = vadd.f32 %v3213, %v3235
  %3237 = vmatmul.bf16.gmra.mxu0 %v2413
  %v3238 = vpop.f32.mrf.mxu0
  %v3239 = vadd.f32 %v3216, %v3238
  %v3240 = vpop.f32.mrf.mxu0
  %3241 = vdwg.mxu0
  %3242 = vmatpush.bf16.msra.mxu0 0
  %3243 = vmatpush.bf16.msra.mxu0 0
  %3244 = vmatpush.bf16.msra.mxu0 0
  %3245 = vmatpush.bf16.msra.mxu0 0
  %3246 = vmatpush.bf16.msra.mxu0 0
  %3247 = vmatpush.bf16.msra.mxu0 0
  %3248 = vmatpush.bf16.msra.mxu0 %v1196
  %3249 = vmatpush.bf16.msra.mxu0 %v1195
  %3250 = vmatmul.bf16.gmra.mxu0 %v2497
  %v3251 = vpop.f32.mrf.mxu0
  %v3252 = vadd.f32 0.0, %v3251
  %v3253 = vpop.f32.mrf.mxu0
  %v3254 = vadd.f32 0.0, %v3253
  %3255 = vmatmul.bf16.gmra.mxu0 %v2500
  %v3256 = vpop.f32.mrf.mxu0
  %v3257 = vadd.f32 0.0, %v3256
  %v3258 = vpop.f32.mrf.mxu0
  %v3259 = vadd.f32 0.0, %v3258
  %3260 = vmatmul.bf16.gmra.mxu0 %v2503
  %v3261 = vpop.f32.mrf.mxu0
  %v3262 = vadd.f32 0.0, %v3261
  %v3263 = vpop.f32.mrf.mxu0
  %3264 = vdwg.mxu0
  %v3265 = vadd.f32 %v3229, %v3252
  %v3266 = vadd.f32 %v3231, %v3254
  %v3267 = vadd.f32 %v3234, %v3257
  %v3268 = vadd.f32 %v3236, %v3259
  %v3269 = vadd.f32 %v3239, %v3262
  %3270 = vmatpush.bf16.msra.mxu0 0
  %3271 = vmatpush.bf16.msra.mxu0 0
  %3272 = vmatpush.bf16.msra.mxu0 0
  %3273 = vmatpush.bf16.msra.mxu0 0
  %3274 = vmatpush.bf16.msra.mxu0 0
  %3275 = vmatpush.bf16.msra.mxu0 0
  %3276 = vmatpush.bf16.msra.mxu0 %v1253
  %3277 = vmatpush.bf16.msra.mxu0 %v1252
  %3278 = vmatmul.bf16.gmra.mxu0 %v2885
  %v3279 = vpop.f32.mrf.mxu0
  %v3280 = vadd.f32 0.0, %v3279
  %v3281 = vpop.f32.mrf.mxu0
  %v3282 = vadd.f32 0.0, %v3281
  %3283 = vmatmul.bf16.gmra.mxu0 %v2888
  %v3284 = vpop.f32.mrf.mxu0
  %v3285 = vadd.f32 0.0, %v3284
  %v3286 = vpop.f32.mrf.mxu0
  %v3287 = vadd.f32 0.0, %v3286
  %3288 = vmatmul.bf16.gmra.mxu0 %v2891
  %v3289 = vpop.f32.mrf.mxu0
  %v3290 = vadd.f32 0.0, %v3289
  %v3291 = vpop.f32.mrf.mxu0
  %3292 = vdwg.mxu0
  %v3293 = vadd.f32 %v3265, %v3280
  %v3294 = vadd.f32 %v3266, %v3282
  %v3295 = vadd.f32 %v3267, %v3285
  %v3296 = vadd.f32 %v3268, %v3287
  %v3297 = vadd.f32 %v3269, %v3290
  %3298 = vmatpush.bf16.msra.mxu0 0
  %3299 = vmatpush.bf16.msra.mxu0 0
  %3300 = vmatpush.bf16.msra.mxu0 0
  %3301 = vmatpush.bf16.msra.mxu0 0
  %3302 = vmatpush.bf16.msra.mxu0 0
  %3303 = vmatpush.bf16.msra.mxu0 0
  %3304 = vmatpush.bf16.msra.mxu0 %v1310
  %3305 = vmatpush.bf16.msra.mxu0 %v1309
  %3306 = vmatmul.bf16.gmra.mxu0 %v2930
  %v3307 = vpop.f32.mrf.mxu0
  %v3308 = vadd.f32 0.0, %v3307
  %v3309 = vpop.f32.mrf.mxu0
  %v3310 = vadd.f32 0.0, %v3309
  %3311 = vmatmul.bf16.gmra.mxu0 %v2933
  %v3312 = vpop.f32.mrf.mxu0
  %v3313 = vadd.f32 0.0, %v3312
  %v3314 = vpop.f32.mrf.mxu0
  %v3315 = vadd.f32 0.0, %v3314
  %3316 = vmatmul.bf16.gmra.mxu0 %v2936
  %v3317 = vpop.f32.mrf.mxu0
  %v3318 = vadd.f32 0.0, %v3317
  %v3319 = vpop.f32.mrf.mxu0
  %3320 = vdwg.mxu0
  %v3321 = vadd.f32 %v3293, %v3308
  %v3322 = vadd.f32 %v3294, %v3310
  %v3323 = vadd.f32 %v3295, %v3313
  %v3324 = vadd.f32 %v3296, %v3315
  %v3325 = vadd.f32 %v3297, %v3318
  %3326 = vmatpush.bf16.msra.mxu0 0
  %3327 = vmatpush.bf16.msra.mxu0 0
  %3328 = vmatpush.bf16.msra.mxu0 0
  %3329 = vmatpush.bf16.msra.mxu0 0
  %3330 = vmatpush.bf16.msra.mxu0 0
  %3331 = vmatpush.bf16.msra.mxu0 0
  %3332 = vmatpush.bf16.msra.mxu0 %v1367
  %3333 = vmatpush.bf16.msra.mxu0 %v1366
  %3334 = vmatmul.bf16.gmra.mxu0 %v2975
  %v3335 = vpop.f32.mrf.mxu0
  %v3336 = vadd.f32 0.0, %v3335
  %v3337 = vpop.f32.mrf.mxu0
  %v3338 = vadd.f32 0.0, %v3337
  %3339 = vmatmul.bf16.gmra.mxu0 %v2978
  %v3340 = vpop.f32.mrf.mxu0
  %v3341 = vadd.f32 0.0, %v3340
  %v3342 = vpop.f32.mrf.mxu0
  %v3343 = vadd.f32 0.0, %v3342
  %3344 = vmatmul.bf16.gmra.mxu0 %v2981
  %v3345 = vpop.f32.mrf.mxu0
  %v3346 = vadd.f32 0.0, %v3345
  %v3347 = vpop.f32.mrf.mxu0
  %3348 = vdwg.mxu0
  %v3349 = vadd.f32 %v3321, %v3336
  %v3350 = vadd.f32 %v3322, %v3338
  %v3351 = vadd.f32 %v3323, %v3341
  %v3352 = vadd.f32 %v3324, %v3343
  %v3353 = vadd.f32 %v3325, %v3346
  %v3354 = vld [vmem:[#allocation2 + $0x150] sm:$0xff]
  %v3355 = vld [vmem:[#allocation2 + $0x158] sm:$0xff]
  %v3356 = vld [vmem:[#allocation2 + $0x160] sm:$0xff]
  %v3357 = vld [vmem:[#allocation2 + $0x168] sm:$0xff]
  %v3358 = vld [vmem:[#allocation2 + $0x170] sm:$0xff]
  %v3359 = vpack.c.bf16 %v3355, %v3354
  %v3360 = vpack.c.bf16 %v3357, %v3356
  %v3361 = vpack.c.bf16 %v3358, %v3358
  %v3363 = vsel %vm100, %v3359, 0
  %v3366 = vsel %vm100, %v3360, 0
  %v3369 = vsel %vm100, %v3361, 0
  %3371 = vmatpush.bf16.msra.mxu0 0
  %3372 = vmatpush.bf16.msra.mxu0 0
  %3373 = vmatpush.bf16.msra.mxu0 0
  %3374 = vmatpush.bf16.msra.mxu0 0
  %3375 = vmatpush.bf16.msra.mxu0 0
  %3376 = vmatpush.bf16.msra.mxu0 0
  %3377 = vmatpush.bf16.msra.mxu0 %v1424
  %3378 = vmatpush.bf16.msra.mxu0 %v1423
  %3379 = vmatmul.bf16.gmra.mxu0 %v3363
  %v3380 = vpop.f32.mrf.mxu0
  %v3381 = vadd.f32 0.0, %v3380
  %v3382 = vpop.f32.mrf.mxu0
  %v3383 = vadd.f32 0.0, %v3382
  %3384 = vmatmul.bf16.gmra.mxu0 %v3366
  %v3385 = vpop.f32.mrf.mxu0
  %v3386 = vadd.f32 0.0, %v3385
  %v3387 = vpop.f32.mrf.mxu0
  %v3388 = vadd.f32 0.0, %v3387
  %3389 = vmatmul.bf16.gmra.mxu0 %v3369
  %v3390 = vpop.f32.mrf.mxu0
  %v3391 = vadd.f32 0.0, %v3390
  %v3392 = vpop.f32.mrf.mxu0
  %3393 = vdwg.mxu0
  %v3394 = vadd.f32 %v3349, %v3381
  %v3395 = vadd.f32 %v3350, %v3383
  %v3396 = vadd.f32 %v3351, %v3386
  %v3397 = vadd.f32 %v3352, %v3388
  %v3398 = vadd.f32 %v3353, %v3391
  %v3399 = vld [vmem:[#allocation2 + $0x158] sm:$0xff]
  %v3400 = vld [vmem:[#allocation2 + $0x160] sm:$0xff]
  %v3401 = vld [vmem:[#allocation2 + $0x168] sm:$0xff]
  %v3402 = vld [vmem:[#allocation2 + $0x170] sm:$0xff]
  %v3403 = vld [vmem:[#allocation2 + $0x178] sm:$0xff]
  %v3404 = vpack.c.bf16 %v3400, %v3399
  %v3405 = vpack.c.bf16 %v3402, %v3401
  %v3406 = vpack.c.bf16 %v3403, %v3403
  %v3408 = vsel %vm100, %v3404, 0
  %v3411 = vsel %vm100, %v3405, 0
  %v3414 = vsel %vm100, %v3406, 0
  %3416 = vmatpush.bf16.msra.mxu0 0
  %3417 = vmatpush.bf16.msra.mxu0 0
  %3418 = vmatpush.bf16.msra.mxu0 0
  %3419 = vmatpush.bf16.msra.mxu0 0
  %3420 = vmatpush.bf16.msra.mxu0 0
  %3421 = vmatpush.bf16.msra.mxu0 0
  %3422 = vmatpush.bf16.msra.mxu0 %v1481
  %3423 = vmatpush.bf16.msra.mxu0 %v1480
  %3424 = vmatmul.bf16.gmra.mxu0 %v3408
  %v3425 = vpop.f32.mrf.mxu0
  %v3426 = vadd.f32 0.0, %v3425
  %v3427 = vpop.f32.mrf.mxu0
  %v3428 = vadd.f32 0.0, %v3427
  %3429 = vmatmul.bf16.gmra.mxu0 %v3411
  %v3430 = vpop.f32.mrf.mxu0
  %v3431 = vadd.f32 0.0, %v3430
  %v3432 = vpop.f32.mrf.mxu0
  %v3433 = vadd.f32 0.0, %v3432
  %3434 = vmatmul.bf16.gmra.mxu0 %v3414
  %v3435 = vpop.f32.mrf.mxu0
  %v3436 = vadd.f32 0.0, %v3435
  %v3437 = vpop.f32.mrf.mxu0
  %3438 = vdwg.mxu0
  %v3439 = vadd.f32 %v3394, %v3426
  %v3440 = vadd.f32 %v3395, %v3428
  %v3441 = vadd.f32 %v3396, %v3431
  %v3442 = vadd.f32 %v3397, %v3433
  %v3443 = vadd.f32 %v3398, %v3436
  %v3444 = vld [vmem:[#allocation2 + $0x160] sm:$0xff]
  %v3445 = vld [vmem:[#allocation2 + $0x168] sm:$0xff]
  %v3446 = vld [vmem:[#allocation2 + $0x170] sm:$0xff]
  %v3447 = vld [vmem:[#allocation2 + $0x178] sm:$0xff]
  %v3448 = vld [vmem:[#allocation2 + $0x180] sm:$0xff]
  %v3449 = vpack.c.bf16 %v3445, %v3444
  %v3450 = vpack.c.bf16 %v3447, %v3446
  %v3451 = vpack.c.bf16 %v3448, %v3448
  %v3453 = vsel %vm100, %v3449, 0
  %v3456 = vsel %vm100, %v3450, 0
  %v3459 = vsel %vm100, %v3451, 0
  %3461 = vmatpush.bf16.msra.mxu0 0
  %3462 = vmatpush.bf16.msra.mxu0 0
  %3463 = vmatpush.bf16.msra.mxu0 0
  %3464 = vmatpush.bf16.msra.mxu0 0
  %3465 = vmatpush.bf16.msra.mxu0 0
  %3466 = vmatpush.bf16.msra.mxu0 0
  %3467 = vmatpush.bf16.msra.mxu0 %v1538
  %3468 = vmatpush.bf16.msra.mxu0 %v1537
  %3469 = vmatmul.bf16.gmra.mxu0 %v3453
  %v3470 = vpop.f32.mrf.mxu0
  %v3471 = vadd.f32 0.0, %v3470
  %v3472 = vpop.f32.mrf.mxu0
  %v3473 = vadd.f32 0.0, %v3472
  %3474 = vmatmul.bf16.gmra.mxu0 %v3456
  %v3475 = vpop.f32.mrf.mxu0
  %v3476 = vadd.f32 0.0, %v3475
  %v3477 = vpop.f32.mrf.mxu0
  %v3478 = vadd.f32 0.0, %v3477
  %3479 = vmatmul.bf16.gmra.mxu0 %v3459
  %v3480 = vpop.f32.mrf.mxu0
  %v3481 = vadd.f32 0.0, %v3480
  %v3482 = vpop.f32.mrf.mxu0
  %3483 = vdwg.mxu0
  %v3484 = vadd.f32 %v3439, %v3471
  %v3485 = vadd.f32 %v3440, %v3473
  %v3486 = vadd.f32 %v3441, %v3476
  %v3487 = vadd.f32 %v3442, %v3478
  %v3488 = vadd.f32 %v3443, %v3481
  %v3489 = vadd.f32 %v3484, %v1578
  %v3490 = vadd.f32 %v3485, %v1578
  %v3491 = vadd.f32 %v3486, %v1578
  %v3492 = vadd.f32 %v3487, %v1578
  %v3493 = vadd.f32 %v3488, %v1578
  %v3494 = vmax.f32 %v3489, 0.0
  %v3495 = vmax.f32 %v3490, 0.0
  %v3496 = vmax.f32 %v3491, 0.0
  %v3497 = vmax.f32 %v3492, 0.0
  %v3498 = vmax.f32 %v3493, 0.0
  %s3499 = scalar_lea.vmem %s2, 480
  %v3500 = vld [vmem:[%s3499] sm:$0xf]
  %v3501 = vld [vmem:[%s3499 + $0x4] sm:$0xf]
  %v3502 = vld [vmem:[%s3499 + $0x8] sm:$0xf]
  %v3503 = vld [vmem:[%s3499 + $0xc] sm:$0xf]
  %v3504 = vpack.c.bf16 %v3494, %v3494
  %v3509 = vunpack.c.l.b16 %v3500
  %v3510 = vunpack.c.l.b16 %v3501
  %v3511 = vunpack.c.l.b16 %v3502
  %v3512 = vunpack.c.l.b16 %v3503
  %v3513 = vpack.c.b16 %v3510, %v3509
  %v3514 = vpack.c.b16 %v3512, %v3511
  %v3518 = vsel %vm100, %v3504, 0
  %3520 = vmatpush.bf16.msra.mxu0 0
  %3521 = vmatpush.bf16.msra.mxu0 0
  %3522 = vmatpush.bf16.msra.mxu0 0
  %3523 = vmatpush.bf16.msra.mxu0 0
  %3524 = vmatpush.bf16.msra.mxu0 0
  %3525 = vmatpush.bf16.msra.mxu0 0
  %3526 = vmatpush.bf16.msra.mxu0 %v3514
  %3527 = vmatpush.bf16.msra.mxu0 %v3513
  %3528 = vmatmul.bf16.gmra.mxu0 %v3518
  %v3529 = vpop.f32.mrf.mxu0
  %v3530 = vadd.f32 0.0, %v3529
  %v3531 = vpop.f32.mrf.mxu0
  %3532 = vdwg.mxu0
  %v3533 = vadd.f32 %v3195, %v3530
  %s3534 = scalar_lea.vmem %s2, 496
  %v3535 = vld [vmem:[%s3534] sm:$0xf]
  %v3536 = vld [vmem:[%s3534 + $0x4] sm:$0xf]
  %v3537 = vld [vmem:[%s3534 + $0x8] sm:$0xf]
  %v3538 = vld [vmem:[%s3534 + $0xc] sm:$0xf]
  %v3539 = vpack.c.bf16 %v3495, %v3495
  %v3544 = vunpack.c.l.b16 %v3535
  %v3545 = vunpack.c.l.b16 %v3536
  %v3546 = vunpack.c.l.b16 %v3537
  %v3547 = vunpack.c.l.b16 %v3538
  %v3548 = vpack.c.b16 %v3545, %v3544
  %v3549 = vpack.c.b16 %v3547, %v3546
  %v3553 = vsel %vm100, %v3539, 0
  %3555 = vmatpush.bf16.msra.mxu0 0
  %3556 = vmatpush.bf16.msra.mxu0 0
  %3557 = vmatpush.bf16.msra.mxu0 0
  %3558 = vmatpush.bf16.msra.mxu0 0
  %3559 = vmatpush.bf16.msra.mxu0 0
  %3560 = vmatpush.bf16.msra.mxu0 0
  %3561 = vmatpush.bf16.msra.mxu0 %v3549
  %3562 = vmatpush.bf16.msra.mxu0 %v3548
  %3563 = vmatmul.bf16.gmra.mxu0 %v3553
  %v3564 = vpop.f32.mrf.mxu0
  %v3565 = vadd.f32 0.0, %v3564
  %v3566 = vpop.f32.mrf.mxu0
  %3567 = vdwg.mxu0
  %v3568 = vadd.f32 %v3533, %v3565
  %s3569 = scalar_lea.vmem %s2, 512
  %v3570 = vld [vmem:[%s3569] sm:$0xf]
  %v3571 = vld [vmem:[%s3569 + $0x4] sm:$0xf]
  %v3572 = vld [vmem:[%s3569 + $0x8] sm:$0xf]
  %v3573 = vld [vmem:[%s3569 + $0xc] sm:$0xf]
  %v3574 = vpack.c.bf16 %v3496, %v3496
  %v3579 = vunpack.c.l.b16 %v3570
  %v3580 = vunpack.c.l.b16 %v3571
  %v3581 = vunpack.c.l.b16 %v3572
  %v3582 = vunpack.c.l.b16 %v3573
  %v3583 = vpack.c.b16 %v3580, %v3579
  %v3584 = vpack.c.b16 %v3582, %v3581
  %v3588 = vsel %vm100, %v3574, 0
  %3590 = vmatpush.bf16.msra.mxu0 0
  %3591 = vmatpush.bf16.msra.mxu0 0
  %3592 = vmatpush.bf16.msra.mxu0 0
  %3593 = vmatpush.bf16.msra.mxu0 0
  %3594 = vmatpush.bf16.msra.mxu0 0
  %3595 = vmatpush.bf16.msra.mxu0 0
  %3596 = vmatpush.bf16.msra.mxu0 %v3584
  %3597 = vmatpush.bf16.msra.mxu0 %v3583
  %3598 = vmatmul.bf16.gmra.mxu0 %v3588
  %v3599 = vpop.f32.mrf.mxu0
  %v3600 = vadd.f32 0.0, %v3599
  %v3601 = vpop.f32.mrf.mxu0
  %3602 = vdwg.mxu0
  %v3603 = vadd.f32 %v3568, %v3600
  %s3604 = scalar_lea.vmem %s2, 528
  %v3605 = vld [vmem:[%s3604] sm:$0xf]
  %v3606 = vld [vmem:[%s3604 + $0x4] sm:$0xf]
  %v3607 = vld [vmem:[%s3604 + $0x8] sm:$0xf]
  %v3608 = vld [vmem:[%s3604 + $0xc] sm:$0xf]
  %v3609 = vpack.c.bf16 %v3497, %v3497
  %v3614 = vunpack.c.l.b16 %v3605
  %v3615 = vunpack.c.l.b16 %v3606
  %v3616 = vunpack.c.l.b16 %v3607
  %v3617 = vunpack.c.l.b16 %v3608
  %v3618 = vpack.c.b16 %v3615, %v3614
  %v3619 = vpack.c.b16 %v3617, %v3616
  %v3623 = vsel %vm100, %v3609, 0
  %3625 = vmatpush.bf16.msra.mxu0 0
  %3626 = vmatpush.bf16.msra.mxu0 0
  %3627 = vmatpush.bf16.msra.mxu0 0
  %3628 = vmatpush.bf16.msra.mxu0 0
  %3629 = vmatpush.bf16.msra.mxu0 0
  %3630 = vmatpush.bf16.msra.mxu0 0
  %3631 = vmatpush.bf16.msra.mxu0 %v3619
  %3632 = vmatpush.bf16.msra.mxu0 %v3618
  %3633 = vmatmul.bf16.gmra.mxu0 %v3623
  %v3634 = vpop.f32.mrf.mxu0
  %v3635 = vadd.f32 0.0, %v3634
  %v3636 = vpop.f32.mrf.mxu0
  %3637 = vdwg.mxu0
  %v3638 = vadd.f32 %v3603, %v3635
  %s3639 = scalar_lea.vmem %s2, 544
  %v3640 = vld [vmem:[%s3639] sm:$0xf]
  %v3641 = vld [vmem:[%s3639 + $0x4] sm:$0xf]
  %v3642 = vld [vmem:[%s3639 + $0x8] sm:$0xf]
  %v3643 = vld [vmem:[%s3639 + $0xc] sm:$0xf]
  %v3644 = vpack.c.bf16 %v3498, %v3498
  %v3649 = vunpack.c.l.b16 %v3640
  %v3650 = vunpack.c.l.b16 %v3641
  %v3651 = vunpack.c.l.b16 %v3642
  %v3652 = vunpack.c.l.b16 %v3643
  %v3653 = vpack.c.b16 %v3650, %v3649
  %v3654 = vpack.c.b16 %v3652, %v3651
  %v3658 = vsel %vm100, %v3644, 0
  %3660 = vmatpush.bf16.msra.mxu0 0
  %3661 = vmatpush.bf16.msra.mxu0 0
  %3662 = vmatpush.bf16.msra.mxu0 0
  %3663 = vmatpush.bf16.msra.mxu0 0
  %3664 = vmatpush.bf16.msra.mxu0 0
  %3665 = vmatpush.bf16.msra.mxu0 0
  %3666 = vmatpush.bf16.msra.mxu0 %v3654
  %3667 = vmatpush.bf16.msra.mxu0 %v3653
  %3668 = vmatmul.bf16.gmra.mxu0 %v3658
  %v3669 = vpop.f32.mrf.mxu0
  %v3670 = vadd.f32 0.0, %v3669
  %v3671 = vpop.f32.mrf.mxu0
  %3672 = vdwg.mxu0
  %v3673 = vadd.f32 %v3638, %v3670
  %v3674 = vperm.slane %v81, 0
  %v3675 = vadd.f32 %v3673, %v3674
  %v3676 = vsel %vm100, %v3675, 0.0
  %3677 = vadd.xlane.f32.xlu0 %v3676
  %v3678 = vpop.xlane.xlu0 %3677
  %v3679 = vrcp.pop 32.0
  %v3680 = vmul.f32 32.0, %v3679
  %v3681 = vsub.f32 1.0, %v3680
  %v3682 = vmul.f32 %v3679, %v3681
  %v3683 = vadd.f32 %v3679, %v3682
  %vm3684 = vweird.f32 %v3679
  %v3685 = vsel %vm3684, %v3679, %v3683
  %v3686 = vmul.f32 %v3678, %v3685
  %v3687 = vsub.f32 %v3675, %v3686
  %v3688 = vmul.f32 %v3687, %v3687
  %v3689 = vsel %vm100, %v3688, 0.0
  %3690 = vadd.xlane.f32.xlu0 %v3689
  %v3691 = vpop.xlane.xlu0 %3690
  %v3692 = vmul.f32 %v3691, %v3685
  %v3693 = vadd.f32 %v3692, 1e-05
  %v3694 = vrsqrt.pop %v3693
  %v3695 = vmul.f32 %v3694, %v3693
  %v3696 = vmul.f32 %v3695, %v3694
  %v3697 = vmul.f32 0.5, %v3696
  %v3698 = vsub.f32 1.5, %v3697
  %v3699 = vmul.f32 %v3694, %v3698
  %vm3700 = vweird.f32 %v3693
  %vm3701 = vweird.f32 %v3694
  %vm3702 = vmor %vm3700, %vm3701
  %v3703 = vsel %vm3702, %v3694, %v3699
  %v3704 = vmul.f32 %v3687, %v3703
  %v3705 = vperm.slane %v82, 0
  %v3706 = vmul.f32 %v3704, %v3705
  %v3707 = vperm.slane %v83, 0
  %v3708 = vadd.f32 %v3706, %v3707
  %v3709 = vtanh.pop %v3708
  %v3710 = vld [vmem:[%s1] sm:$0xf]
  %s3711 = scalar_lea.vmem %s2, 560
  %v3712 = vld [vmem:[%s3711] sm:$0xf]
  %v3713 = vld [vmem:[%s3711 + $0x4] sm:$0xf]
  %v3714 = vld [vmem:[%s3711 + $0x8] sm:$0xf]
  %v3715 = vld [vmem:[%s3711 + $0xc] sm:$0xf]
  %v3716 = vperm.slane %v84, 0
  %v3721 = vunpack.c.l.b16 %v3712
  %v3722 = vunpack.c.l.b16 %v3713
  %v3723 = vunpack.c.l.b16 %v3714
  %v3724 = vunpack.c.l.b16 %v3715
  %v3725 = vpack.c.b16 %v3722, %v3721
  %v3726 = vpack.c.b16 %v3724, %v3723
  %v3730 = vsel %vm100, %v3710, 0
  %3732 = vmatpush.bf16.msra.mxu0 0
  %3733 = vmatpush.bf16.msra.mxu0 0
  %3734 = vmatpush.bf16.msra.mxu0 0
  %3735 = vmatpush.bf16.msra.mxu0 0
  %3736 = vmatpush.bf16.msra.mxu0 0
  %3737 = vmatpush.bf16.msra.mxu0 0
  %3738 = vmatpush.bf16.msra.mxu0 %v3726
  %3739 = vmatpush.bf16.msra.mxu0 %v3725
  %3740 = vmatmul.bf16.gmra.mxu0 %v3730
  %v3741 = vpop.f32.mrf.mxu0
  %v3742 = vadd.f32 %v3716, %v3741
  %v3743 = vpop.f32.mrf.mxu0
  %3744 = vdwg.mxu0
  %v3745 = vtanh.pop %v3742
  %v3746 = vpack.c.bf16 %v3745, %v3745
  %s3747 = scalar_lea.vmem %s2, 576
  %v3748 = vld [vmem:[%s3747] sm:$0xf]
  %v3749 = vld [vmem:[%s3747 + $0x4] sm:$0xf]
  %v3750 = vld [vmem:[%s3747 + $0x8] sm:$0xf]
  %v3751 = vld [vmem:[%s3747 + $0xc] sm:$0xf]
  %v3752 = vperm.slane %v85, 0
  %v3757 = vunpack.c.l.b16 %v3748
  %v3758 = vunpack.c.l.b16 %v3749
  %v3759 = vunpack.c.l.b16 %v3750
  %v3760 = vunpack.c.l.b16 %v3751
  %v3761 = vpack.c.b16 %v3758, %v3757
  %v3762 = vpack.c.b16 %v3760, %v3759
  %v3766 = vsel %vm100, %v3746, 0
  %3768 = vmatpush.bf16.msra.mxu0 0
  %3769 = vmatpush.bf16.msra.mxu0 0
  %3770 = vmatpush.bf16.msra.mxu0 0
  %3771 = vmatpush.bf16.msra.mxu0 0
  %3772 = vmatpush.bf16.msra.mxu0 0
  %3773 = vmatpush.bf16.msra.mxu0 0
  %3774 = vmatpush.bf16.msra.mxu0 %v3762
  %3775 = vmatpush.bf16.msra.mxu0 %v3761
  %3776 = vmatmul.bf16.gmra.mxu0 %v3766
  %v3777 = vpop.f32.mrf.mxu0
  %v3778 = vadd.f32 %v3752, %v3777
  %v3779 = vpop.f32.mrf.mxu0
  %3780 = vdwg.mxu0
  %v3781 = vtanh.pop %v3778
  %v3782 = vpack.c.bf16 %v3709, %v3709
  %v3783 = vld [vmem:[%s4] sm:$0xf]
  %v3784 = vld [vmem:[%s4 + $0x4] sm:$0xf]
  %v3785 = vld [vmem:[%s4 + $0x8] sm:$0xf]
  %v3786 = vld [vmem:[%s4 + $0xc] sm:$0xf]
  %v3787 = vpack.c.bf16 %v3781, %v3781
  %s3788 = scalar_lea.vmem %s4, 16
  %v3789 = vld [vmem:[%s3788] sm:$0xf]
  %v3790 = vld [vmem:[%s3788 + $0x4] sm:$0xf]
  %v3791 = vld [vmem:[%s3788 + $0x8] sm:$0xf]
  %v3792 = vld [vmem:[%s3788 + $0xc] sm:$0xf]
  %v3797 = vunpack.c.l.b16 %v3789
  %v3798 = vunpack.c.l.b16 %v3790
  %v3799 = vunpack.c.l.b16 %v3791
  %v3800 = vunpack.c.l.b16 %v3792
  %v3801 = vpack.c.b16 %v3798, %v3797
  %v3802 = vpack.c.b16 %v3800, %v3799
  %v3806 = vsel %vm100, %v3787, 0
  %3808 = vmatpush.bf16.msra.mxu0 0
  %3809 = vmatpush.bf16.msra.mxu0 0
  %3810 = vmatpush.bf16.msra.mxu0 0
  %3811 = vmatpush.bf16.msra.mxu0 0
  %3812 = vmatpush.bf16.msra.mxu0 0
  %3813 = vmatpush.bf16.msra.mxu0 0
  %3814 = vmatpush.bf16.msra.mxu0 %v3802
  %3815 = vmatpush.bf16.msra.mxu0 %v3801
  %3816 = vmatmul.bf16.gmra.mxu0 %v3806
  %v3817 = vpop.f32.mrf.mxu0
  %v3818 = vadd.f32 0.0, %v3817
  %v3819 = vpop.f32.mrf.mxu0
  %3820 = vdwg.mxu0
  %v3825 = vunpack.c.l.b16 %v3783
  %v3826 = vunpack.c.l.b16 %v3784
  %v3827 = vunpack.c.l.b16 %v3785
  %v3828 = vunpack.c.l.b16 %v3786
  %v3829 = vpack.c.b16 %v3826, %v3825
  %v3830 = vpack.c.b16 %v3828, %v3827
  %v3834 = vsel %vm100, %v3782, 0
  %3836 = vmatpush.bf16.msra.mxu0 0
  %3837 = vmatpush.bf16.msra.mxu0 0
  %3838 = vmatpush.bf16.msra.mxu0 0
  %3839 = vmatpush.bf16.msra.mxu0 0
  %3840 = vmatpush.bf16.msra.mxu0 0
  %3841 = vmatpush.bf16.msra.mxu0 0
  %3842 = vmatpush.bf16.msra.mxu0 %v3830
  %3843 = vmatpush.bf16.msra.mxu0 %v3829
  %3844 = vmatmul.bf16.gmra.mxu0 %v3834
  %v3845 = vpop.f32.mrf.mxu0
  %v3846 = vadd.f32 %v3818, %v3845
  %v3847 = vpop.f32.mrf.mxu0
  %3848 = vdwg.mxu0
  %v3849 = vld [vmem:[%s5] sm:$0x1]
  %v3851 = vperm.slane %v3849, 0
  %v3853 = vadd.f32 %v3846, %v3851
  %v3854 = vtanh.pop %v3853
  %v3855 = vpack.c.bf16 %v3854, %v3854
  %v3856 = vld [vmem:[%s6] sm:$0xf]
  %v3857 = vld [vmem:[%s6 + $0x4] sm:$0xf]
  %v3858 = vld [vmem:[%s6 + $0x8] sm:$0xf]
  %v3859 = vld [vmem:[%s6 + $0xc] sm:$0xf]
  %v3860 = vld [vmem:[%s6 + $0x10] sm:$0xf]
  %v3861 = vld [vmem:[%s6 + $0x14] sm:$0xf]
  %v3862 = vld [vmem:[%s6 + $0x18] sm:$0xf]
  %v3863 = vld [vmem:[%s6 + $0x1c] sm:$0xf]
  %v3864 = vld [vmem:[%s7] sm:$0x1]
  %v3866 = vperm.slane %v3864, 0
  %v3876 = vunpack.c.l.b16 %v3856
  %v3877 = vunpack.c.l.b16 %v3857
  %v3878 = vunpack.c.l.b16 %v3858
  %v3879 = vunpack.c.l.b16 %v3859
  %v3880 = vunpack.c.l.b16 %v3860
  %v3881 = vunpack.c.l.b16 %v3861
  %v3882 = vunpack.c.l.b16 %v3862
  %v3883 = vunpack.c.l.b16 %v3863
  %v3884 = vpack.c.b16 %v3877, %v3876
  %v3885 = vpack.c.b16 %v3879, %v3878
  %v3886 = vpack.c.b16 %v3881, %v3880
  %v3887 = vpack.c.b16 %v3883, %v3882
  %vm3892 = vcmask 523264
  %v3894 = vsel %vm3892, %v3855, 0
  %3896 = vmatpush.bf16.msra.mxu0 0
  %3897 = vmatpush.bf16.msra.mxu0 0
  %3898 = vmatpush.bf16.msra.mxu0 0
  %3899 = vmatpush.bf16.msra.mxu0 0
  %3900 = vmatpush.bf16.msra.mxu0 %v3887
  %3901 = vmatpush.bf16.msra.mxu0 %v3886
  %3902 = vmatpush.bf16.msra.mxu0 %v3885
  %3903 = vmatpush.bf16.msra.mxu0 %v3884
  %3904 = vmatmul.bf16.gmra.mxu0 %v3894
  %v3905 = vpop.f32.mrf.mxu0
  %v3906 = vadd.f32 %v3866, %v3905
  %v3907 = vpop.f32.mrf.mxu0
  %3908 = vdwg.mxu0
  %vm3909 = vcmask 15360
  %3910 = vst.msk [vmem:[%s8] sm:$0xff] %vm3909, %v3906
  // Predicated region
  $region34: #{critic_dict_obs_forward.1} parent=0 // pred_check
    _
  $region35: #{critic_dict_obs_forward.1} parent=0 // pred_check_branch
    %3912 = sbr.rel (0) target = $region37
  $region36: #{critic_dict_obs_forward.1} parent=0 // pred_region
    _
  $region37: #{critic_dict_obs_forward.1} parent=0 // pred_fallthru
    _
  // Predicated region
  $region38: #{critic_dict_obs_forward.1} parent=0 // pred_check
    _
  $region39: #{critic_dict_obs_forward.1} parent=0 // pred_check_branch
    %3914 = sbr.rel (0) target = $region41
  $region40: #{critic_dict_obs_forward.1} parent=0 // pred_region
    _
  $region41: #{critic_dict_obs_forward.1} parent=0 // pred_fallthru
    _

</llo_original>
